<compile_context>
chip_gen: v5e
topology: v5e:2x2
jax: 0.10.0
libtpu: 0.0.40
codegen_flags: <defaults>
</compile_context>

<pallas_src>
import functools

import jax
import jax.numpy as jnp
from jax.experimental import pallas as pl
from jax.experimental.pallas import tpu as pltpu


# ---------------- Pallas kernels ----------------

def _conv_stats_kernel(x2_ref, w_ref, bias_ref, mask_ref,
                       y_ref, sum_ref, sq_ref, *, Hp):
    """Fused 3-D conv (as 9 banded matmuls) + bias + BN partial statistics.

    x2_ref:   ((D+2)*(H+2)+2, (W+2)*Cin)  padded/flattened input, bf16
    w_ref:    (9, (W+2)*Cin, W*Cout)      banded weights (kd*3+kh major), bf16
    bias_ref: (1, W*Cout)                 bias tiled over w, f32
    mask_ref: (1, Q)                      1.0 on valid (non h-pad) rows, f32
    y_ref:    (Q, W*Cout)                 conv+bias output (Q = D*(H+2)), bf16
    sum_ref/sq_ref: (1, W*Cout)           per-sample partial sums (valid rows)
    """
    q, wc_out = y_ref.shape
    acc = jnp.zeros((q, wc_out), jnp.float32)
    for kd in range(3):
        for kh in range(3):
            s = kd * Hp + kh
            a = x2_ref[s:s + q, :]                       # contiguous row slice
            acc = acc + jnp.dot(a, w_ref[kd * 3 + kh],
                                preferred_element_type=jnp.float32)
    acc = acc + bias_ref[...]
    # Intermediate slab stored narrow (bf16) to halve HBM traffic of the
    # write-here / read-in-BN-pass round trip; stats stay on the f32 acc.
    y_ref[...] = acc.astype(y_ref.dtype)

    # Masked partial statistics (masked matmul keeps the h-pad garbage rows
    # out of the BatchNorm batch statistics).
    m = mask_ref[...]
    sum_ref[...] = jnp.dot(m, acc, preferred_element_type=jnp.float32)
    sq_ref[...] = jnp.dot(m, acc * acc, preferred_element_type=jnp.float32)


def _bn_relu_kernel(y_ref, scale_ref, shift_ref, o_ref):
    # Lane-dense BN apply + ReLU on a (rows, 128) view of the conv output.
    y = y_ref[...].astype(jnp.float32)
    o_ref[...] = jnp.maximum(
        y * scale_ref[...] + shift_ref[...], 0.0).astype(o_ref.dtype)


# ---------------- Glue (plain JAX) ----------------

def _banded_weight(w_torch, width):
    """(Cout,Cin,3,3,3) torch weight -> (9, (W+2)*Cin, W*Cout) banded matrix."""
    cout, cin = int(w_torch.shape[0]), int(w_torch.shape[1])
    wp = width + 2
    wt = jnp.transpose(w_torch, (2, 3, 4, 1, 0))         # (kd, kh, kw, Cin, Cout)
    b = jnp.zeros((3, 3, wp * cin, width * cout), w_torch.dtype)
    for kw in range(3):
        blk = wt[:, :, kw]                               # (3, 3, Cin, Cout)
        for w in range(width):
            b = b.at[:, :, (w + kw) * cin:(w + kw + 1) * cin,
                     w * cout:(w + 1) * cout].set(blk)
    return b.reshape(9, wp * cin, width * cout)


def _row_tile(rows, cap=2048):
    """Largest row tile (multiple of 8) <= cap that divides rows."""
    if rows <= cap:
        return rows
    for t in range(cap - cap % 8, 7, -8):
        if rows % t == 0:
            return t
    return rows  # TODO(synk): pad awkward row counts instead of one giant block.


def _conv_bn_relu_layer(x, w_torch, bias, gamma, beta, *, out_dtype,
                        eps=1e-5):
    """One Conv3d(3x3x3, pad 1) -> BatchNorm3d (train stats) -> ReLU, NDHWC."""
    n, d, h, w, cin = x.shape
    cout = int(w_torch.shape[0])
    dp, hp, wp = d + 2, h + 2, w + 2
    q = d * hp                       # rows computed per sample (h-padded; trimmed later)
    wc_in, wc_out = wp * cin, w * cout
    r = dp * hp + 2                  # +2 slack rows keep the largest tap slice in-bounds

    # Padded, row/lane-flattened input slab (bf16 for the matmul operand).
    xpad = jnp.pad(x, ((0, 0), (1, 1), (1, 1), (1, 1), (0, 0)))
    x2 = xpad.reshape(n, dp * hp, wc_in)
    x2 = jnp.pad(x2, ((0, 0), (0, 2), (0, 0))).astype(jnp.bfloat16)

    bw = _banded_weight(w_torch, w).astype(jnp.bfloat16)       # VMEM-resident
    bias_row = jnp.tile(bias, w).reshape(1, wc_out).astype(jnp.float32)
    mask = ((jnp.arange(q) % hp) < h).astype(jnp.float32).reshape(1, q)

    kernel = functools.partial(_conv_stats_kernel, Hp=hp)
    flops = int(2 * n * 9 * q * wc_in * wc_out)
    bytes_accessed = int(n * r * wc_in * 2 + bw.size * 2 + n * q * wc_out * 2)

    y_full, s_part, sq_part = pl.pallas_call(
        kernel,
        out_shape=(jax.ShapeDtypeStruct((n, q, wc_out), jnp.bfloat16),
                   jax.ShapeDtypeStruct((n, 1, wc_out), jnp.float32),
                   jax.ShapeDtypeStruct((n, 1, wc_out), jnp.float32)),
        grid=(n,),
        in_specs=[
            pl.BlockSpec((None, r, wc_in), lambda i: (i, 0, 0)),
            pl.BlockSpec((9, wc_in, wc_out), lambda i: (0, 0, 0)),
            pl.BlockSpec((1, wc_out), lambda i: (0, 0)),
            pl.BlockSpec((1, q), lambda i: (0, 0)),
        ],
        out_specs=(pl.BlockSpec((None, q, wc_out), lambda i: (i, 0, 0)),
                   pl.BlockSpec((None, 1, wc_out), lambda i: (i, 0, 0)),
                   pl.BlockSpec((None, 1, wc_out), lambda i: (i, 0, 0))),
        compiler_params=pltpu.CompilerParams(
            dimension_semantics=("parallel",)),
        cost_estimate=pl.CostEstimate(
            flops=flops, transcendentals=0, bytes_accessed=bytes_accessed),
    )(x2, bw, bias_row, mask)

    # BatchNorm parameters from the fused batch statistics (biased variance,
    # matching PyTorch train-mode normalization).
    count = float(n * d * h * w)
    ssum = jnp.sum(s_part.reshape(n, w, cout), axis=(0, 1))
    ssq = jnp.sum(sq_part.reshape(n, w, cout), axis=(0, 1))
    mean = ssum / count
    # TODO(synk): E[x^2]-E[x]^2 cancels catastrophically for very large M;
    # switch to a two-pass/Welford update if batch volumes grow.
    var = ssq / count - mean * mean
    inv = jax.lax.rsqrt(var + eps)
    scale = gamma * inv
    shift = beta - mean * scale

    # Lane-dense BN-apply + ReLU over the whole conv-output slab.
    total = n * q * wc_out
    lane = 128 if (128 % cout == 0 and total % 128 == 0) else wc_out
    rows = total // lane
    rep = lane // cout
    y2 = y_full.reshape(rows, lane)
    scale_row = jnp.tile(scale, rep).reshape(1, lane)
    shift_row = jnp.tile(shift, rep).reshape(1, lane)
    tr = _row_tile(rows)

    act2 = pl.pallas_call(
        _bn_relu_kernel,
        out_shape=jax.ShapeDtypeStruct((rows, lane), out_dtype),
        grid=(rows // tr,),
        in_specs=[pl.BlockSpec((tr, lane), lambda i: (i, 0)),
                  pl.BlockSpec((1, lane), lambda i: (0, 0)),
                  pl.BlockSpec((1, lane), lambda i: (0, 0))],
        out_specs=pl.BlockSpec((tr, lane), lambda i: (i, 0)),
        compiler_params=pltpu.CompilerParams(
            dimension_semantics=("parallel",)),
    )(y2, scale_row, shift_row)

    # Drop the h-padding rows and return NDHWC activations.
    act = act2.reshape(n, d, hp, w, cout)[:, :, :h]
    return act


def conv_block_forward(x_ncdhw, params):
    """ConvBlock.forward: (Conv3d->BN3d->ReLU) x2, NCDHW in/out."""
    (w1, b1, g1, be1), (w2, b2, g2, be2) = params
    x = jnp.transpose(x_ncdhw, (0, 2, 3, 4, 1))            # NCDHW -> NDHWC
    a1 = _conv_bn_relu_layer(x, w1, b1, g1, be1, out_dtype=jnp.bfloat16)
    a2 = _conv_bn_relu_layer(a1, w2, b2, g2, be2, out_dtype=jnp.float32)
    return jnp.transpose(a2, (0, 4, 1, 2, 3))              # NDHWC -> NCDHW


# ---------------- Pure-JAX reference (f32) ----------------

def _ref_conv_bn_relu(x, w_torch, b, gamma, beta, eps=1e-5):
    w_j = jnp.transpose(w_torch, (2, 3, 4, 1, 0))          # DHWIO
    y = jax.lax.conv_general_dilated(
        x, w_j, window_strides=(1, 1, 1),
        padding=((1, 1), (1, 1), (1, 1)),
        dimension_numbers=('NDHWC', 'DHWIO', 'NDHWC'),
        precision=jax.lax.Precision.HIGHEST)
    y = y + b
    mean = jnp.mean(y, axis=(0, 1, 2, 3))
    var = jnp.var(y, axis=(0, 1, 2, 3))
    y = (y - mean) / jnp.sqrt(var + eps) * gamma + beta
    return jnp.maximum(y, 0.0)


def reference_forward(x_ncdhw, params):
    (w1, b1, g1, be1), (w2, b2, g2, be2) = params
    x = jnp.transpose(x_ncdhw, (0, 2, 3, 4, 1))
    y = _ref_conv_bn_relu(x, w1, b1, g1, be1)
    y = _ref_conv_bn_relu(y, w2, b2, g2, be2)
    return jnp.transpose(y, (0, 4, 1, 2, 3))


# ---------------- Driver ----------------

if __name__ == "__main__":
    key = jax.random.PRNGKey(0)
    in_channels, out_channels = 4, 8
    N, D, H, W = 2, 8, 8, 8

    k_x, k_w1, k_b1, k_w2, k_b2 = jax.random.split(key, 5)
    x = jax.random.normal(k_x, (N, in_channels, D, H, W), jnp.float32)

    # Deterministic PyTorch-default-style init (uniform +-1/sqrt(fan_in); BN
    # gamma=1, beta=0).
    fan1 = float(in_channels * 27)
    w1 = jax.random.uniform(k_w1, (out_channels, in_channels, 3, 3, 3),
                            jnp.float32, -1.0, 1.0) / jnp.sqrt(fan1)
    b1 = jax.random.uniform(k_b1, (out_channels,),
                            jnp.float32, -1.0, 1.0) / jnp.sqrt(fan1)
    fan2 = float(out_channels * 27)
    w2 = jax.random.uniform(k_w2, (out_channels, out_channels, 3, 3, 3),
                            jnp.float32, -1.0, 1.0) / jnp.sqrt(fan2)
    b2 = jax.random.uniform(k_b2, (out_channels,),
                            jnp.float32, -1.0, 1.0) / jnp.sqrt(fan2)
    g1 = jnp.ones((out_channels,), jnp.float32)
    be1 = jnp.zeros((out_channels,), jnp.float32)
    g2 = jnp.ones((out_channels,), jnp.float32)
    be2 = jnp.zeros((out_channels,), jnp.float32)
    params = ((w1, b1, g1, be1), (w2, b2, g2, be2))

    out = jax.jit(conv_block_forward)(x, params)
    out = jax.block_until_ready(out)
    assert out.shape == (N, out_channels, D, H, W)
    assert bool(jnp.all(jnp.isfinite(out)))

    ref = jax.jit(reference_forward)(x, params)
    max_err = float(jnp.max(jnp.abs(out - ref)))
    # Tolerance accounts for bf16 matmul operands, bf16 inter-layer
    # activations AND bf16 pre-BN intermediate slabs (f32 accumulation and
    # f32 BN statistics) across two layers vs. the f32 HIGHEST-precision
    # reference.
    assert max_err < 7.5e-2, f"max abs error too large: {max_err}"

    print("KERNEL_OK")
</pallas_src>

<mosaic_0001>
module attributes {stable_mosaic.version = 11 : i64} {
  func.func @_conv_stats_kernel(%arg0: i32, %arg1: memref<1x102x40xbf16, #tpu.memory_space<vmem>>, %arg2: memref<9x40x64xbf16, #tpu.memory_space<vmem>>, %arg3: memref<1x64xf32, #tpu.memory_space<vmem>>, %arg4: memref<1x80xf32, #tpu.memory_space<vmem>>, %arg5: memref<1x80x64xbf16, #tpu.memory_space<vmem>>, %arg6: memref<1x1x64xf32, #tpu.memory_space<vmem>>, %arg7: memref<1x1x64xf32, #tpu.memory_space<vmem>>) attributes {dimension_semantics = [#tpu.dimension_semantics<parallel>], iteration_bounds = array<i64: 2>, scalar_prefetch = 0 : i64, scratch_operands = 0 : i64, tpu.core_type = #tpu.core_type<tc>, window_params = [{transform_indices = @transform_0, window_bounds = array<i64: 1, 102, 40>}, {pipeline_mode = #tpu.pipeline_mode<synchronous>, transform_indices = @transform_1, window_bounds = array<i64: 9, 40, 64>}, {pipeline_mode = #tpu.pipeline_mode<synchronous>, transform_indices = @transform_2, window_bounds = array<i64: 1, 64>}, {pipeline_mode = #tpu.pipeline_mode<synchronous>, transform_indices = @transform_3, window_bounds = array<i64: 1, 80>}, {transform_indices = @transform_4, window_bounds = array<i64: 1, 80, 64>}, {transform_indices = @transform_5, window_bounds = array<i64: 1, 1, 64>}, {transform_indices = @transform_6, window_bounds = array<i64: 1, 1, 64>}]} {
    %cst = arith.constant 0.000000e+00 : f32
    %0 = vector.broadcast %cst : f32 to vector<80x64xf32>
    %c0 = arith.constant 0 : index
    %c0_0 = arith.constant 0 : index
    %c0_1 = arith.constant 0 : index
    %1 = vector.load %arg1[%c0, %c0_0, %c0_1] : memref<1x102x40xbf16, #tpu.memory_space<vmem>>, vector<1x80x40xbf16>
    %2 = vector.shape_cast %1 : vector<1x80x40xbf16> to vector<80x40xbf16>
    %c0_2 = arith.constant 0 : index
    %c0_3 = arith.constant 0 : index
    %c0_4 = arith.constant 0 : index
    %3 = vector.load %arg2[%c0_2, %c0_3, %c0_4] : memref<9x40x64xbf16, #tpu.memory_space<vmem>>, vector<1x40x64xbf16>
    %4 = vector.shape_cast %3 : vector<1x40x64xbf16> to vector<40x64xbf16>
    %cst_5 = arith.constant dense<0.000000e+00> : vector<80x64xf32>
    %5 = tpu.matmul %2, %4, %cst_5 {dimension_numbers = #tpu.dot_dimension_numbers<[1], [0], [0], [1], [0, 0, 1, 1], [], []>} : vector<80x40xbf16>, vector<40x64xbf16>, vector<80x64xf32> -> vector<80x64xf32>
    %6 = arith.addf %0, %5 : vector<80x64xf32>
    %c0_6 = arith.constant 0 : index
    %c1 = arith.constant 1 : index
    %c0_7 = arith.constant 0 : index
    %7 = vector.load %arg1[%c0_6, %c1, %c0_7] : memref<1x102x40xbf16, #tpu.memory_space<vmem>>, vector<1x80x40xbf16>
    %8 = vector.shape_cast %7 : vector<1x80x40xbf16> to vector<80x40xbf16>
    %c1_8 = arith.constant 1 : index
    %c0_9 = arith.constant 0 : index
    %c0_10 = arith.constant 0 : index
    %9 = vector.load %arg2[%c1_8, %c0_9, %c0_10] : memref<9x40x64xbf16, #tpu.memory_space<vmem>>, vector<1x40x64xbf16>
    %10 = vector.shape_cast %9 : vector<1x40x64xbf16> to vector<40x64xbf16>
    %cst_11 = arith.constant dense<0.000000e+00> : vector<80x64xf32>
    %11 = tpu.matmul %8, %10, %cst_11 {dimension_numbers = #tpu.dot_dimension_numbers<[1], [0], [0], [1], [0, 0, 1, 1], [], []>} : vector<80x40xbf16>, vector<40x64xbf16>, vector<80x64xf32> -> vector<80x64xf32>
    %12 = arith.addf %6, %11 : vector<80x64xf32>
    %c0_12 = arith.constant 0 : index
    %c2 = arith.constant 2 : index
    %c0_13 = arith.constant 0 : index
    %13 = vector.load %arg1[%c0_12, %c2, %c0_13] : memref<1x102x40xbf16, #tpu.memory_space<vmem>>, vector<1x80x40xbf16>
    %14 = vector.shape_cast %13 : vector<1x80x40xbf16> to vector<80x40xbf16>
    %c2_14 = arith.constant 2 : index
    %c0_15 = arith.constant 0 : index
    %c0_16 = arith.constant 0 : index
    %15 = vector.load %arg2[%c2_14, %c0_15, %c0_16] : memref<9x40x64xbf16, #tpu.memory_space<vmem>>, vector<1x40x64xbf16>
    %16 = vector.shape_cast %15 : vector<1x40x64xbf16> to vector<40x64xbf16>
    %cst_17 = arith.constant dense<0.000000e+00> : vector<80x64xf32>
    %17 = tpu.matmul %14, %16, %cst_17 {dimension_numbers = #tpu.dot_dimension_numbers<[1], [0], [0], [1], [0, 0, 1, 1], [], []>} : vector<80x40xbf16>, vector<40x64xbf16>, vector<80x64xf32> -> vector<80x64xf32>
    %18 = arith.addf %12, %17 : vector<80x64xf32>
    %c0_18 = arith.constant 0 : index
    %c10 = arith.constant 10 : index
    %c0_19 = arith.constant 0 : index
    %19 = vector.load %arg1[%c0_18, %c10, %c0_19] : memref<1x102x40xbf16, #tpu.memory_space<vmem>>, vector<1x80x40xbf16>
    %20 = vector.shape_cast %19 : vector<1x80x40xbf16> to vector<80x40xbf16>
    %c3 = arith.constant 3 : index
    %c0_20 = arith.constant 0 : index
    %c0_21 = arith.constant 0 : index
    %21 = vector.load %arg2[%c3, %c0_20, %c0_21] : memref<9x40x64xbf16, #tpu.memory_space<vmem>>, vector<1x40x64xbf16>
    %22 = vector.shape_cast %21 : vector<1x40x64xbf16> to vector<40x64xbf16>
    %cst_22 = arith.constant dense<0.000000e+00> : vector<80x64xf32>
    %23 = tpu.matmul %20, %22, %cst_22 {dimension_numbers = #tpu.dot_dimension_numbers<[1], [0], [0], [1], [0, 0, 1, 1], [], []>} : vector<80x40xbf16>, vector<40x64xbf16>, vector<80x64xf32> -> vector<80x64xf32>
    %24 = arith.addf %18, %23 : vector<80x64xf32>
    %c0_23 = arith.constant 0 : index
    %c11 = arith.constant 11 : index
    %c0_24 = arith.constant 0 : index
    %25 = vector.load %arg1[%c0_23, %c11, %c0_24] : memref<1x102x40xbf16, #tpu.memory_space<vmem>>, vector<1x80x40xbf16>
    %26 = vector.shape_cast %25 : vector<1x80x40xbf16> to vector<80x40xbf16>
    %c4 = arith.constant 4 : index
    %c0_25 = arith.constant 0 : index
    %c0_26 = arith.constant 0 : index
    %27 = vector.load %arg2[%c4, %c0_25, %c0_26] : memref<9x40x64xbf16, #tpu.memory_space<vmem>>, vector<1x40x64xbf16>
    %28 = vector.shape_cast %27 : vector<1x40x64xbf16> to vector<40x64xbf16>
    %cst_27 = arith.constant dense<0.000000e+00> : vector<80x64xf32>
    %29 = tpu.matmul %26, %28, %cst_27 {dimension_numbers = #tpu.dot_dimension_numbers<[1], [0], [0], [1], [0, 0, 1, 1], [], []>} : vector<80x40xbf16>, vector<40x64xbf16>, vector<80x64xf32> -> vector<80x64xf32>
    %30 = arith.addf %24, %29 : vector<80x64xf32>
    %c0_28 = arith.constant 0 : index
    %c12 = arith.constant 12 : index
    %c0_29 = arith.constant 0 : index
    %31 = vector.load %arg1[%c0_28, %c12, %c0_29] : memref<1x102x40xbf16, #tpu.memory_space<vmem>>, vector<1x80x40xbf16>
    %32 = vector.shape_cast %31 : vector<1x80x40xbf16> to vector<80x40xbf16>
    %c5 = arith.constant 5 : index
    %c0_30 = arith.constant 0 : index
    %c0_31 = arith.constant 0 : index
    %33 = vector.load %arg2[%c5, %c0_30, %c0_31] : memref<9x40x64xbf16, #tpu.memory_space<vmem>>, vector<1x40x64xbf16>
    %34 = vector.shape_cast %33 : vector<1x40x64xbf16> to vector<40x64xbf16>
    %cst_32 = arith.constant dense<0.000000e+00> : vector<80x64xf32>
    %35 = tpu.matmul %32, %34, %cst_32 {dimension_numbers = #tpu.dot_dimension_numbers<[1], [0], [0], [1], [0, 0, 1, 1], [], []>} : vector<80x40xbf16>, vector<40x64xbf16>, vector<80x64xf32> -> vector<80x64xf32>
    %36 = arith.addf %30, %35 : vector<80x64xf32>
    %c0_33 = arith.constant 0 : index
    %c20 = arith.constant 20 : index
    %c0_34 = arith.constant 0 : index
    %37 = vector.load %arg1[%c0_33, %c20, %c0_34] : memref<1x102x40xbf16, #tpu.memory_space<vmem>>, vector<1x80x40xbf16>
    %38 = vector.shape_cast %37 : vector<1x80x40xbf16> to vector<80x40xbf16>
    %c6 = arith.constant 6 : index
    %c0_35 = arith.constant 0 : index
    %c0_36 = arith.constant 0 : index
    %39 = vector.load %arg2[%c6, %c0_35, %c0_36] : memref<9x40x64xbf16, #tpu.memory_space<vmem>>, vector<1x40x64xbf16>
    %40 = vector.shape_cast %39 : vector<1x40x64xbf16> to vector<40x64xbf16>
    %cst_37 = arith.constant dense<0.000000e+00> : vector<80x64xf32>
    %41 = tpu.matmul %38, %40, %cst_37 {dimension_numbers = #tpu.dot_dimension_numbers<[1], [0], [0], [1], [0, 0, 1, 1], [], []>} : vector<80x40xbf16>, vector<40x64xbf16>, vector<80x64xf32> -> vector<80x64xf32>
    %42 = arith.addf %36, %41 : vector<80x64xf32>
    %c0_38 = arith.constant 0 : index
    %c21 = arith.constant 21 : index
    %c0_39 = arith.constant 0 : index
    %43 = vector.load %arg1[%c0_38, %c21, %c0_39] : memref<1x102x40xbf16, #tpu.memory_space<vmem>>, vector<1x80x40xbf16>
    %44 = vector.shape_cast %43 : vector<1x80x40xbf16> to vector<80x40xbf16>
    %c7 = arith.constant 7 : index
    %c0_40 = arith.constant 0 : index
    %c0_41 = arith.constant 0 : index
    %45 = vector.load %arg2[%c7, %c0_40, %c0_41] : memref<9x40x64xbf16, #tpu.memory_space<vmem>>, vector<1x40x64xbf16>
    %46 = vector.shape_cast %45 : vector<1x40x64xbf16> to vector<40x64xbf16>
    %cst_42 = arith.constant dense<0.000000e+00> : vector<80x64xf32>
    %47 = tpu.matmul %44, %46, %cst_42 {dimension_numbers = #tpu.dot_dimension_numbers<[1], [0], [0], [1], [0, 0, 1, 1], [], []>} : vector<80x40xbf16>, vector<40x64xbf16>, vector<80x64xf32> -> vector<80x64xf32>
    %48 = arith.addf %42, %47 : vector<80x64xf32>
    %c0_43 = arith.constant 0 : index
    %c22 = arith.constant 22 : index
    %c0_44 = arith.constant 0 : index
    %49 = vector.load %arg1[%c0_43, %c22, %c0_44] : memref<1x102x40xbf16, #tpu.memory_space<vmem>>, vector<1x80x40xbf16>
    %50 = vector.shape_cast %49 : vector<1x80x40xbf16> to vector<80x40xbf16>
    %c8 = arith.constant 8 : index
    %c0_45 = arith.constant 0 : index
    %c0_46 = arith.constant 0 : index
    %51 = vector.load %arg2[%c8, %c0_45, %c0_46] : memref<9x40x64xbf16, #tpu.memory_space<vmem>>, vector<1x40x64xbf16>
    %52 = vector.shape_cast %51 : vector<1x40x64xbf16> to vector<40x64xbf16>
    %cst_47 = arith.constant dense<0.000000e+00> : vector<80x64xf32>
    %53 = tpu.matmul %50, %52, %cst_47 {dimension_numbers = #tpu.dot_dimension_numbers<[1], [0], [0], [1], [0, 0, 1, 1], [], []>} : vector<80x40xbf16>, vector<40x64xbf16>, vector<80x64xf32> -> vector<80x64xf32>
    %54 = arith.addf %48, %53 : vector<80x64xf32>
    %c0_48 = arith.constant 0 : index
    %c0_49 = arith.constant 0 : index
    %55 = vector.load %arg3[%c0_48, %c0_49] : memref<1x64xf32, #tpu.memory_space<vmem>>, vector<1x64xf32>
    %56 = vector.broadcast %55 : vector<1x64xf32> to vector<80x64xf32>
    %57 = arith.addf %54, %56 : vector<80x64xf32>
    %58 = arith.truncf %57 : vector<80x64xf32> to vector<80x64xbf16>
    %c0_50 = arith.constant 0 : index
    %c0_51 = arith.constant 0 : index
    %c0_52 = arith.constant 0 : index
    %59 = vector.load %arg5[%c0_50, %c0_51, %c0_52] : memref<1x80x64xbf16, #tpu.memory_space<vmem>>, vector<1x80x64xbf16>
    %60 = vector.shape_cast %59 : vector<1x80x64xbf16> to vector<80x64xbf16>
    %61 = vector.shape_cast %58 : vector<80x64xbf16> to vector<1x80x64xbf16>
    tpu.vector_store %arg5[%c0_50, %c0_51, %c0_52], %61 {strides = array<i32>} : memref<1x80x64xbf16, #tpu.memory_space<vmem>>, vector<1x80x64xbf16>,
    %c0_53 = arith.constant 0 : index
    %c0_54 = arith.constant 0 : index
    %62 = vector.load %arg4[%c0_53, %c0_54] : memref<1x80xf32, #tpu.memory_space<vmem>>, vector<1x80xf32>
    %cst_55 = arith.constant dense<0.000000e+00> : vector<1x64xf32>
    %63 = tpu.matmul %62, %57, %cst_55 {dimension_numbers = #tpu.dot_dimension_numbers<[1], [0], [0], [1], [0, 0, 1, 1], [], []>} : vector<1x80xf32>, vector<80x64xf32>, vector<1x64xf32> -> vector<1x64xf32>
    %c0_56 = arith.constant 0 : index
    %c0_57 = arith.constant 0 : index
    %c0_58 = arith.constant 0 : index
    %64 = vector.load %arg6[%c0_56, %c0_57, %c0_58] : memref<1x1x64xf32, #tpu.memory_space<vmem>>, vector<1x1x64xf32>
    %65 = vector.shape_cast %64 : vector<1x1x64xf32> to vector<1x64xf32>
    %66 = vector.shape_cast %63 : vector<1x64xf32> to vector<1x1x64xf32>
    tpu.vector_store %arg6[%c0_56, %c0_57, %c0_58], %66 {strides = array<i32>} : memref<1x1x64xf32, #tpu.memory_space<vmem>>, vector<1x1x64xf32>,
    %67 = arith.mulf %57, %57 : vector<80x64xf32>
    %cst_59 = arith.constant dense<0.000000e+00> : vector<1x64xf32>
    %68 = tpu.matmul %62, %67, %cst_59 {dimension_numbers = #tpu.dot_dimension_numbers<[1], [0], [0], [1], [0, 0, 1, 1], [], []>} : vector<1x80xf32>, vector<80x64xf32>, vector<1x64xf32> -> vector<1x64xf32>
    %c0_60 = arith.constant 0 : index
    %c0_61 = arith.constant 0 : index
    %c0_62 = arith.constant 0 : index
    %69 = vector.load %arg7[%c0_60, %c0_61, %c0_62] : memref<1x1x64xf32, #tpu.memory_space<vmem>>, vector<1x1x64xf32>
    %70 = vector.shape_cast %69 : vector<1x1x64xf32> to vector<1x64xf32>
    %71 = vector.shape_cast %68 : vector<1x64xf32> to vector<1x1x64xf32>
    tpu.vector_store %arg7[%c0_60, %c0_61, %c0_62], %71 {strides = array<i32>} : memref<1x1x64xf32, #tpu.memory_space<vmem>>, vector<1x1x64xf32>,
    return
  }
  func.func @transform_0(%arg0: i32) -> (i32, i32, i32) {
    %c0_i32 = arith.constant 0 : i32
    %c0_i32_0 = arith.constant 0 : i32
    %c0_i32_1 = arith.constant 0 : i32
    return %arg0, %c0_i32, %c0_i32_0 : i32, i32, i32
  }
  func.func @transform_1(%arg0: i32) -> (i32, i32, i32) {
    %c0_i32 = arith.constant 0 : i32
    %c0_i32_0 = arith.constant 0 : i32
    %c0_i32_1 = arith.constant 0 : i32
    %c0_i32_2 = arith.constant 0 : i32
    return %c0_i32, %c0_i32_0, %c0_i32_1 : i32, i32, i32
  }
  func.func @transform_2(%arg0: i32) -> (i32, i32) {
    %c0_i32 = arith.constant 0 : i32
    %c0_i32_0 = arith.constant 0 : i32
    %c0_i32_1 = arith.constant 0 : i32
    return %c0_i32, %c0_i32_0 : i32, i32
  }
  func.func @transform_3(%arg0: i32) -> (i32, i32) {
    %c0_i32 = arith.constant 0 : i32
    %c0_i32_0 = arith.constant 0 : i32
    %c0_i32_1 = arith.constant 0 : i32
    return %c0_i32, %c0_i32_0 : i32, i32
  }
  func.func @transform_4(%arg0: i32) -> (i32, i32, i32) {
    %c0_i32 = arith.constant 0 : i32
    %c0_i32_0 = arith.constant 0 : i32
    %c0_i32_1 = arith.constant 0 : i32
    return %arg0, %c0_i32, %c0_i32_0 : i32, i32, i32
  }
  func.func @transform_5(%arg0: i32) -> (i32, i32, i32) {
    %c0_i32 = arith.constant 0 : i32
    %c0_i32_0 = arith.constant 0 : i32
    %c0_i32_1 = arith.constant 0 : i32
    return %arg0, %c0_i32, %c0_i32_0 : i32, i32, i32
  }
  func.func @transform_6(%arg0: i32) -> (i32, i32, i32) {
    %c0_i32 = arith.constant 0 : i32
    %c0_i32_0 = arith.constant 0 : i32
    %c0_i32_1 = arith.constant 0 : i32
    return %arg0, %c0_i32, %c0_i32_0 : i32, i32, i32
  }
}

module attributes {stable_mosaic.version = 11 : i64} {
  func.func @_bn_relu_kernel(%arg0: i32, %arg1: memref<80x128xbf16, #tpu.memory_space<vmem>>, %arg2: memref<1x128xf32, #tpu.memory_space<vmem>>, %arg3: memref<1x128xf32, #tpu.memory_space<vmem>>, %arg4: memref<80x128xbf16, #tpu.memory_space<vmem>>) attributes {dimension_semantics = [#tpu.dimension_semantics<parallel>], iteration_bounds = array<i64: 1>, scalar_prefetch = 0 : i64, scratch_operands = 0 : i64, tpu.core_type = #tpu.core_type<tc>, window_params = [{transform_indices = @transform_0, window_bounds = array<i64: 80, 128>}, {pipeline_mode = #tpu.pipeline_mode<synchronous>, transform_indices = @transform_1, window_bounds = array<i64: 1, 128>}, {pipeline_mode = #tpu.pipeline_mode<synchronous>, transform_indices = @transform_2, window_bounds = array<i64: 1, 128>}, {transform_indices = @transform_3, window_bounds = array<i64: 80, 128>}]} {
    %c0 = arith.constant 0 : index
    %c0_0 = arith.constant 0 : index
    %0 = vector.load %arg1[%c0, %c0_0] : memref<80x128xbf16, #tpu.memory_space<vmem>>, vector<80x128xbf16>
    %1 = arith.extf %0 : vector<80x128xbf16> to vector<80x128xf32>
    %c0_1 = arith.constant 0 : index
    %c0_2 = arith.constant 0 : index
    %2 = vector.load %arg2[%c0_1, %c0_2] : memref<1x128xf32, #tpu.memory_space<vmem>>, vector<1x128xf32>
    %3 = vector.broadcast %2 : vector<1x128xf32> to vector<80x128xf32>
    %4 = arith.mulf %1, %3 : vector<80x128xf32>
    %c0_3 = arith.constant 0 : index
    %c0_4 = arith.constant 0 : index
    %5 = vector.load %arg3[%c0_3, %c0_4] : memref<1x128xf32, #tpu.memory_space<vmem>>, vector<1x128xf32>
    %6 = vector.broadcast %5 : vector<1x128xf32> to vector<80x128xf32>
    %7 = arith.addf %4, %6 : vector<80x128xf32>
    %cst = arith.constant 0.000000e+00 : f32
    %8 = vector.broadcast %cst : f32 to vector<80x128xf32>
    %9 = arith.maximumf %7, %8 : vector<80x128xf32>
    %10 = arith.truncf %9 : vector<80x128xf32> to vector<80x128xbf16>
    %c0_5 = arith.constant 0 : index
    %c0_6 = arith.constant 0 : index
    %11 = vector.load %arg4[%c0_5, %c0_6] : memref<80x128xbf16, #tpu.memory_space<vmem>>, vector<80x128xbf16>
    tpu.vector_store %arg4[%c0_5, %c0_6], %10 {strides = array<i32>} : memref<80x128xbf16, #tpu.memory_space<vmem>>, vector<80x128xbf16>,
    return
  }
  func.func @transform_0(%arg0: i32) -> (i32, i32) {
    %c0_i32 = arith.constant 0 : i32
    %c0_i32_0 = arith.constant 0 : i32
    return %arg0, %c0_i32 : i32, i32
  }
  func.func @transform_1(%arg0: i32) -> (i32, i32) {
    %c0_i32 = arith.constant 0 : i32
    %c0_i32_0 = arith.constant 0 : i32
    %c0_i32_1 = arith.constant 0 : i32
    return %c0_i32, %c0_i32_0 : i32, i32
  }
  func.func @transform_2(%arg0: i32) -> (i32, i32) {
    %c0_i32 = arith.constant 0 : i32
    %c0_i32_0 = arith.constant 0 : i32
    %c0_i32_1 = arith.constant 0 : i32
    return %c0_i32, %c0_i32_0 : i32, i32
  }
  func.func @transform_3(%arg0: i32) -> (i32, i32) {
    %c0_i32 = arith.constant 0 : i32
    %c0_i32_0 = arith.constant 0 : i32
    return %arg0, %c0_i32 : i32, i32
  }
}

module attributes {stable_mosaic.version = 11 : i64} {
  func.func @_bn_relu_kernel(%arg0: i32, %arg1: memref<80x128xbf16, #tpu.memory_space<vmem>>, %arg2: memref<1x128xf32, #tpu.memory_space<vmem>>, %arg3: memref<1x128xf32, #tpu.memory_space<vmem>>, %arg4: memref<80x128xf32, #tpu.memory_space<vmem>>) attributes {dimension_semantics = [#tpu.dimension_semantics<parallel>], iteration_bounds = array<i64: 1>, scalar_prefetch = 0 : i64, scratch_operands = 0 : i64, tpu.core_type = #tpu.core_type<tc>, window_params = [{transform_indices = @transform_0, window_bounds = array<i64: 80, 128>}, {pipeline_mode = #tpu.pipeline_mode<synchronous>, transform_indices = @transform_1, window_bounds = array<i64: 1, 128>}, {pipeline_mode = #tpu.pipeline_mode<synchronous>, transform_indices = @transform_2, window_bounds = array<i64: 1, 128>}, {transform_indices = @transform_3, window_bounds = array<i64: 80, 128>}]} {
    %c0 = arith.constant 0 : index
    %c0_0 = arith.constant 0 : index
    %0 = vector.load %arg1[%c0, %c0_0] : memref<80x128xbf16, #tpu.memory_space<vmem>>, vector<80x128xbf16>
    %1 = arith.extf %0 : vector<80x128xbf16> to vector<80x128xf32>
    %c0_1 = arith.constant 0 : index
    %c0_2 = arith.constant 0 : index
    %2 = vector.load %arg2[%c0_1, %c0_2] : memref<1x128xf32, #tpu.memory_space<vmem>>, vector<1x128xf32>
    %3 = vector.broadcast %2 : vector<1x128xf32> to vector<80x128xf32>
    %4 = arith.mulf %1, %3 : vector<80x128xf32>
    %c0_3 = arith.constant 0 : index
    %c0_4 = arith.constant 0 : index
    %5 = vector.load %arg3[%c0_3, %c0_4] : memref<1x128xf32, #tpu.memory_space<vmem>>, vector<1x128xf32>
    %6 = vector.broadcast %5 : vector<1x128xf32> to vector<80x128xf32>
    %7 = arith.addf %4, %6 : vector<80x128xf32>
    %cst = arith.constant 0.000000e+00 : f32
    %8 = vector.broadcast %cst : f32 to vector<80x128xf32>
    %9 = arith.maximumf %7, %8 : vector<80x128xf32>
    %c0_5 = arith.constant 0 : index
    %c0_6 = arith.constant 0 : index
    %10 = vector.load %arg4[%c0_5, %c0_6] : memref<80x128xf32, #tpu.memory_space<vmem>>, vector<80x128xf32>
    tpu.vector_store %arg4[%c0_5, %c0_6], %9 {strides = array<i32>} : memref<80x128xf32, #tpu.memory_space<vmem>>, vector<80x128xf32>,
    return
  }
  func.func @transform_0(%arg0: i32) -> (i32, i32) {
    %c0_i32 = arith.constant 0 : i32
    %c0_i32_0 = arith.constant 0 : i32
    return %arg0, %c0_i32 : i32, i32
  }
  func.func @transform_1(%arg0: i32) -> (i32, i32) {
    %c0_i32 = arith.constant 0 : i32
    %c0_i32_0 = arith.constant 0 : i32
    %c0_i32_1 = arith.constant 0 : i32
    return %c0_i32, %c0_i32_0 : i32, i32
  }
  func.func @transform_2(%arg0: i32) -> (i32, i32) {
    %c0_i32 = arith.constant 0 : i32
    %c0_i32_0 = arith.constant 0 : i32
    %c0_i32_1 = arith.constant 0 : i32
    return %c0_i32, %c0_i32_0 : i32, i32
  }
  func.func @transform_3(%arg0: i32) -> (i32, i32) {
    %c0_i32 = arith.constant 0 : i32
    %c0_i32_0 = arith.constant 0 : i32
    return %arg0, %c0_i32 : i32, i32
  }
}

module attributes {stable_mosaic.version = 11 : i64} {
  func.func @_conv_stats_kernel(%arg0: i32, %arg1: memref<1x102x80xbf16, #tpu.memory_space<vmem>>, %arg2: memref<9x80x64xbf16, #tpu.memory_space<vmem>>, %arg3: memref<1x64xf32, #tpu.memory_space<vmem>>, %arg4: memref<1x80xf32, #tpu.memory_space<vmem>>, %arg5: memref<1x80x64xbf16, #tpu.memory_space<vmem>>, %arg6: memref<1x1x64xf32, #tpu.memory_space<vmem>>, %arg7: memref<1x1x64xf32, #tpu.memory_space<vmem>>) attributes {dimension_semantics = [#tpu.dimension_semantics<parallel>], iteration_bounds = array<i64: 2>, scalar_prefetch = 0 : i64, scratch_operands = 0 : i64, tpu.core_type = #tpu.core_type<tc>, window_params = [{transform_indices = @transform_0, window_bounds = array<i64: 1, 102, 80>}, {pipeline_mode = #tpu.pipeline_mode<synchronous>, transform_indices = @transform_1, window_bounds = array<i64: 9, 80, 64>}, {pipeline_mode = #tpu.pipeline_mode<synchronous>, transform_indices = @transform_2, window_bounds = array<i64: 1, 64>}, {pipeline_mode = #tpu.pipeline_mode<synchronous>, transform_indices = @transform_3, window_bounds = array<i64: 1, 80>}, {transform_indices = @transform_4, window_bounds = array<i64: 1, 80, 64>}, {transform_indices = @transform_5, window_bounds = array<i64: 1, 1, 64>}, {transform_indices = @transform_6, window_bounds = array<i64: 1, 1, 64>}]} {
    %cst = arith.constant 0.000000e+00 : f32
    %0 = vector.broadcast %cst : f32 to vector<80x64xf32>
    %c0 = arith.constant 0 : index
    %c0_0 = arith.constant 0 : index
    %c0_1 = arith.constant 0 : index
    %1 = vector.load %arg1[%c0, %c0_0, %c0_1] : memref<1x102x80xbf16, #tpu.memory_space<vmem>>, vector<1x80x80xbf16>
    %2 = vector.shape_cast %1 : vector<1x80x80xbf16> to vector<80x80xbf16>
    %c0_2 = arith.constant 0 : index
    %c0_3 = arith.constant 0 : index
    %c0_4 = arith.constant 0 : index
    %3 = vector.load %arg2[%c0_2, %c0_3, %c0_4] : memref<9x80x64xbf16, #tpu.memory_space<vmem>>, vector<1x80x64xbf16>
    %4 = vector.shape_cast %3 : vector<1x80x64xbf16> to vector<80x64xbf16>
    %cst_5 = arith.constant dense<0.000000e+00> : vector<80x64xf32>
    %5 = tpu.matmul %2, %4, %cst_5 {dimension_numbers = #tpu.dot_dimension_numbers<[1], [0], [0], [1], [0, 0, 1, 1], [], []>} : vector<80x80xbf16>, vector<80x64xbf16>, vector<80x64xf32> -> vector<80x64xf32>
    %6 = arith.addf %0, %5 : vector<80x64xf32>
    %c0_6 = arith.constant 0 : index
    %c1 = arith.constant 1 : index
    %c0_7 = arith.constant 0 : index
    %7 = vector.load %arg1[%c0_6, %c1, %c0_7] : memref<1x102x80xbf16, #tpu.memory_space<vmem>>, vector<1x80x80xbf16>
    %8 = vector.shape_cast %7 : vector<1x80x80xbf16> to vector<80x80xbf16>
    %c1_8 = arith.constant 1 : index
    %c0_9 = arith.constant 0 : index
    %c0_10 = arith.constant 0 : index
    %9 = vector.load %arg2[%c1_8, %c0_9, %c0_10] : memref<9x80x64xbf16, #tpu.memory_space<vmem>>, vector<1x80x64xbf16>
    %10 = vector.shape_cast %9 : vector<1x80x64xbf16> to vector<80x64xbf16>
    %cst_11 = arith.constant dense<0.000000e+00> : vector<80x64xf32>
    %11 = tpu.matmul %8, %10, %cst_11 {dimension_numbers = #tpu.dot_dimension_numbers<[1], [0], [0], [1], [0, 0, 1, 1], [], []>} : vector<80x80xbf16>, vector<80x64xbf16>, vector<80x64xf32> -> vector<80x64xf32>
    %12 = arith.addf %6, %11 : vector<80x64xf32>
    %c0_12 = arith.constant 0 : index
    %c2 = arith.constant 2 : index
    %c0_13 = arith.constant 0 : index
    %13 = vector.load %arg1[%c0_12, %c2, %c0_13] : memref<1x102x80xbf16, #tpu.memory_space<vmem>>, vector<1x80x80xbf16>
    %14 = vector.shape_cast %13 : vector<1x80x80xbf16> to vector<80x80xbf16>
    %c2_14 = arith.constant 2 : index
    %c0_15 = arith.constant 0 : index
    %c0_16 = arith.constant 0 : index
    %15 = vector.load %arg2[%c2_14, %c0_15, %c0_16] : memref<9x80x64xbf16, #tpu.memory_space<vmem>>, vector<1x80x64xbf16>
    %16 = vector.shape_cast %15 : vector<1x80x64xbf16> to vector<80x64xbf16>
    %cst_17 = arith.constant dense<0.000000e+00> : vector<80x64xf32>
    %17 = tpu.matmul %14, %16, %cst_17 {dimension_numbers = #tpu.dot_dimension_numbers<[1], [0], [0], [1], [0, 0, 1, 1], [], []>} : vector<80x80xbf16>, vector<80x64xbf16>, vector<80x64xf32> -> vector<80x64xf32>
    %18 = arith.addf %12, %17 : vector<80x64xf32>
    %c0_18 = arith.constant 0 : index
    %c10 = arith.constant 10 : index
    %c0_19 = arith.constant 0 : index
    %19 = vector.load %arg1[%c0_18, %c10, %c0_19] : memref<1x102x80xbf16, #tpu.memory_space<vmem>>, vector<1x80x80xbf16>
    %20 = vector.shape_cast %19 : vector<1x80x80xbf16> to vector<80x80xbf16>
    %c3 = arith.constant 3 : index
    %c0_20 = arith.constant 0 : index
    %c0_21 = arith.constant 0 : index
    %21 = vector.load %arg2[%c3, %c0_20, %c0_21] : memref<9x80x64xbf16, #tpu.memory_space<vmem>>, vector<1x80x64xbf16>
    %22 = vector.shape_cast %21 : vector<1x80x64xbf16> to vector<80x64xbf16>
    %cst_22 = arith.constant dense<0.000000e+00> : vector<80x64xf32>
    %23 = tpu.matmul %20, %22, %cst_22 {dimension_numbers = #tpu.dot_dimension_numbers<[1], [0], [0], [1], [0, 0, 1, 1], [], []>} : vector<80x80xbf16>, vector<80x64xbf16>, vector<80x64xf32> -> vector<80x64xf32>
    %24 = arith.addf %18, %23 : vector<80x64xf32>
    %c0_23 = arith.constant 0 : index
    %c11 = arith.constant 11 : index
    %c0_24 = arith.constant 0 : index
    %25 = vector.load %arg1[%c0_23, %c11, %c0_24] : memref<1x102x80xbf16, #tpu.memory_space<vmem>>, vector<1x80x80xbf16>
    %26 = vector.shape_cast %25 : vector<1x80x80xbf16> to vector<80x80xbf16>
    %c4 = arith.constant 4 : index
    %c0_25 = arith.constant 0 : index
    %c0_26 = arith.constant 0 : index
    %27 = vector.load %arg2[%c4, %c0_25, %c0_26] : memref<9x80x64xbf16, #tpu.memory_space<vmem>>, vector<1x80x64xbf16>
    %28 = vector.shape_cast %27 : vector<1x80x64xbf16> to vector<80x64xbf16>
    %cst_27 = arith.constant dense<0.000000e+00> : vector<80x64xf32>
    %29 = tpu.matmul %26, %28, %cst_27 {dimension_numbers = #tpu.dot_dimension_numbers<[1], [0], [0], [1], [0, 0, 1, 1], [], []>} : vector<80x80xbf16>, vector<80x64xbf16>, vector<80x64xf32> -> vector<80x64xf32>
    %30 = arith.addf %24, %29 : vector<80x64xf32>
    %c0_28 = arith.constant 0 : index
    %c12 = arith.constant 12 : index
    %c0_29 = arith.constant 0 : index
    %31 = vector.load %arg1[%c0_28, %c12, %c0_29] : memref<1x102x80xbf16, #tpu.memory_space<vmem>>, vector<1x80x80xbf16>
    %32 = vector.shape_cast %31 : vector<1x80x80xbf16> to vector<80x80xbf16>
    %c5 = arith.constant 5 : index
    %c0_30 = arith.constant 0 : index
    %c0_31 = arith.constant 0 : index
    %33 = vector.load %arg2[%c5, %c0_30, %c0_31] : memref<9x80x64xbf16, #tpu.memory_space<vmem>>, vector<1x80x64xbf16>
    %34 = vector.shape_cast %33 : vector<1x80x64xbf16> to vector<80x64xbf16>
    %cst_32 = arith.constant dense<0.000000e+00> : vector<80x64xf32>
    %35 = tpu.matmul %32, %34, %cst_32 {dimension_numbers = #tpu.dot_dimension_numbers<[1], [0], [0], [1], [0, 0, 1, 1], [], []>} : vector<80x80xbf16>, vector<80x64xbf16>, vector<80x64xf32> -> vector<80x64xf32>
    %36 = arith.addf %30, %35 : vector<80x64xf32>
    %c0_33 = arith.constant 0 : index
    %c20 = arith.constant 20 : index
    %c0_34 = arith.constant 0 : index
    %37 = vector.load %arg1[%c0_33, %c20, %c0_34] : memref<1x102x80xbf16, #tpu.memory_space<vmem>>, vector<1x80x80xbf16>
    %38 = vector.shape_cast %37 : vector<1x80x80xbf16> to vector<80x80xbf16>
    %c6 = arith.constant 6 : index
    %c0_35 = arith.constant 0 : index
    %c0_36 = arith.constant 0 : index
    %39 = vector.load %arg2[%c6, %c0_35, %c0_36] : memref<9x80x64xbf16, #tpu.memory_space<vmem>>, vector<1x80x64xbf16>
    %40 = vector.shape_cast %39 : vector<1x80x64xbf16> to vector<80x64xbf16>
    %cst_37 = arith.constant dense<0.000000e+00> : vector<80x64xf32>
    %41 = tpu.matmul %38, %40, %cst_37 {dimension_numbers = #tpu.dot_dimension_numbers<[1], [0], [0], [1], [0, 0, 1, 1], [], []>} : vector<80x80xbf16>, vector<80x64xbf16>, vector<80x64xf32> -> vector<80x64xf32>
    %42 = arith.addf %36, %41 : vector<80x64xf32>
    %c0_38 = arith.constant 0 : index
    %c21 = arith.constant 21 : index
    %c0_39 = arith.constant 0 : index
    %43 = vector.load %arg1[%c0_38, %c21, %c0_39] : memref<1x102x80xbf16, #tpu.memory_space<vmem>>, vector<1x80x80xbf16>
    %44 = vector.shape_cast %43 : vector<1x80x80xbf16> to vector<80x80xbf16>
    %c7 = arith.constant 7 : index
    %c0_40 = arith.constant 0 : index
    %c0_41 = arith.constant 0 : index
    %45 = vector.load %arg2[%c7, %c0_40, %c0_41] : memref<9x80x64xbf16, #tpu.memory_space<vmem>>, vector<1x80x64xbf16>
    %46 = vector.shape_cast %45 : vector<1x80x64xbf16> to vector<80x64xbf16>
    %cst_42 = arith.constant dense<0.000000e+00> : vector<80x64xf32>
    %47 = tpu.matmul %44, %46, %cst_42 {dimension_numbers = #tpu.dot_dimension_numbers<[1], [0], [0], [1], [0, 0, 1, 1], [], []>} : vector<80x80xbf16>, vector<80x64xbf16>, vector<80x64xf32> -> vector<80x64xf32>
    %48 = arith.addf %42, %47 : vector<80x64xf32>
    %c0_43 = arith.constant 0 : index
    %c22 = arith.constant 22 : index
    %c0_44 = arith.constant 0 : index
    %49 = vector.load %arg1[%c0_43, %c22, %c0_44] : memref<1x102x80xbf16, #tpu.memory_space<vmem>>, vector<1x80x80xbf16>
    %50 = vector.shape_cast %49 : vector<1x80x80xbf16> to vector<80x80xbf16>
    %c8 = arith.constant 8 : index
    %c0_45 = arith.constant 0 : index
    %c0_46 = arith.constant 0 : index
    %51 = vector.load %arg2[%c8, %c0_45, %c0_46] : memref<9x80x64xbf16, #tpu.memory_space<vmem>>, vector<1x80x64xbf16>
    %52 = vector.shape_cast %51 : vector<1x80x64xbf16> to vector<80x64xbf16>
    %cst_47 = arith.constant dense<0.000000e+00> : vector<80x64xf32>
    %53 = tpu.matmul %50, %52, %cst_47 {dimension_numbers = #tpu.dot_dimension_numbers<[1], [0], [0], [1], [0, 0, 1, 1], [], []>} : vector<80x80xbf16>, vector<80x64xbf16>, vector<80x64xf32> -> vector<80x64xf32>
    %54 = arith.addf %48, %53 : vector<80x64xf32>
    %c0_48 = arith.constant 0 : index
    %c0_49 = arith.constant 0 : index
    %55 = vector.load %arg3[%c0_48, %c0_49] : memref<1x64xf32, #tpu.memory_space<vmem>>, vector<1x64xf32>
    %56 = vector.broadcast %55 : vector<1x64xf32> to vector<80x64xf32>
    %57 = arith.addf %54, %56 : vector<80x64xf32>
    %58 = arith.truncf %57 : vector<80x64xf32> to vector<80x64xbf16>
    %c0_50 = arith.constant 0 : index
    %c0_51 = arith.constant 0 : index
    %c0_52 = arith.constant 0 : index
    %59 = vector.load %arg5[%c0_50, %c0_51, %c0_52] : memref<1x80x64xbf16, #tpu.memory_space<vmem>>, vector<1x80x64xbf16>
    %60 = vector.shape_cast %59 : vector<1x80x64xbf16> to vector<80x64xbf16>
    %61 = vector.shape_cast %58 : vector<80x64xbf16> to vector<1x80x64xbf16>
    tpu.vector_store %arg5[%c0_50, %c0_51, %c0_52], %61 {strides = array<i32>} : memref<1x80x64xbf16, #tpu.memory_space<vmem>>, vector<1x80x64xbf16>,
    %c0_53 = arith.constant 0 : index
    %c0_54 = arith.constant 0 : index
    %62 = vector.load %arg4[%c0_53, %c0_54] : memref<1x80xf32, #tpu.memory_space<vmem>>, vector<1x80xf32>
    %cst_55 = arith.constant dense<0.000000e+00> : vector<1x64xf32>
    %63 = tpu.matmul %62, %57, %cst_55 {dimension_numbers = #tpu.dot_dimension_numbers<[1], [0], [0], [1], [0, 0, 1, 1], [], []>} : vector<1x80xf32>, vector<80x64xf32>, vector<1x64xf32> -> vector<1x64xf32>
    %c0_56 = arith.constant 0 : index
    %c0_57 = arith.constant 0 : index
    %c0_58 = arith.constant 0 : index
    %64 = vector.load %arg6[%c0_56, %c0_57, %c0_58] : memref<1x1x64xf32, #tpu.memory_space<vmem>>, vector<1x1x64xf32>
    %65 = vector.shape_cast %64 : vector<1x1x64xf32> to vector<1x64xf32>
    %66 = vector.shape_cast %63 : vector<1x64xf32> to vector<1x1x64xf32>
    tpu.vector_store %arg6[%c0_56, %c0_57, %c0_58], %66 {strides = array<i32>} : memref<1x1x64xf32, #tpu.memory_space<vmem>>, vector<1x1x64xf32>,
    %67 = arith.mulf %57, %57 : vector<80x64xf32>
    %cst_59 = arith.constant dense<0.000000e+00> : vector<1x64xf32>
    %68 = tpu.matmul %62, %67, %cst_59 {dimension_numbers = #tpu.dot_dimension_numbers<[1], [0], [0], [1], [0, 0, 1, 1], [], []>} : vector<1x80xf32>, vector<80x64xf32>, vector<1x64xf32> -> vector<1x64xf32>
    %c0_60 = arith.constant 0 : index
    %c0_61 = arith.constant 0 : index
    %c0_62 = arith.constant 0 : index
    %69 = vector.load %arg7[%c0_60, %c0_61, %c0_62] : memref<1x1x64xf32, #tpu.memory_space<vmem>>, vector<1x1x64xf32>
    %70 = vector.shape_cast %69 : vector<1x1x64xf32> to vector<1x64xf32>
    %71 = vector.shape_cast %68 : vector<1x64xf32> to vector<1x1x64xf32>
    tpu.vector_store %arg7[%c0_60, %c0_61, %c0_62], %71 {strides = array<i32>} : memref<1x1x64xf32, #tpu.memory_space<vmem>>, vector<1x1x64xf32>,
    return
  }
  func.func @transform_0(%arg0: i32) -> (i32, i32, i32) {
    %c0_i32 = arith.constant 0 : i32
    %c0_i32_0 = arith.constant 0 : i32
    %c0_i32_1 = arith.constant 0 : i32
    return %arg0, %c0_i32, %c0_i32_0 : i32, i32, i32
  }
  func.func @transform_1(%arg0: i32) -> (i32, i32, i32) {
    %c0_i32 = arith.constant 0 : i32
    %c0_i32_0 = arith.constant 0 : i32
    %c0_i32_1 = arith.constant 0 : i32
    %c0_i32_2 = arith.constant 0 : i32
    return %c0_i32, %c0_i32_0, %c0_i32_1 : i32, i32, i32
  }
  func.func @transform_2(%arg0: i32) -> (i32, i32) {
    %c0_i32 = arith.constant 0 : i32
    %c0_i32_0 = arith.constant 0 : i32
    %c0_i32_1 = arith.constant 0 : i32
    return %c0_i32, %c0_i32_0 : i32, i32
  }
  func.func @transform_3(%arg0: i32) -> (i32, i32) {
    %c0_i32 = arith.constant 0 : i32
    %c0_i32_0 = arith.constant 0 : i32
    %c0_i32_1 = arith.constant 0 : i32
    return %c0_i32, %c0_i32_0 : i32, i32
  }
  func.func @transform_4(%arg0: i32) -> (i32, i32, i32) {
    %c0_i32 = arith.constant 0 : i32
    %c0_i32_0 = arith.constant 0 : i32
    %c0_i32_1 = arith.constant 0 : i32
    return %arg0, %c0_i32, %c0_i32_0 : i32, i32, i32
  }
  func.func @transform_5(%arg0: i32) -> (i32, i32, i32) {
    %c0_i32 = arith.constant 0 : i32
    %c0_i32_0 = arith.constant 0 : i32
    %c0_i32_1 = arith.constant 0 : i32
    return %arg0, %c0_i32, %c0_i32_0 : i32, i32, i32
  }
  func.func @transform_6(%arg0: i32) -> (i32, i32, i32) {
    %c0_i32 = arith.constant 0 : i32
    %c0_i32_0 = arith.constant 0 : i32
    %c0_i32_1 = arith.constant 0 : i32
    return %arg0, %c0_i32, %c0_i32_0 : i32, i32, i32
  }
}

</mosaic_0001>

<llo_original>
// kernel: tile.33
$region0: #{tile.33}
  #allocation0 [shape = 's32[1]{0}', space=sflag, size = 0x4, scoped, tag = 'scoped memory for tile.33']
  %s0 = inlined_call_operand.vmem [shape: f32[8], index: 0, kind: input, shape index: {}]
  %s1 = inlined_call_operand.vmem [shape: f32[8,8], index: 1, kind: output, shape index: {}]
  // Predicated region
  $region2: #{tile.33} parent=0 // pred_check
    _
  $region3: #{tile.33} parent=0 // pred_check_branch
    %3 = sbr.rel (0) target = $region5
  $region4: #{tile.33} parent=0 // pred_region
    _
  $region5: #{tile.33} parent=0 // pred_fallthru
    _
  %v4 = vld [vmem:[%s0] ss:$0 sm:$0xff]
  %5 = vst [vmem:[%s1] sm:$0xff] %v4

// kernel: tile.34
$region0: #{tile.34}
  %s0 = inlined_call_operand.vmem [shape: f32[8,8], index: 0, kind: input, shape index: {}]
  %s1 = inlined_call_operand.vmem [shape: f32[1,64], index: 1, kind: output, shape index: {}]
  $region1: #{tile.34} parent=0
    #allocation0 [shape = 'u8[4096]{0}', space=vmem, size = 0x1000, scoped, tag = 'scoped mem for output reshape']
    %v2 = vld [vmem:[%s0] sm:$0x1]
    %vm3 = vcmask 64512
    %4 = vst.msk [vmem:[#allocation0] sm:$0x1] %vm3, %v2
    %s5 = scalar_lea.vmem %s0, 7
    %v6 = vld [vmem:[%s5] sm:$0x1]
    %7 = vrot.lane.b32.xlu0 %v6, 56
    %v8 = vpop.permute.xlu0 %7
    %vm9 = vcmask 523712
    %10 = vst.msk [vmem:[#allocation0] sm:$0x1] %vm9, %v8
    %s11 = scalar_lea.vmem %s0, 6
    %v12 = vld [vmem:[%s11] sm:$0x1]
    %13 = vrot.lane.b32.xlu0 %v12, 48
    %v14 = vpop.permute.xlu0 %13
    %vm15 = vcmask 458112
    %16 = vst.msk [vmem:[#allocation0] sm:$0x1] %vm15, %v14
    %s17 = scalar_lea.vmem %s0, 5
    %v18 = vld [vmem:[%s17] sm:$0x1]
    %19 = vrot.lane.b32.xlu0 %v18, 40
    %v20 = vpop.permute.xlu0 %19
    %vm21 = vcmask 392512
    %22 = vst.msk [vmem:[#allocation0] sm:$0x1] %vm21, %v20
    %s23 = scalar_lea.vmem %s0, 4
    %v24 = vld [vmem:[%s23] sm:$0x1]
    %25 = vrot.lane.b32.xlu0 %v24, 32
    %v26 = vpop.permute.xlu0 %25
    %vm27 = vcmask 326912
    %28 = vst.msk [vmem:[#allocation0] sm:$0x1] %vm27, %v26
    %s29 = scalar_lea.vmem %s0, 3
    %v30 = vld [vmem:[%s29] sm:$0x1]
    %31 = vrot.lane.b32.xlu0 %v30, 24
    %v32 = vpop.permute.xlu0 %31
    %vm33 = vcmask 261312
    %34 = vst.msk [vmem:[#allocation0] sm:$0x1] %vm33, %v32
    %s35 = scalar_lea.vmem %s0, 2
    %v36 = vld [vmem:[%s35] sm:$0x1]
    %37 = vrot.lane.b32.xlu0 %v36, 16
    %v38 = vpop.permute.xlu0 %37
    %vm39 = vcmask 195712
    %40 = vst.msk [vmem:[#allocation0] sm:$0x1] %vm39, %v38
    %s41 = scalar_lea.vmem %s0, 1
    %v42 = vld [vmem:[%s41] sm:$0x1]
    %43 = vrot.lane.b32.xlu0 %v42, 8
    %v44 = vpop.permute.xlu0 %43
    %vm45 = vcmask 130112
    %46 = vst.msk [vmem:[#allocation0] sm:$0x1] %vm45, %v44
    %s48 = ssub.s32 2, 1
    %v49 = vld [vmem:[#allocation0] sm:%s48]
    %s51 = ssub.s32 2, 1
    %52 = vst [vmem:[%s1] sm:%s51] %v49

// kernel: tile.38
$region0: #{tile.38}
  #allocation0 [shape = 's32[1]{0}', space=sflag, size = 0x4, scoped, tag = 'scoped memory for tile.38']
  %s0 = inlined_call_operand.vmem [shape: f32[8], index: 0, kind: input, shape index: {}]
  %s1 = inlined_call_operand.vmem [shape: f32[16,8], index: 1, kind: output, shape index: {}]
  // Predicated region
  $region2: #{tile.38} parent=0 // pred_check
    _
  $region3: #{tile.38} parent=0 // pred_check_branch
    %3 = sbr.rel (0) target = $region5
  $region4: #{tile.38} parent=0 // pred_region
    _
  $region5: #{tile.38} parent=0 // pred_fallthru
    _
  %v4 = vld [vmem:[%s0] ss:$0 sm:$0xff]
  %5 = vst [vmem:[%s1] sm:$0xff] %v4
  %s6 = scalar_lea.vmem %s1, 8
  %7 = vst [vmem:[%s6] sm:$0xff] %v4

// kernel: tile.39
$region0: #{tile.39}
  %s0 = inlined_call_operand.vmem [shape: f32[16,8], index: 0, kind: input, shape index: {}]
  %s1 = inlined_call_operand.vmem [shape: f32[1,128], index: 1, kind: output, shape index: {}]
  $region1: #{tile.39} parent=0
    #allocation0 [shape = 'u8[4096]{0}', space=vmem, size = 0x1000, scoped, tag = 'scoped mem for output reshape']
    %v2 = vld [vmem:[%s0] sm:$0x1]
    %vm3 = vcmask 64512
    %4 = vst.msk [vmem:[#allocation0] sm:$0x1] %vm3, %v2
    %s5 = scalar_lea.vmem %s0, 15
    %v6 = vld [vmem:[%s5] sm:$0x1]
    %7 = vrot.lane.b32.xlu0 %v6, 120
    %v8 = vpop.permute.xlu0 %7
    %vm9 = vcmask 1048512
    %10 = vst.msk [vmem:[#allocation0] sm:$0x1] %vm9, %v8
    %s11 = scalar_lea.vmem %s0, 14
    %v12 = vld [vmem:[%s11] sm:$0x1]
    %13 = vrot.lane.b32.xlu0 %v12, 112
    %v14 = vpop.permute.xlu0 %13
    %vm15 = vcmask 982912
    %16 = vst.msk [vmem:[#allocation0] sm:$0x1] %vm15, %v14
    %s17 = scalar_lea.vmem %s0, 13
    %v18 = vld [vmem:[%s17] sm:$0x1]
    %19 = vrot.lane.b32.xlu0 %v18, 104
    %v20 = vpop.permute.xlu0 %19
    %vm21 = vcmask 917312
    %22 = vst.msk [vmem:[#allocation0] sm:$0x1] %vm21, %v20
    %s23 = scalar_lea.vmem %s0, 12
    %v24 = vld [vmem:[%s23] sm:$0x1]
    %25 = vrot.lane.b32.xlu0 %v24, 96
    %v26 = vpop.permute.xlu0 %25
    %vm27 = vcmask 851712
    %28 = vst.msk [vmem:[#allocation0] sm:$0x1] %vm27, %v26
    %s29 = scalar_lea.vmem %s0, 11
    %v30 = vld [vmem:[%s29] sm:$0x1]
    %31 = vrot.lane.b32.xlu0 %v30, 88
    %v32 = vpop.permute.xlu0 %31
    %vm33 = vcmask 786112
    %34 = vst.msk [vmem:[#allocation0] sm:$0x1] %vm33, %v32
    %s35 = scalar_lea.vmem %s0, 10
    %v36 = vld [vmem:[%s35] sm:$0x1]
    %37 = vrot.lane.b32.xlu0 %v36, 80
    %v38 = vpop.permute.xlu0 %37
    %vm39 = vcmask 720512
    %40 = vst.msk [vmem:[#allocation0] sm:$0x1] %vm39, %v38
    %s41 = scalar_lea.vmem %s0, 9
    %v42 = vld [vmem:[%s41] sm:$0x1]
    %43 = vrot.lane.b32.xlu0 %v42, 72
    %v44 = vpop.permute.xlu0 %43
    %vm45 = vcmask 654912
    %46 = vst.msk [vmem:[#allocation0] sm:$0x1] %vm45, %v44
    %s47 = scalar_lea.vmem %s0, 8
    %v48 = vld [vmem:[%s47] sm:$0x1]
    %49 = vrot.lane.b32.xlu0 %v48, 64
    %v50 = vpop.permute.xlu0 %49
    %vm51 = vcmask 589312
    %52 = vst.msk [vmem:[#allocation0] sm:$0x1] %vm51, %v50
    %s53 = scalar_lea.vmem %s0, 7
    %v54 = vld [vmem:[%s53] sm:$0x1]
    %55 = vrot.lane.b32.xlu0 %v54, 56
    %v56 = vpop.permute.xlu0 %55
    %vm57 = vcmask 523712
    %58 = vst.msk [vmem:[#allocation0] sm:$0x1] %vm57, %v56
    %s59 = scalar_lea.vmem %s0, 6
    %v60 = vld [vmem:[%s59] sm:$0x1]
    %61 = vrot.lane.b32.xlu0 %v60, 48
    %v62 = vpop.permute.xlu0 %61
    %vm63 = vcmask 458112
    %64 = vst.msk [vmem:[#allocation0] sm:$0x1] %vm63, %v62
    %s65 = scalar_lea.vmem %s0, 5
    %v66 = vld [vmem:[%s65] sm:$0x1]
    %67 = vrot.lane.b32.xlu0 %v66, 40
    %v68 = vpop.permute.xlu0 %67
    %vm69 = vcmask 392512
    %70 = vst.msk [vmem:[#allocation0] sm:$0x1] %vm69, %v68
    %s71 = scalar_lea.vmem %s0, 4
    %v72 = vld [vmem:[%s71] sm:$0x1]
    %73 = vrot.lane.b32.xlu0 %v72, 32
    %v74 = vpop.permute.xlu0 %73
    %vm75 = vcmask 326912
    %76 = vst.msk [vmem:[#allocation0] sm:$0x1] %vm75, %v74
    %s77 = scalar_lea.vmem %s0, 3
    %v78 = vld [vmem:[%s77] sm:$0x1]
    %79 = vrot.lane.b32.xlu0 %v78, 24
    %v80 = vpop.permute.xlu0 %79
    %vm81 = vcmask 261312
    %82 = vst.msk [vmem:[#allocation0] sm:$0x1] %vm81, %v80
    %s83 = scalar_lea.vmem %s0, 2
    %v84 = vld [vmem:[%s83] sm:$0x1]
    %85 = vrot.lane.b32.xlu0 %v84, 16
    %v86 = vpop.permute.xlu0 %85
    %vm87 = vcmask 195712
    %88 = vst.msk [vmem:[#allocation0] sm:$0x1] %vm87, %v86
    %s89 = scalar_lea.vmem %s0, 1
    %v90 = vld [vmem:[%s89] sm:$0x1]
    %91 = vrot.lane.b32.xlu0 %v90, 8
    %v92 = vpop.permute.xlu0 %91
    %vm93 = vcmask 130112
    %94 = vst.msk [vmem:[#allocation0] sm:$0x1] %vm93, %v92
    %s96 = ssub.s32 2, 1
    %v97 = vld [vmem:[#allocation0] sm:%s96]
    %s99 = ssub.s32 2, 1
    %100 = vst [vmem:[%s1] sm:%s99] %v97

// kernel: conv_block_forward.5
$region0: #{conv_block_forward.5}
  #allocation0 [shape = 'u32[]', space=smem, size = 0x4, offset = 0x4, fixed_abs, tag = 'smem constant byte address 0x4 - core index']
  #allocation1 [shape = 'u32[72,128]{1,0:T(1,128)}', space=vmem, size = 0x9000, scoped, tag = 'internal scratch']
  %s0 = inlined_call_operand.vmem [shape: bf16[80,128], index: 0, kind: input, shape index: {}]
  %s1 = inlined_call_operand.vmem [shape: f32[1,128], index: 1, kind: input, shape index: {}]
  %s2 = inlined_call_operand.vmem [shape: f32[1,128], index: 2, kind: input, shape index: {}]
  %s3 = inlined_call_operand.vmem [shape: bf16[80,128], index: 3, kind: output, shape index: {}]
  %s4 = sld [smem:[#allocation0]]
  $region22: #{conv_block_forward.5} parent=0
    _
  %s6 = ssub.s32 1, %s4
  %s7 = scalar_select 0, %s6, %s4
  // Predicated region
  $region2: #{conv_block_forward.5} parent=0 // pred_check
    _
  $region3: #{conv_block_forward.5} parent=0 // pred_check_branch
    %9 = sbr.rel (0) target = $region5
  $region4: #{conv_block_forward.5} parent=0 // pred_region
    _
  $region5: #{conv_block_forward.5} parent=0 // pred_fallthru
    _
  // Predicated region
  $region6: #{conv_block_forward.5} parent=0 // pred_check
    _
  $region7: #{conv_block_forward.5} parent=0 // pred_check_branch
    %11 = sbr.rel (0) target = $region9
  $region8: #{conv_block_forward.5} parent=0 // pred_region
    _
  $region9: #{conv_block_forward.5} parent=0 // pred_fallthru
    _
  // Predicated region
  $region10: #{conv_block_forward.5} parent=0 // pred_check
    _
  $region11: #{conv_block_forward.5} parent=0 // pred_check_branch
    %13 = sbr.rel (0) target = $region13
  $region12: #{conv_block_forward.5} parent=0 // pred_region
    _
  $region13: #{conv_block_forward.5} parent=0 // pred_fallthru
    _
  %v14 = vld [vmem:[%s0] sm:$0xf]
  %v15 = vld [vmem:[%s0 + $0x4] sm:$0xf]
  %v16 = vld [vmem:[%s0 + $0x8] sm:$0xf]
  %v17 = vld [vmem:[%s0 + $0xc] sm:$0xf]
  %v18 = vld [vmem:[%s0 + $0x10] sm:$0xf]
  %v19 = vld [vmem:[%s0 + $0x14] sm:$0xf]
  %v20 = vld [vmem:[%s0 + $0x18] sm:$0xf]
  %v21 = vld [vmem:[%s0 + $0x1c] sm:$0xf]
  %v22 = vld [vmem:[%s0 + $0x20] sm:$0xf]
  %v23 = vld [vmem:[%s0 + $0x24] sm:$0xf]
  %v24 = vunpack.c.l.bf16 %v14
  %v25 = vunpack.c.l.bf16 %v15
  %v26 = vunpack.c.l.bf16 %v16
  %v27 = vunpack.c.l.bf16 %v17
  %v28 = vunpack.c.l.bf16 %v18
  %v29 = vunpack.c.l.bf16 %v19
  %v30 = vunpack.c.l.bf16 %v20
  %v31 = vunpack.c.l.bf16 %v21
  %v32 = vunpack.c.l.bf16 %v22
  %v33 = vunpack.c.l.bf16 %v23
  %v34 = vld [vmem:[%s1] sm:$0x1]
  %v36 = vperm.slane %v34, 0
  %v38 = vmul.f32 %v24, %v36
  %v39 = vmul.f32 %v25, %v36
  %v40 = vmul.f32 %v26, %v36
  %v41 = vmul.f32 %v27, %v36
  %v42 = vmul.f32 %v28, %v36
  %v43 = vmul.f32 %v29, %v36
  %v44 = vmul.f32 %v30, %v36
  %v45 = vmul.f32 %v31, %v36
  %v46 = vmul.f32 %v32, %v36
  %v47 = vmul.f32 %v33, %v36
  %v48 = vld [vmem:[%s2] sm:$0x1]
  %v50 = vperm.slane %v48, 0
  %v52 = vadd.f32 %v38, %v50
  %v53 = vadd.f32 %v39, %v50
  %v54 = vadd.f32 %v40, %v50
  %v55 = vadd.f32 %v41, %v50
  %v56 = vadd.f32 %v42, %v50
  %v57 = vadd.f32 %v43, %v50
  %v58 = vadd.f32 %v44, %v50
  %v59 = vadd.f32 %v45, %v50
  %v60 = vadd.f32 %v46, %v50
  %v61 = vadd.f32 %v47, %v50
  %v62 = vmax.f32 %v52, 0.0
  %v63 = vmax.f32 %v53, 0.0
  %v64 = vmax.f32 %v54, 0.0
  %v65 = vmax.f32 %v55, 0.0
  %v66 = vmax.f32 %v56, 0.0
  %v67 = vmax.f32 %v57, 0.0
  %v68 = vmax.f32 %v58, 0.0
  %v69 = vmax.f32 %v59, 0.0
  %v70 = vmax.f32 %v60, 0.0
  %v71 = vmax.f32 %v61, 0.0
  %v72 = vpack.c.bf16 %v62, %v62
  %v73 = vpack.c.bf16 %v63, %v63
  %v74 = vpack.c.bf16 %v64, %v64
  %v75 = vpack.c.bf16 %v65, %v65
  %v76 = vpack.c.bf16 %v66, %v66
  %v77 = vpack.c.bf16 %v67, %v67
  %v78 = vpack.c.bf16 %v68, %v68
  %v79 = vpack.c.bf16 %v69, %v69
  %v80 = vpack.c.bf16 %v70, %v70
  %v81 = vpack.c.bf16 %v71, %v71
  %82 = vst [vmem:[%s3] sm:$0xf] %v72
  %83 = vst [vmem:[%s3 + $0x4] sm:$0xf] %v73
  %84 = vst [vmem:[%s3 + $0x8] sm:$0xf] %v74
  %85 = vst [vmem:[%s3 + $0xc] sm:$0xf] %v75
  %86 = vst [vmem:[%s3 + $0x10] sm:$0xf] %v76
  %87 = vst [vmem:[%s3 + $0x14] sm:$0xf] %v77
  %88 = vst [vmem:[%s3 + $0x18] sm:$0xf] %v78
  %89 = vst [vmem:[%s3 + $0x1c] sm:$0xf] %v79
  %90 = vst [vmem:[%s3 + $0x20] sm:$0xf] %v80
  %91 = vst [vmem:[%s3 + $0x24] sm:$0xf] %v81
  // Predicated region
  $region14: #{conv_block_forward.5} parent=0 // pred_check
    _
  $region15: #{conv_block_forward.5} parent=0 // pred_check_branch
    %93 = sbr.rel (0) target = $region17
  $region16: #{conv_block_forward.5} parent=0 // pred_region
    _
  $region17: #{conv_block_forward.5} parent=0 // pred_fallthru
    _
  // Predicated region
  $region18: #{conv_block_forward.5} parent=0 // pred_check
    _
  $region19: #{conv_block_forward.5} parent=0 // pred_check_branch
    %95 = sbr.rel (0) target = $region21
  $region20: #{conv_block_forward.5} parent=0 // pred_region
    _
  $region21: #{conv_block_forward.5} parent=0 // pred_fallthru
    _

// kernel: conv_block_forward.4
$region0: #{conv_block_forward.4}
  #allocation0 [shape = 'u32[]', space=smem, size = 0x4, offset = 0x4, fixed_abs, tag = 'smem constant byte address 0x4 - core index']
  #allocation1 [shape = 'u32[72,128]{1,0:T(1,128)}', space=vmem, size = 0x9000, scoped, tag = 'internal scratch']
  %s0 = inlined_call_operand.vmem [shape: bf16[2,102,40], index: 0, kind: input, shape index: {}]
  %s1 = inlined_call_operand.vmem [shape: bf16[9,40,64], index: 1, kind: input, shape index: {}]
  %s2 = inlined_call_operand.vmem [shape: f32[1,64], index: 2, kind: input, shape index: {}]
  %s3 = inlined_call_operand.vmem [shape: f32[1,80], index: 3, kind: input, shape index: {}]
  %s4 = inlined_call_operand.vmem [shape: bf16[2,80,64], index: 4, kind: output, shape index: {0}]
  %s5 = inlined_call_operand.vmem [shape: f32[2,1,64], index: 5, kind: output, shape index: {1}]
  %s6 = inlined_call_operand.vmem [shape: f32[2,1,64], index: 6, kind: output, shape index: {2}]
  %7 = xla_tuple %s4, %s5, %s6
  %s8 = sld [smem:[#allocation0]]
  $region65: #{conv_block_forward.4} parent=0
    _
  %s10 = ssub.s32 1, %s8
  %s11 = scalar_select 0, %s10, %s8
  loop: start=0, step=1, limit=4
  $region2: #{conv_block_forward.4} parent=0 // loop_pre_header
    _
  $region3: #{conv_block_forward.4} parent=0 // loop_header
    %s13 = sphi 0, %s17
    %p14 = scmp.ge.s32.totalorder %s13, 4
    %s23 = sphi 0, %s25
    %s26 = sphi 0, %s23
    %s27 = sphi 0, %s26
    %s43 = sphi 0, %s27
    %s47 = sphi 0, %s47
    %s49 = sphi 0, %s47
    %s50 = sphi 0, %s49
    %s64 = sphi 0, %s50
    %s68 = sphi 0, %s68
    %s70 = sphi 0, %s68
    %s71 = sphi 0, %s70
    %s85 = sphi 0, %s71
    %s89 = sphi 0, %s89
    %s91 = sphi 0, %s89
    %s92 = sphi 0, %s91
    %s106 = sphi 0, %s92
    %s112 = sphi 0, %s114
    %s115 = sphi 0, %s112
    %s116 = sphi 0, %s115
    %s132 = sphi 0, %s116
    %s138 = sphi 0, %s140
    %s141 = sphi 0, %s138
    %s142 = sphi 0, %s141
    %s158 = sphi 0, %s142
    %s164 = sphi 0, %s166
    %s167 = sphi 0, %s164
    %s168 = sphi 0, %s167
    %s184 = sphi 0, %s168
  $region4: #{conv_block_forward.4} parent=0 // loop_header_branch
    %16 = sbr.rel (%p14) target = $region8
  $region5: #{conv_block_forward.4} parent=0 // loop_body
    %s18 = ssub.s32 %s13, 1
    %s19 = ssub.s32 %s13, 2
    %s20 = sadd.s32 %s13, 1
    %s21 = ssub.s32 %s13, %s20
    %p22 = scmp.eq.s32.totalorder %s21, 0
    %s24 = sadd.s32 %s23, 1
    %s25 = scalar_select %p22, %s23, %s24
    %p28 = pneg %p22
    %p29 = scmp.eq.s32.totalorder %s13, 1
    %p30 = por %p28, %p29
    %p31 = scmp.ne.s32.totalorder %s23, %s26
    %p32 = scmp.eq.s32.totalorder %s13, 0
    %p33 = por %p31, %p32
    %p34 = scmp.ne.s32.totalorder %s23, %s26
    %p35 = scmp.eq.s32.totalorder %s18, 1
    %p36 = por %p34, %p35
    %p37 = scmp.ne.s32.totalorder %s26, %s27
    %p38 = scmp.eq.s32.totalorder %s18, 0
    %p39 = por %p37, %p38
    %p40 = scmp.ne.s32.totalorder %s26, %s27
    %p41 = scmp.eq.s32.totalorder %s19, 1
    %p42 = por %p40, %p41
    %p44 = scmp.ne.s32.totalorder %s27, %s43
    %p45 = scmp.eq.s32.totalorder %s19, 0
    %p46 = por %p44, %p45
    %s48 = sadd.s32 %s47, 1
    %p51 = scmp.eq.s32.totalorder %s13, 1
    %p52 = scmp.ne.s32.totalorder %s47, %s49
    %p53 = scmp.eq.s32.totalorder %s13, 0
    %p54 = por %p52, %p53
    %p55 = scmp.ne.s32.totalorder %s47, %s49
    %p56 = scmp.eq.s32.totalorder %s18, 1
    %p57 = por %p55, %p56
    %p58 = scmp.ne.s32.totalorder %s49, %s50
    %p59 = scmp.eq.s32.totalorder %s18, 0
    %p60 = por %p58, %p59
    %p61 = scmp.ne.s32.totalorder %s49, %s50
    %p62 = scmp.eq.s32.totalorder %s19, 1
    %p63 = por %p61, %p62
    %p65 = scmp.ne.s32.totalorder %s50, %s64
    %p66 = scmp.eq.s32.totalorder %s19, 0
    %p67 = por %p65, %p66
    %s69 = sadd.s32 %s68, 1
    %p72 = scmp.eq.s32.totalorder %s13, 1
    %p73 = scmp.ne.s32.totalorder %s68, %s70
    %p74 = scmp.eq.s32.totalorder %s13, 0
    %p75 = por %p73, %p74
    %p76 = scmp.ne.s32.totalorder %s68, %s70
    %p77 = scmp.eq.s32.totalorder %s18, 1
    %p78 = por %p76, %p77
    %p79 = scmp.ne.s32.totalorder %s70, %s71
    %p80 = scmp.eq.s32.totalorder %s18, 0
    %p81 = por %p79, %p80
    %p82 = scmp.ne.s32.totalorder %s70, %s71
    %p83 = scmp.eq.s32.totalorder %s19, 1
    %p84 = por %p82, %p83
    %p86 = scmp.ne.s32.totalorder %s71, %s85
    %p87 = scmp.eq.s32.totalorder %s19, 0
    %p88 = por %p86, %p87
    %s90 = sadd.s32 %s89, 1
    %p93 = scmp.eq.s32.totalorder %s13, 1
    %p94 = scmp.ne.s32.totalorder %s89, %s91
    %p95 = scmp.eq.s32.totalorder %s13, 0
    %p96 = por %p94, %p95
    %p97 = scmp.ne.s32.totalorder %s89, %s91
    %p98 = scmp.eq.s32.totalorder %s18, 1
    %p99 = por %p97, %p98
    %p100 = scmp.ne.s32.totalorder %s91, %s92
    %p101 = scmp.eq.s32.totalorder %s18, 0
    %p102 = por %p100, %p101
    %p103 = scmp.ne.s32.totalorder %s91, %s92
    %p104 = scmp.eq.s32.totalorder %s19, 1
    %p105 = por %p103, %p104
    %p107 = scmp.ne.s32.totalorder %s92, %s106
    %p108 = scmp.eq.s32.totalorder %s19, 0
    %p109 = por %p107, %p108
    %s110 = ssub.s32 %s13, %s20
    %p111 = scmp.eq.s32.totalorder %s110, 0
    %s113 = sadd.s32 %s112, 1
    %s114 = scalar_select %p111, %s112, %s113
    %p117 = pneg %p111
    %p118 = scmp.eq.s32.totalorder %s13, 1
    %p119 = por %p117, %p118
    %p120 = scmp.ne.s32.totalorder %s112, %s115
    %p121 = scmp.eq.s32.totalorder %s13, 0
    %p122 = por %p120, %p121
    %p123 = scmp.ne.s32.totalorder %s112, %s115
    %p124 = scmp.eq.s32.totalorder %s18, 1
    %p125 = por %p123, %p124
    %p126 = scmp.ne.s32.totalorder %s115, %s116
    %p127 = scmp.eq.s32.totalorder %s18, 0
    %p128 = por %p126, %p127
    %p129 = scmp.ne.s32.totalorder %s115, %s116
    %p130 = scmp.eq.s32.totalorder %s19, 1
    %p131 = por %p129, %p130
    %p133 = scmp.ne.s32.totalorder %s116, %s132
    %p134 = scmp.eq.s32.totalorder %s19, 0
    %p135 = por %p133, %p134
    %s136 = ssub.s32 %s13, %s20
    %p137 = scmp.eq.s32.totalorder %s136, 0
    %s139 = sadd.s32 %s138, 1
    %s140 = scalar_select %p137, %s138, %s139
    %p143 = pneg %p137
    %p144 = scmp.eq.s32.totalorder %s13, 1
    %p145 = por %p143, %p144
    %p146 = scmp.ne.s32.totalorder %s138, %s141
    %p147 = scmp.eq.s32.totalorder %s13, 0
    %p148 = por %p146, %p147
    %p149 = scmp.ne.s32.totalorder %s138, %s141
    %p150 = scmp.eq.s32.totalorder %s18, 1
    %p151 = por %p149, %p150
    %p152 = scmp.ne.s32.totalorder %s141, %s142
    %p153 = scmp.eq.s32.totalorder %s18, 0
    %p154 = por %p152, %p153
    %p155 = scmp.ne.s32.totalorder %s141, %s142
    %p156 = scmp.eq.s32.totalorder %s19, 1
    %p157 = por %p155, %p156
    %p159 = scmp.ne.s32.totalorder %s142, %s158
    %p160 = scmp.eq.s32.totalorder %s19, 0
    %p161 = por %p159, %p160
    %s162 = ssub.s32 %s13, %s20
    %p163 = scmp.eq.s32.totalorder %s162, 0
    %s165 = sadd.s32 %s164, 1
    %s166 = scalar_select %p163, %s164, %s165
    %p169 = pneg %p163
    %p170 = scmp.eq.s32.totalorder %s13, 1
    %p171 = por %p169, %p170
    %p172 = scmp.ne.s32.totalorder %s164, %s167
    %p173 = scmp.eq.s32.totalorder %s13, 0
    %p174 = por %p172, %p173
    %p175 = scmp.ne.s32.totalorder %s164, %s167
    %p176 = scmp.eq.s32.totalorder %s18, 1
    %p177 = por %p175, %p176
    %p178 = scmp.ne.s32.totalorder %s167, %s168
    %p179 = scmp.eq.s32.totalorder %s18, 0
    %p180 = por %p178, %p179
    %p181 = scmp.ne.s32.totalorder %s167, %s168
    %p182 = scmp.eq.s32.totalorder %s19, 1
    %p183 = por %p181, %p182
    %p185 = scmp.ne.s32.totalorder %s168, %s184
    %p186 = scmp.eq.s32.totalorder %s19, 0
    %p187 = por %p185, %p186
    %p188 = scmp.le.s32.totalorder 1, %s13
    %p189 = scmp.lt.s32.totalorder %s13, 3
    %p190 = pnand %p188, %p189
    %p191 = pneg %p190
    // Predicated region
    $region9: #{conv_block_forward.4} parent=5 // pred_check
      _
    $region10: #{conv_block_forward.4} parent=5 // pred_check_branch
      %193 = sbr.rel (%p190) target = $region12
    $region11: #{conv_block_forward.4} parent=5 // pred_region
      %s194 = ssub.s32 %s13, 1
      // Predicated region
      $region13: #{conv_block_forward.4} parent=11 // pred_check
        %p195 = pneg %p60
      $region14: #{conv_block_forward.4} parent=11 // pred_check_branch
        %197 = sbr.rel (%p195) target = $region16
      $region15: #{conv_block_forward.4} parent=11 // pred_region
        _
      $region16: #{conv_block_forward.4} parent=11 // pred_fallthru
        _
      // Predicated region
      $region17: #{conv_block_forward.4} parent=11 // pred_check
        %p198 = pneg %p81
      $region18: #{conv_block_forward.4} parent=11 // pred_check_branch
        %200 = sbr.rel (%p198) target = $region20
      $region19: #{conv_block_forward.4} parent=11 // pred_region
        _
      $region20: #{conv_block_forward.4} parent=11 // pred_fallthru
        _
      // Predicated region
      $region21: #{conv_block_forward.4} parent=11 // pred_check
        %p201 = pneg %p102
      $region22: #{conv_block_forward.4} parent=11 // pred_check_branch
        %203 = sbr.rel (%p201) target = $region24
      $region23: #{conv_block_forward.4} parent=11 // pred_region
        _
      $region24: #{conv_block_forward.4} parent=11 // pred_fallthru
        _
    $region12: #{conv_block_forward.4} parent=5 // pred_fallthru
      _
    %p204 = scmp.lt.s32.totalorder %s13, 2
    // Predicated region
    $region25: #{conv_block_forward.4} parent=5 // pred_check
      %p205 = pneg %p204
    $region26: #{conv_block_forward.4} parent=5 // pred_check_branch
      %207 = sbr.rel (%p205) target = $region28
    $region27: #{conv_block_forward.4} parent=5 // pred_region
      // Predicated region
      $region29: #{conv_block_forward.4} parent=27 // pred_check
        %p208 = pneg %p33
      $region30: #{conv_block_forward.4} parent=27 // pred_check_branch
        %210 = sbr.rel (%p208) target = $region32
      $region31: #{conv_block_forward.4} parent=27 // pred_region
        %p211 = scmp.lt.s32.totalorder %s13, 1
        %s212 = scalar_select %p211, %s13, 1
        %s213 = smul.addr %s212, 13
        %s214 = smul.addr %s213, 4
        %s215 = scalar_lea.vmem %s0, %s214
      $region32: #{conv_block_forward.4} parent=27 // pred_fallthru
        _
    $region28: #{conv_block_forward.4} parent=5 // pred_fallthru
      _
    %p216 = scmp.le.s32.totalorder 1, %s13
    %p217 = scmp.lt.s32.totalorder %s13, 3
    %p218 = pnand %p216, %p217
    %p219 = pneg %p218
    // Predicated region
    $region33: #{conv_block_forward.4} parent=5 // pred_check
      _
    $region34: #{conv_block_forward.4} parent=5 // pred_check_branch
      %221 = sbr.rel (%p218) target = $region36
    $region35: #{conv_block_forward.4} parent=5 // pred_region
      %s222 = ssub.s32 %s13, 1
      %p223 = scmp.lt.s32.totalorder %s18, 1
      %s224 = scalar_select %p223, %s18, 1
      %s225 = smul.addr %s224, 13
      %s226 = smul.addr %s225, 4
      %s227 = scalar_lea.vmem %s0, %s226
      %p228 = pneg %p39
      %p229 = pneg %p36
      %p230 = pneg %p60
      %p231 = pneg %p57
      %p232 = pneg %p81
      %p233 = pneg %p78
      %p234 = pneg %p102
      %p235 = pneg %p99
      %p236 = pneg %p128
      %p237 = pneg %p125
      %p238 = scmp.lt.s32.totalorder %s18, 1
      %s239 = scalar_select %p238, %s18, 1
      %s240 = smul.addr %s239, 10
      %s241 = smul.addr %s240, 4
      %s242 = scalar_lea.vmem %s4, %s241
      %p243 = pneg %p154
      %p244 = pneg %p151
      %p245 = scmp.lt.s32.totalorder %s18, 1
      %s246 = scalar_select %p245, %s18, 1
      %s247 = scalar_lea.vmem %s5, %s246
      %p248 = pneg %p180
      %p249 = pneg %p177
      %p250 = scmp.lt.s32.totalorder %s18, 1
      %s251 = scalar_select %p250, %s18, 1
      %s252 = scalar_lea.vmem %s6, %s251
      %p253 = scmp.lt.s32.totalorder %s18, 1
      %s254 = scalar_select %p253, %s18, 1
      %s255 = smul.addr %s254, 13
      %s256 = smul.addr %s255, 4
      %s257 = scalar_lea.vmem %s0, %s256
      %p258 = scmp.lt.s32.totalorder %s18, 1
      %s259 = scalar_select %p258, %s18, 1
      %s260 = smul.addr %s259, 10
      %s261 = smul.addr %s260, 4
      %s262 = scalar_lea.vmem %s4, %s261
      %p263 = scmp.lt.s32.totalorder %s18, 1
      %s264 = scalar_select %p263, %s18, 1
      %s265 = scalar_lea.vmem %s5, %s264
      %p266 = scmp.lt.s32.totalorder %s18, 1
      %s267 = scalar_select %p266, %s18, 1
      %s268 = scalar_lea.vmem %s6, %s267
      %v270 = vld [vmem:[%s257] sm:$0xf]
      %v271 = vld [vmem:[%s257 + $0x4] sm:$0xf]
      %v272 = vld [vmem:[%s257 + $0x8] sm:$0xf]
      %v273 = vld [vmem:[%s257 + $0xc] sm:$0xf]
      %v274 = vld [vmem:[%s257 + $0x10] sm:$0xf]
      %v275 = vld [vmem:[%s257 + $0x14] sm:$0xf]
      %v276 = vld [vmem:[%s257 + $0x18] sm:$0xf]
      %v277 = vld [vmem:[%s257 + $0x1c] sm:$0xf]
      %v278 = vld [vmem:[%s257 + $0x20] sm:$0xf]
      %v279 = vld [vmem:[%s257 + $0x24] sm:$0xf]
      %v280 = vld [vmem:[%s1] sm:$0xf]
      %v281 = vld [vmem:[%s1 + $0x4] sm:$0xf]
      %v282 = vld [vmem:[%s1 + $0x8] sm:$0xf]
      %v283 = vld [vmem:[%s1 + $0xc] sm:$0xf]
      %v284 = vld [vmem:[%s1 + $0x10] sm:$0xf]
      %v285 = vld [vmem:[%s257 + $0x28] sm:$0x1]
      %s286 = scalar_lea.vmem %s1, 20
      %v287 = vld [vmem:[%s286] sm:$0xf]
      %v288 = vld [vmem:[%s286 + $0x4] sm:$0xf]
      %v289 = vld [vmem:[%s286 + $0x8] sm:$0xf]
      %v290 = vld [vmem:[%s286 + $0xc] sm:$0xf]
      %v291 = vld [vmem:[%s286 + $0x10] sm:$0xf]
      %v303 = vunpack.c.l.b16 %v270
      %v304 = vunpack.c.l.b16 %v271
      %v305 = vunpack.c.l.b16 %v272
      %v306 = vunpack.c.l.b16 %v273
      %v307 = vunpack.c.l.b16 %v274
      %v308 = vunpack.c.l.b16 %v275
      %v309 = vunpack.c.l.b16 %v276
      %v310 = vunpack.c.l.b16 %v277
      %v311 = vunpack.c.l.b16 %v278
      %v312 = vunpack.c.l.b16 %v279
      %v313 = vunpack.c.l.b16 %v285
      %v314 = vpack.c.b16 %v304, %v303
      %v315 = vpack.c.b16 %v306, %v305
      %v316 = vpack.c.b16 %v308, %v307
      %v317 = vpack.c.b16 %v310, %v309
      %v318 = vpack.c.b16 %v312, %v311
      %v319 = vpack.c.b16 %v313, %v313
      %vm320 = vsmask.f32 7424
      %v322 = vshrl.u32 %v314, 16
      %v324 = vshll.u32 %v314, 16
      %v326 = vrot.slane %v324, 1
      %v327 = vor.u32 %v322, %v326
      %v329 = vshll.u32 %v315, 16
      %v331 = vrot.slane %v329, 1
      %v332 = vsel %vm320, %v327, %v331
      %v333 = vshrl.u32 %v315, 16
      %v335 = vor.u32 %v333, %v331
      %v337 = vshll.u32 %v316, 16
      %v339 = vrot.slane %v337, 1
      %v340 = vsel %vm320, %v335, %v339
      %v341 = vshrl.u32 %v316, 16
      %v343 = vor.u32 %v341, %v339
      %v345 = vshll.u32 %v317, 16
      %v347 = vrot.slane %v345, 1
      %v348 = vsel %vm320, %v343, %v347
      %v349 = vshrl.u32 %v317, 16
      %v351 = vor.u32 %v349, %v347
      %v353 = vshll.u32 %v318, 16
      %v355 = vrot.slane %v353, 1
      %v356 = vsel %vm320, %v351, %v355
      %v357 = vshrl.u32 %v318, 16
      %v359 = vor.u32 %v357, %v355
      %v361 = vshll.u32 %v319, 16
      %v363 = vrot.slane %v361, 1
      %v364 = vsel %vm320, %v359, %v363
      %v370 = vunpack.c.l.b16 %v287
      %v371 = vunpack.c.l.b16 %v288
      %v372 = vunpack.c.l.b16 %v289
      %v373 = vunpack.c.l.b16 %v290
      %v374 = vunpack.c.l.b16 %v291
      %v375 = vpack.c.b16 %v371, %v370
      %v376 = vpack.c.b16 %v373, %v372
      %v377 = vpack.c.b16 %v374, %v374
      %vm380 = vcmask 326656
      %v382 = vsel %vm380, %v332, 0
      %v385 = vsel %vm380, %v340, 0
      %v388 = vsel %vm380, %v348, 0
      %v391 = vsel %vm380, %v356, 0
      %v394 = vsel %vm380, %v364, 0
      %vm396 = vcmask 1043456
      %v398 = vsel %vm396, %v377, 0
      %400 = vmatpush.bf16.msra.mxu0 0
      %401 = vmatpush.bf16.msra.mxu0 0
      %402 = vmatpush.bf16.msra.mxu0 0
      %403 = vmatpush.bf16.msra.mxu0 0
      %404 = vmatpush.bf16.msra.mxu0 0
      %405 = vmatpush.bf16.msra.mxu0 %v398
      %406 = vmatpush.bf16.msra.mxu0 %v376
      %407 = vmatpush.bf16.msra.mxu0 %v375
      %408 = vmatmul.bf16.gmra.mxu0 %v382
      %v409 = vpop.f32.mrf.mxu0
      %v410 = vadd.f32 0.0, %v409
      %v411 = vpop.f32.mrf.mxu0
      %v412 = vadd.f32 0.0, %v411
      %413 = vmatmul.bf16.gmra.mxu0 %v385
      %v414 = vpop.f32.mrf.mxu0
      %v415 = vadd.f32 0.0, %v414
      %v416 = vpop.f32.mrf.mxu0
      %v417 = vadd.f32 0.0, %v416
      %418 = vmatmul.bf16.gmra.mxu0 %v388
      %v419 = vpop.f32.mrf.mxu0
      %v420 = vadd.f32 0.0, %v419
      %v421 = vpop.f32.mrf.mxu0
      %v422 = vadd.f32 0.0, %v421
      %423 = vmatmul.bf16.gmra.mxu0 %v391
      %v424 = vpop.f32.mrf.mxu0
      %v425 = vadd.f32 0.0, %v424
      %v426 = vpop.f32.mrf.mxu0
      %v427 = vadd.f32 0.0, %v426
      %428 = vmatmul.bf16.gmra.mxu0 %v394
      %v429 = vpop.f32.mrf.mxu0
      %v430 = vadd.f32 0.0, %v429
      %v431 = vpop.f32.mrf.mxu0
      %v432 = vadd.f32 0.0, %v431
      %433 = vdwg.mxu0
      %v439 = vunpack.c.l.b16 %v280
      %v440 = vunpack.c.l.b16 %v281
      %v441 = vunpack.c.l.b16 %v282
      %v442 = vunpack.c.l.b16 %v283
      %v443 = vunpack.c.l.b16 %v284
      %v444 = vpack.c.b16 %v440, %v439
      %v445 = vpack.c.b16 %v442, %v441
      %v446 = vpack.c.b16 %v443, %v443
      %v449 = vsel %vm380, %v314, 0
      %v451 = vsel %vm380, %v315, 0
      %v453 = vsel %vm380, %v316, 0
      %v455 = vsel %vm380, %v317, 0
      %v457 = vsel %vm380, %v318, 0
      %v460 = vsel %vm396, %v446, 0
      %462 = vmatpush.bf16.msra.mxu0 0
      %463 = vmatpush.bf16.msra.mxu0 0
      %464 = vmatpush.bf16.msra.mxu0 0
      %465 = vmatpush.bf16.msra.mxu0 0
      %466 = vmatpush.bf16.msra.mxu0 0
      %467 = vmatpush.bf16.msra.mxu0 %v460
      %468 = vmatpush.bf16.msra.mxu0 %v445
      %469 = vmatpush.bf16.msra.mxu0 %v444
      %470 = vmatmul.bf16.gmra.mxu0 %v449
      %v471 = vpop.f32.mrf.mxu0
      %v472 = vadd.f32 %v410, %v471
      %v473 = vpop.f32.mrf.mxu0
      %v474 = vadd.f32 %v412, %v473
      %475 = vmatmul.bf16.gmra.mxu0 %v451
      %v476 = vpop.f32.mrf.mxu0
      %v477 = vadd.f32 %v415, %v476
      %v478 = vpop.f32.mrf.mxu0
      %v479 = vadd.f32 %v417, %v478
      %480 = vmatmul.bf16.gmra.mxu0 %v453
      %v481 = vpop.f32.mrf.mxu0
      %v482 = vadd.f32 %v420, %v481
      %v483 = vpop.f32.mrf.mxu0
      %v484 = vadd.f32 %v422, %v483
      %485 = vmatmul.bf16.gmra.mxu0 %v455
      %v486 = vpop.f32.mrf.mxu0
      %v487 = vadd.f32 %v425, %v486
      %v488 = vpop.f32.mrf.mxu0
      %v489 = vadd.f32 %v427, %v488
      %490 = vmatmul.bf16.gmra.mxu0 %v457
      %v491 = vpop.f32.mrf.mxu0
      %v492 = vadd.f32 %v430, %v491
      %v493 = vpop.f32.mrf.mxu0
      %v494 = vadd.f32 %v432, %v493
      %495 = vdwg.mxu0
      %v496 = vld [vmem:[%s257] sm:$0xe]
      %s497 = scalar_lea.vmem %s1, 40
      %v498 = vld [vmem:[%s497] sm:$0xf]
      %v499 = vld [vmem:[%s497 + $0x4] sm:$0xf]
      %v500 = vld [vmem:[%s497 + $0x8] sm:$0xf]
      %v501 = vld [vmem:[%s497 + $0xc] sm:$0xf]
      %v502 = vld [vmem:[%s497 + $0x10] sm:$0xf]
      %v504 = vunpack.c.l.b16 %v496
      %v505 = vpack.c.b16 %v304, %v504
      %vm506 = vcmask 1046528
      %v507 = vrot.slane %v505, 1
      %v508 = vrot.slane %v315, 1
      %v509 = vsel %vm506, %v507, %v508
      %v510 = vrot.slane %v316, 1
      %v511 = vsel %vm506, %v508, %v510
      %v512 = vrot.slane %v317, 1
      %v513 = vsel %vm506, %v510, %v512
      %v514 = vrot.slane %v318, 1
      %v515 = vsel %vm506, %v512, %v514
      %v516 = vrot.slane %v319, 1
      %v517 = vsel %vm506, %v514, %v516
      %v523 = vunpack.c.l.b16 %v498
      %v524 = vunpack.c.l.b16 %v499
      %v525 = vunpack.c.l.b16 %v500
      %v526 = vunpack.c.l.b16 %v501
      %v527 = vunpack.c.l.b16 %v502
      %v528 = vpack.c.b16 %v524, %v523
      %v529 = vpack.c.b16 %v526, %v525
      %v530 = vpack.c.b16 %v527, %v527
      %v534 = vsel %vm380, %v509, 0
      %v537 = vsel %vm380, %v511, 0
      %v540 = vsel %vm380, %v513, 0
      %v543 = vsel %vm380, %v515, 0
      %v546 = vsel %vm380, %v517, 0
      %v549 = vsel %vm396, %v530, 0
      %551 = vmatpush.bf16.msra.mxu0 0
      %552 = vmatpush.bf16.msra.mxu0 0
      %553 = vmatpush.bf16.msra.mxu0 0
      %554 = vmatpush.bf16.msra.mxu0 0
      %555 = vmatpush.bf16.msra.mxu0 0
      %556 = vmatpush.bf16.msra.mxu0 %v549
      %557 = vmatpush.bf16.msra.mxu0 %v529
      %558 = vmatpush.bf16.msra.mxu0 %v528
      %559 = vmatmul.bf16.gmra.mxu0 %v534
      %v560 = vpop.f32.mrf.mxu0
      %v561 = vadd.f32 0.0, %v560
      %v562 = vpop.f32.mrf.mxu0
      %v563 = vadd.f32 0.0, %v562
      %564 = vmatmul.bf16.gmra.mxu0 %v537
      %v565 = vpop.f32.mrf.mxu0
      %v566 = vadd.f32 0.0, %v565
      %v567 = vpop.f32.mrf.mxu0
      %v568 = vadd.f32 0.0, %v567
      %569 = vmatmul.bf16.gmra.mxu0 %v540
      %v570 = vpop.f32.mrf.mxu0
      %v571 = vadd.f32 0.0, %v570
      %v572 = vpop.f32.mrf.mxu0
      %v573 = vadd.f32 0.0, %v572
      %574 = vmatmul.bf16.gmra.mxu0 %v543
      %v575 = vpop.f32.mrf.mxu0
      %v576 = vadd.f32 0.0, %v575
      %v577 = vpop.f32.mrf.mxu0
      %v578 = vadd.f32 0.0, %v577
      %579 = vmatmul.bf16.gmra.mxu0 %v546
      %v580 = vpop.f32.mrf.mxu0
      %v581 = vadd.f32 0.0, %v580
      %v582 = vpop.f32.mrf.mxu0
      %v583 = vadd.f32 0.0, %v582
      %584 = vdwg.mxu0
      %v585 = vadd.f32 %v472, %v561
      %v586 = vadd.f32 %v474, %v563
      %v587 = vadd.f32 %v477, %v566
      %v588 = vadd.f32 %v479, %v568
      %v589 = vadd.f32 %v482, %v571
      %v590 = vadd.f32 %v484, %v573
      %v591 = vadd.f32 %v487, %v576
      %v592 = vadd.f32 %v489, %v578
      %v593 = vadd.f32 %v492, %v581
      %v594 = vadd.f32 %v494, %v583
      %v595 = vld [vmem:[%s257 + $0x4] sm:$0xe]
      %v596 = vld [vmem:[%s257 + $0x8] sm:$0xf]
      %v597 = vld [vmem:[%s257 + $0xc] sm:$0xf]
      %v598 = vld [vmem:[%s257 + $0x10] sm:$0xf]
      %v599 = vld [vmem:[%s257 + $0x14] sm:$0xf]
      %v600 = vld [vmem:[%s257 + $0x18] sm:$0xf]
      %v601 = vld [vmem:[%s257 + $0x1c] sm:$0xf]
      %v602 = vld [vmem:[%s257 + $0x20] sm:$0xf]
      %v603 = vld [vmem:[%s257 + $0x24] sm:$0xf]
      %v604 = vld [vmem:[%s257 + $0x28] sm:$0xf]
      %v605 = vld [vmem:[%s257 + $0x2c] sm:$0x1]
      %s606 = scalar_lea.vmem %s1, 60
      %v607 = vld [vmem:[%s606] sm:$0xf]
      %v608 = vld [vmem:[%s606 + $0x4] sm:$0xf]
      %v609 = vld [vmem:[%s606 + $0x8] sm:$0xf]
      %v610 = vld [vmem:[%s606 + $0xc] sm:$0xf]
      %v611 = vld [vmem:[%s606 + $0x10] sm:$0xf]
      %v623 = vunpack.c.l.b16 %v595
      %v624 = vunpack.c.l.b16 %v596
      %v625 = vunpack.c.l.b16 %v597
      %v626 = vunpack.c.l.b16 %v598
      %v627 = vunpack.c.l.b16 %v599
      %v628 = vunpack.c.l.b16 %v600
      %v629 = vunpack.c.l.b16 %v601
      %v630 = vunpack.c.l.b16 %v602
      %v631 = vunpack.c.l.b16 %v603
      %v632 = vunpack.c.l.b16 %v604
      %v633 = vunpack.c.l.b16 %v605
      %v634 = vpack.c.b16 %v624, %v623
      %v635 = vpack.c.b16 %v626, %v625
      %v636 = vpack.c.b16 %v628, %v627
      %v637 = vpack.c.b16 %v630, %v629
      %v638 = vpack.c.b16 %v632, %v631
      %v639 = vpack.c.b16 %v633, %v633
      %v640 = vrot.slane %v634, 1
      %v641 = vrot.slane %v635, 1
      %v642 = vsel %vm506, %v640, %v641
      %v643 = vrot.slane %v636, 1
      %v644 = vsel %vm506, %v641, %v643
      %v645 = vrot.slane %v637, 1
      %v646 = vsel %vm506, %v643, %v645
      %v647 = vrot.slane %v638, 1
      %v648 = vsel %vm506, %v645, %v647
      %v649 = vrot.slane %v639, 1
      %v650 = vsel %vm506, %v647, %v649
      %v656 = vunpack.c.l.b16 %v607
      %v657 = vunpack.c.l.b16 %v608
      %v658 = vunpack.c.l.b16 %v609
      %v659 = vunpack.c.l.b16 %v610
      %v660 = vunpack.c.l.b16 %v611
      %v661 = vpack.c.b16 %v657, %v656
      %v662 = vpack.c.b16 %v659, %v658
      %v663 = vpack.c.b16 %v660, %v660
      %v667 = vsel %vm380, %v642, 0
      %v670 = vsel %vm380, %v644, 0
      %v673 = vsel %vm380, %v646, 0
      %v676 = vsel %vm380, %v648, 0
      %v679 = vsel %vm380, %v650, 0
      %v682 = vsel %vm396, %v663, 0
      %684 = vmatpush.bf16.msra.mxu0 0
      %685 = vmatpush.bf16.msra.mxu0 0
      %686 = vmatpush.bf16.msra.mxu0 0
      %687 = vmatpush.bf16.msra.mxu0 0
      %688 = vmatpush.bf16.msra.mxu0 0
      %689 = vmatpush.bf16.msra.mxu0 %v682
      %690 = vmatpush.bf16.msra.mxu0 %v662
      %691 = vmatpush.bf16.msra.mxu0 %v661
      %692 = vmatmul.bf16.gmra.mxu0 %v667
      %v693 = vpop.f32.mrf.mxu0
      %v694 = vadd.f32 0.0, %v693
      %v695 = vpop.f32.mrf.mxu0
      %v696 = vadd.f32 0.0, %v695
      %697 = vmatmul.bf16.gmra.mxu0 %v670
      %v698 = vpop.f32.mrf.mxu0
      %v699 = vadd.f32 0.0, %v698
      %v700 = vpop.f32.mrf.mxu0
      %v701 = vadd.f32 0.0, %v700
      %702 = vmatmul.bf16.gmra.mxu0 %v673
      %v703 = vpop.f32.mrf.mxu0
      %v704 = vadd.f32 0.0, %v703
      %v705 = vpop.f32.mrf.mxu0
      %v706 = vadd.f32 0.0, %v705
      %707 = vmatmul.bf16.gmra.mxu0 %v676
      %v708 = vpop.f32.mrf.mxu0
      %v709 = vadd.f32 0.0, %v708
      %v710 = vpop.f32.mrf.mxu0
      %v711 = vadd.f32 0.0, %v710
      %712 = vmatmul.bf16.gmra.mxu0 %v679
      %v713 = vpop.f32.mrf.mxu0
      %v714 = vadd.f32 0.0, %v713
      %v715 = vpop.f32.mrf.mxu0
      %v716 = vadd.f32 0.0, %v715
      %717 = vdwg.mxu0
      %v718 = vadd.f32 %v585, %v694
      %v719 = vadd.f32 %v586, %v696
      %v720 = vadd.f32 %v587, %v699
      %v721 = vadd.f32 %v588, %v701
      %v722 = vadd.f32 %v589, %v704
      %v723 = vadd.f32 %v590, %v706
      %v724 = vadd.f32 %v591, %v709
      %v725 = vadd.f32 %v592, %v711
      %v726 = vadd.f32 %v593, %v714
      %v727 = vadd.f32 %v594, %v716
      %v728 = vld [vmem:[%s257 + $0x2c] sm:$0x3]
      %s729 = scalar_lea.vmem %s1, 80
      %v730 = vld [vmem:[%s729] sm:$0xf]
      %v731 = vld [vmem:[%s729 + $0x4] sm:$0xf]
      %v732 = vld [vmem:[%s729 + $0x8] sm:$0xf]
      %v733 = vld [vmem:[%s729 + $0xc] sm:$0xf]
      %v734 = vld [vmem:[%s729 + $0x10] sm:$0xf]
      %v736 = vunpack.c.l.b16 %v728
      %v737 = vpack.c.b16 %v736, %v736
      %vm738 = vsmask.f32 6400
      %v740 = vshrl.u32 %v634, 16
      %v742 = vrot.slane %v740, 1
      %v743 = vshll.u32 %v634, 16
      %v745 = vrot.slane %v743, 2
      %v746 = vor.u32 %v742, %v745
      %v748 = vshrl.u32 %v635, 16
      %v750 = vrot.slane %v748, 1
      %v751 = vshll.u32 %v635, 16
      %v753 = vrot.slane %v751, 2
      %v754 = vor.u32 %v750, %v753
      %v755 = vsel %vm738, %v746, %v754
      %v757 = vshrl.u32 %v636, 16
      %v759 = vrot.slane %v757, 1
      %v760 = vshll.u32 %v636, 16
      %v762 = vrot.slane %v760, 2
      %v763 = vor.u32 %v759, %v762
      %v764 = vsel %vm738, %v754, %v763
      %v766 = vshrl.u32 %v637, 16
      %v768 = vrot.slane %v766, 1
      %v769 = vshll.u32 %v637, 16
      %v771 = vrot.slane %v769, 2
      %v772 = vor.u32 %v768, %v771
      %v773 = vsel %vm738, %v763, %v772
      %v775 = vshrl.u32 %v638, 16
      %v777 = vrot.slane %v775, 1
      %v778 = vshll.u32 %v638, 16
      %v780 = vrot.slane %v778, 2
      %v781 = vor.u32 %v777, %v780
      %v782 = vsel %vm738, %v772, %v781
      %v784 = vshrl.u32 %v737, 16
      %v786 = vrot.slane %v784, 1
      %v787 = vshll.u32 %v737, 16
      %v789 = vrot.slane %v787, 2
      %v790 = vor.u32 %v786, %v789
      %v791 = vsel %vm738, %v781, %v790
      %v797 = vunpack.c.l.b16 %v730
      %v798 = vunpack.c.l.b16 %v731
      %v799 = vunpack.c.l.b16 %v732
      %v800 = vunpack.c.l.b16 %v733
      %v801 = vunpack.c.l.b16 %v734
      %v802 = vpack.c.b16 %v798, %v797
      %v803 = vpack.c.b16 %v800, %v799
      %v804 = vpack.c.b16 %v801, %v801
      %v808 = vsel %vm380, %v755, 0
      %v811 = vsel %vm380, %v764, 0
      %v814 = vsel %vm380, %v773, 0
      %v817 = vsel %vm380, %v782, 0
      %v820 = vsel %vm380, %v791, 0
      %v823 = vsel %vm396, %v804, 0
      %825 = vmatpush.bf16.msra.mxu0 0
      %826 = vmatpush.bf16.msra.mxu0 0
      %827 = vmatpush.bf16.msra.mxu0 0
      %828 = vmatpush.bf16.msra.mxu0 0
      %829 = vmatpush.bf16.msra.mxu0 0
      %830 = vmatpush.bf16.msra.mxu0 %v823
      %831 = vmatpush.bf16.msra.mxu0 %v803
      %832 = vmatpush.bf16.msra.mxu0 %v802
      %833 = vmatmul.bf16.gmra.mxu0 %v808
      %v834 = vpop.f32.mrf.mxu0
      %v835 = vadd.f32 0.0, %v834
      %v836 = vpop.f32.mrf.mxu0
      %v837 = vadd.f32 0.0, %v836
      %838 = vmatmul.bf16.gmra.mxu0 %v811
      %v839 = vpop.f32.mrf.mxu0
      %v840 = vadd.f32 0.0, %v839
      %v841 = vpop.f32.mrf.mxu0
      %v842 = vadd.f32 0.0, %v841
      %843 = vmatmul.bf16.gmra.mxu0 %v814
      %v844 = vpop.f32.mrf.mxu0
      %v845 = vadd.f32 0.0, %v844
      %v846 = vpop.f32.mrf.mxu0
      %v847 = vadd.f32 0.0, %v846
      %848 = vmatmul.bf16.gmra.mxu0 %v817
      %v849 = vpop.f32.mrf.mxu0
      %v850 = vadd.f32 0.0, %v849
      %v851 = vpop.f32.mrf.mxu0
      %v852 = vadd.f32 0.0, %v851
      %853 = vmatmul.bf16.gmra.mxu0 %v820
      %v854 = vpop.f32.mrf.mxu0
      %v855 = vadd.f32 0.0, %v854
      %v856 = vpop.f32.mrf.mxu0
      %v857 = vadd.f32 0.0, %v856
      %858 = vdwg.mxu0
      %v859 = vadd.f32 %v718, %v835
      %v860 = vadd.f32 %v719, %v837
      %v861 = vadd.f32 %v720, %v840
      %v862 = vadd.f32 %v721, %v842
      %v863 = vadd.f32 %v722, %v845
      %v864 = vadd.f32 %v723, %v847
      %v865 = vadd.f32 %v724, %v850
      %v866 = vadd.f32 %v725, %v852
      %v867 = vadd.f32 %v726, %v855
      %v868 = vadd.f32 %v727, %v857
      %v869 = vld [vmem:[%s257 + $0x4] sm:$0xc]
      %s870 = scalar_lea.vmem %s1, 100
      %v871 = vld [vmem:[%s870] sm:$0xf]
      %v872 = vld [vmem:[%s870 + $0x4] sm:$0xf]
      %v873 = vld [vmem:[%s870 + $0x8] sm:$0xf]
      %v874 = vld [vmem:[%s870 + $0xc] sm:$0xf]
      %v875 = vld [vmem:[%s870 + $0x10] sm:$0xf]
      %v877 = vunpack.c.l.b16 %v869
      %v878 = vpack.c.b16 %v624, %v877
      %vm879 = vcmask 1045504
      %v880 = vrot.slane %v878, 2
      %v881 = vrot.slane %v635, 2
      %v882 = vsel %vm879, %v880, %v881
      %v883 = vrot.slane %v636, 2
      %v884 = vsel %vm879, %v881, %v883
      %v885 = vrot.slane %v637, 2
      %v886 = vsel %vm879, %v883, %v885
      %v887 = vrot.slane %v638, 2
      %v888 = vsel %vm879, %v885, %v887
      %v889 = vrot.slane %v737, 2
      %v890 = vsel %vm879, %v887, %v889
      %v896 = vunpack.c.l.b16 %v871
      %v897 = vunpack.c.l.b16 %v872
      %v898 = vunpack.c.l.b16 %v873
      %v899 = vunpack.c.l.b16 %v874
      %v900 = vunpack.c.l.b16 %v875
      %v901 = vpack.c.b16 %v897, %v896
      %v902 = vpack.c.b16 %v899, %v898
      %v903 = vpack.c.b16 %v900, %v900
      %v907 = vsel %vm380, %v882, 0
      %v910 = vsel %vm380, %v884, 0
      %v913 = vsel %vm380, %v886, 0
      %v916 = vsel %vm380, %v888, 0
      %v919 = vsel %vm380, %v890, 0
      %v922 = vsel %vm396, %v903, 0
      %924 = vmatpush.bf16.msra.mxu0 0
      %925 = vmatpush.bf16.msra.mxu0 0
      %926 = vmatpush.bf16.msra.mxu0 0
      %927 = vmatpush.bf16.msra.mxu0 0
      %928 = vmatpush.bf16.msra.mxu0 0
      %929 = vmatpush.bf16.msra.mxu0 %v922
      %930 = vmatpush.bf16.msra.mxu0 %v902
      %931 = vmatpush.bf16.msra.mxu0 %v901
      %932 = vmatmul.bf16.gmra.mxu0 %v907
      %v933 = vpop.f32.mrf.mxu0
      %v934 = vadd.f32 0.0, %v933
      %v935 = vpop.f32.mrf.mxu0
      %v936 = vadd.f32 0.0, %v935
      %937 = vmatmul.bf16.gmra.mxu0 %v910
      %v938 = vpop.f32.mrf.mxu0
      %v939 = vadd.f32 0.0, %v938
      %v940 = vpop.f32.mrf.mxu0
      %v941 = vadd.f32 0.0, %v940
      %942 = vmatmul.bf16.gmra.mxu0 %v913
      %v943 = vpop.f32.mrf.mxu0
      %v944 = vadd.f32 0.0, %v943
      %v945 = vpop.f32.mrf.mxu0
      %v946 = vadd.f32 0.0, %v945
      %947 = vmatmul.bf16.gmra.mxu0 %v916
      %v948 = vpop.f32.mrf.mxu0
      %v949 = vadd.f32 0.0, %v948
      %v950 = vpop.f32.mrf.mxu0
      %v951 = vadd.f32 0.0, %v950
      %952 = vmatmul.bf16.gmra.mxu0 %v919
      %v953 = vpop.f32.mrf.mxu0
      %v954 = vadd.f32 0.0, %v953
      %v955 = vpop.f32.mrf.mxu0
      %v956 = vadd.f32 0.0, %v955
      %957 = vdwg.mxu0
      %v958 = vadd.f32 %v859, %v934
      %v959 = vadd.f32 %v860, %v936
      %v960 = vadd.f32 %v861, %v939
      %v961 = vadd.f32 %v862, %v941
      %v962 = vadd.f32 %v863, %v944
      %v963 = vadd.f32 %v864, %v946
      %v964 = vadd.f32 %v865, %v949
      %v965 = vadd.f32 %v866, %v951
      %v966 = vadd.f32 %v867, %v954
      %v967 = vadd.f32 %v868, %v956
      %v968 = vld [vmem:[%s257 + $0x8] sm:$0xc]
      %v969 = vld [vmem:[%s257 + $0xc] sm:$0xf]
      %v970 = vld [vmem:[%s257 + $0x10] sm:$0xf]
      %v971 = vld [vmem:[%s257 + $0x14] sm:$0xf]
      %v972 = vld [vmem:[%s257 + $0x18] sm:$0xf]
      %v973 = vld [vmem:[%s257 + $0x1c] sm:$0xf]
      %v974 = vld [vmem:[%s257 + $0x20] sm:$0xf]
      %v975 = vld [vmem:[%s257 + $0x24] sm:$0xf]
      %v976 = vld [vmem:[%s257 + $0x28] sm:$0xf]
      %v977 = vld [vmem:[%s257 + $0x2c] sm:$0xf]
      %v978 = vld [vmem:[%s257 + $0x30] sm:$0x3]
      %s979 = scalar_lea.vmem %s1, 120
      %v980 = vld [vmem:[%s979] sm:$0xf]
      %v981 = vld [vmem:[%s979 + $0x4] sm:$0xf]
      %v982 = vld [vmem:[%s979 + $0x8] sm:$0xf]
      %v983 = vld [vmem:[%s979 + $0xc] sm:$0xf]
      %v984 = vld [vmem:[%s979 + $0x10] sm:$0xf]
      %v996 = vunpack.c.l.b16 %v968
      %v997 = vunpack.c.l.b16 %v969
      %v998 = vunpack.c.l.b16 %v970
      %v999 = vunpack.c.l.b16 %v971
      %v1000 = vunpack.c.l.b16 %v972
      %v1001 = vunpack.c.l.b16 %v973
      %v1002 = vunpack.c.l.b16 %v974
      %v1003 = vunpack.c.l.b16 %v975
      %v1004 = vunpack.c.l.b16 %v976
      %v1005 = vunpack.c.l.b16 %v977
      %v1006 = vunpack.c.l.b16 %v978
      %v1007 = vpack.c.b16 %v997, %v996
      %v1008 = vpack.c.b16 %v999, %v998
      %v1009 = vpack.c.b16 %v1001, %v1000
      %v1010 = vpack.c.b16 %v1003, %v1002
      %v1011 = vpack.c.b16 %v1005, %v1004
      %v1012 = vpack.c.b16 %v1006, %v1006
      %v1013 = vrot.slane %v1007, 2
      %v1014 = vrot.slane %v1008, 2
      %v1015 = vsel %vm879, %v1013, %v1014
      %v1016 = vrot.slane %v1009, 2
      %v1017 = vsel %vm879, %v1014, %v1016
      %v1018 = vrot.slane %v1010, 2
      %v1019 = vsel %vm879, %v1016, %v1018
      %v1020 = vrot.slane %v1011, 2
      %v1021 = vsel %vm879, %v1018, %v1020
      %v1022 = vrot.slane %v1012, 2
      %v1023 = vsel %vm879, %v1020, %v1022
      %v1029 = vunpack.c.l.b16 %v980
      %v1030 = vunpack.c.l.b16 %v981
      %v1031 = vunpack.c.l.b16 %v982
      %v1032 = vunpack.c.l.b16 %v983
      %v1033 = vunpack.c.l.b16 %v984
      %v1034 = vpack.c.b16 %v1030, %v1029
      %v1035 = vpack.c.b16 %v1032, %v1031
      %v1036 = vpack.c.b16 %v1033, %v1033
      %v1040 = vsel %vm380, %v1015, 0
      %v1043 = vsel %vm380, %v1017, 0
      %v1046 = vsel %vm380, %v1019, 0
      %v1049 = vsel %vm380, %v1021, 0
      %v1052 = vsel %vm380, %v1023, 0
      %v1055 = vsel %vm396, %v1036, 0
      %1057 = vmatpush.bf16.msra.mxu0 0
      %1058 = vmatpush.bf16.msra.mxu0 0
      %1059 = vmatpush.bf16.msra.mxu0 0
      %1060 = vmatpush.bf16.msra.mxu0 0
      %1061 = vmatpush.bf16.msra.mxu0 0
      %1062 = vmatpush.bf16.msra.mxu0 %v1055
      %1063 = vmatpush.bf16.msra.mxu0 %v1035
      %1064 = vmatpush.bf16.msra.mxu0 %v1034
      %1065 = vmatmul.bf16.gmra.mxu0 %v1040
      %v1066 = vpop.f32.mrf.mxu0
      %v1067 = vadd.f32 0.0, %v1066
      %v1068 = vpop.f32.mrf.mxu0
      %v1069 = vadd.f32 0.0, %v1068
      %1070 = vmatmul.bf16.gmra.mxu0 %v1043
      %v1071 = vpop.f32.mrf.mxu0
      %v1072 = vadd.f32 0.0, %v1071
      %v1073 = vpop.f32.mrf.mxu0
      %v1074 = vadd.f32 0.0, %v1073
      %1075 = vmatmul.bf16.gmra.mxu0 %v1046
      %v1076 = vpop.f32.mrf.mxu0
      %v1077 = vadd.f32 0.0, %v1076
      %v1078 = vpop.f32.mrf.mxu0
      %v1079 = vadd.f32 0.0, %v1078
      %1080 = vmatmul.bf16.gmra.mxu0 %v1049
      %v1081 = vpop.f32.mrf.mxu0
      %v1082 = vadd.f32 0.0, %v1081
      %v1083 = vpop.f32.mrf.mxu0
      %v1084 = vadd.f32 0.0, %v1083
      %1085 = vmatmul.bf16.gmra.mxu0 %v1052
      %v1086 = vpop.f32.mrf.mxu0
      %v1087 = vadd.f32 0.0, %v1086
      %v1088 = vpop.f32.mrf.mxu0
      %v1089 = vadd.f32 0.0, %v1088
      %1090 = vdwg.mxu0
      %v1091 = vadd.f32 %v958, %v1067
      %v1092 = vadd.f32 %v959, %v1069
      %v1093 = vadd.f32 %v960, %v1072
      %v1094 = vadd.f32 %v961, %v1074
      %v1095 = vadd.f32 %v962, %v1077
      %v1096 = vadd.f32 %v963, %v1079
      %v1097 = vadd.f32 %v964, %v1082
      %v1098 = vadd.f32 %v965, %v1084
      %v1099 = vadd.f32 %v966, %v1087
      %v1100 = vadd.f32 %v967, %v1089
      %v1101 = vld [vmem:[%s257 + $0x30] sm:$0x7]
      %s1102 = scalar_lea.vmem %s1, 140
      %v1103 = vld [vmem:[%s1102] sm:$0xf]
      %v1104 = vld [vmem:[%s1102 + $0x4] sm:$0xf]
      %v1105 = vld [vmem:[%s1102 + $0x8] sm:$0xf]
      %v1106 = vld [vmem:[%s1102 + $0xc] sm:$0xf]
      %v1107 = vld [vmem:[%s1102 + $0x10] sm:$0xf]
      %v1109 = vunpack.c.l.b16 %v1101
      %v1110 = vpack.c.b16 %v1109, %v1109
      %vm1111 = vsmask.f32 5376
      %v1113 = vshrl.u32 %v1007, 16
      %v1115 = vrot.slane %v1113, 2
      %v1116 = vshll.u32 %v1007, 16
      %v1118 = vrot.slane %v1116, 3
      %v1119 = vor.u32 %v1115, %v1118
      %v1121 = vshrl.u32 %v1008, 16
      %v1123 = vrot.slane %v1121, 2
      %v1124 = vshll.u32 %v1008, 16
      %v1126 = vrot.slane %v1124, 3
      %v1127 = vor.u32 %v1123, %v1126
      %v1128 = vsel %vm1111, %v1119, %v1127
      %v1130 = vshrl.u32 %v1009, 16
      %v1132 = vrot.slane %v1130, 2
      %v1133 = vshll.u32 %v1009, 16
      %v1135 = vrot.slane %v1133, 3
      %v1136 = vor.u32 %v1132, %v1135
      %v1137 = vsel %vm1111, %v1127, %v1136
      %v1139 = vshrl.u32 %v1010, 16
      %v1141 = vrot.slane %v1139, 2
      %v1142 = vshll.u32 %v1010, 16
      %v1144 = vrot.slane %v1142, 3
      %v1145 = vor.u32 %v1141, %v1144
      %v1146 = vsel %vm1111, %v1136, %v1145
      %v1148 = vshrl.u32 %v1011, 16
      %v1150 = vrot.slane %v1148, 2
      %v1151 = vshll.u32 %v1011, 16
      %v1153 = vrot.slane %v1151, 3
      %v1154 = vor.u32 %v1150, %v1153
      %v1155 = vsel %vm1111, %v1145, %v1154
      %v1157 = vshrl.u32 %v1110, 16
      %v1159 = vrot.slane %v1157, 2
      %v1160 = vshll.u32 %v1110, 16
      %v1162 = vrot.slane %v1160, 3
      %v1163 = vor.u32 %v1159, %v1162
      %v1164 = vsel %vm1111, %v1154, %v1163
      %v1170 = vunpack.c.l.b16 %v1103
      %v1171 = vunpack.c.l.b16 %v1104
      %v1172 = vunpack.c.l.b16 %v1105
      %v1173 = vunpack.c.l.b16 %v1106
      %v1174 = vunpack.c.l.b16 %v1107
      %v1175 = vpack.c.b16 %v1171, %v1170
      %v1176 = vpack.c.b16 %v1173, %v1172
      %v1177 = vpack.c.b16 %v1174, %v1174
      %v1181 = vsel %vm380, %v1128, 0
      %v1184 = vsel %vm380, %v1137, 0
      %v1187 = vsel %vm380, %v1146, 0
      %v1190 = vsel %vm380, %v1155, 0
      %v1193 = vsel %vm380, %v1164, 0
      %v1196 = vsel %vm396, %v1177, 0
      %1198 = vmatpush.bf16.msra.mxu0 0
      %1199 = vmatpush.bf16.msra.mxu0 0
      %1200 = vmatpush.bf16.msra.mxu0 0
      %1201 = vmatpush.bf16.msra.mxu0 0
      %1202 = vmatpush.bf16.msra.mxu0 0
      %1203 = vmatpush.bf16.msra.mxu0 %v1196
      %1204 = vmatpush.bf16.msra.mxu0 %v1176
      %1205 = vmatpush.bf16.msra.mxu0 %v1175
      %1206 = vmatmul.bf16.gmra.mxu0 %v1181
      %v1207 = vpop.f32.mrf.mxu0
      %v1208 = vadd.f32 0.0, %v1207
      %v1209 = vpop.f32.mrf.mxu0
      %v1210 = vadd.f32 0.0, %v1209
      %1211 = vmatmul.bf16.gmra.mxu0 %v1184
      %v1212 = vpop.f32.mrf.mxu0
      %v1213 = vadd.f32 0.0, %v1212
      %v1214 = vpop.f32.mrf.mxu0
      %v1215 = vadd.f32 0.0, %v1214
      %1216 = vmatmul.bf16.gmra.mxu0 %v1187
      %v1217 = vpop.f32.mrf.mxu0
      %v1218 = vadd.f32 0.0, %v1217
      %v1219 = vpop.f32.mrf.mxu0
      %v1220 = vadd.f32 0.0, %v1219
      %1221 = vmatmul.bf16.gmra.mxu0 %v1190
      %v1222 = vpop.f32.mrf.mxu0
      %v1223 = vadd.f32 0.0, %v1222
      %v1224 = vpop.f32.mrf.mxu0
      %v1225 = vadd.f32 0.0, %v1224
      %1226 = vmatmul.bf16.gmra.mxu0 %v1193
      %v1227 = vpop.f32.mrf.mxu0
      %v1228 = vadd.f32 0.0, %v1227
      %v1229 = vpop.f32.mrf.mxu0
      %v1230 = vadd.f32 0.0, %v1229
      %1231 = vdwg.mxu0
      %v1232 = vadd.f32 %v1091, %v1208
      %v1233 = vadd.f32 %v1092, %v1210
      %v1234 = vadd.f32 %v1093, %v1213
      %v1235 = vadd.f32 %v1094, %v1215
      %v1236 = vadd.f32 %v1095, %v1218
      %v1237 = vadd.f32 %v1096, %v1220
      %v1238 = vadd.f32 %v1097, %v1223
      %v1239 = vadd.f32 %v1098, %v1225
      %v1240 = vadd.f32 %v1099, %v1228
      %v1241 = vadd.f32 %v1100, %v1230
      %v1242 = vld [vmem:[%s257 + $0x8] sm:$0x8]
      %s1243 = scalar_lea.vmem %s1, 160
      %v1244 = vld [vmem:[%s1243] sm:$0xf]
      %v1245 = vld [vmem:[%s1243 + $0x4] sm:$0xf]
      %v1246 = vld [vmem:[%s1243 + $0x8] sm:$0xf]
      %v1247 = vld [vmem:[%s1243 + $0xc] sm:$0xf]
      %v1248 = vld [vmem:[%s1243 + $0x10] sm:$0xf]
      %v1250 = vunpack.c.l.b16 %v1242
      %v1251 = vpack.c.b16 %v997, %v1250
      %vm1252 = vcmask 1044480
      %v1253 = vrot.slane %v1251, 3
      %v1254 = vrot.slane %v1008, 3
      %v1255 = vsel %vm1252, %v1253, %v1254
      %v1256 = vrot.slane %v1009, 3
      %v1257 = vsel %vm1252, %v1254, %v1256
      %v1258 = vrot.slane %v1010, 3
      %v1259 = vsel %vm1252, %v1256, %v1258
      %v1260 = vrot.slane %v1011, 3
      %v1261 = vsel %vm1252, %v1258, %v1260
      %v1262 = vrot.slane %v1110, 3
      %v1263 = vsel %vm1252, %v1260, %v1262
      %v1269 = vunpack.c.l.b16 %v1244
      %v1270 = vunpack.c.l.b16 %v1245
      %v1271 = vunpack.c.l.b16 %v1246
      %v1272 = vunpack.c.l.b16 %v1247
      %v1273 = vunpack.c.l.b16 %v1248
      %v1274 = vpack.c.b16 %v1270, %v1269
      %v1275 = vpack.c.b16 %v1272, %v1271
      %v1276 = vpack.c.b16 %v1273, %v1273
      %v1280 = vsel %vm380, %v1255, 0
      %v1283 = vsel %vm380, %v1257, 0
      %v1286 = vsel %vm380, %v1259, 0
      %v1289 = vsel %vm380, %v1261, 0
      %v1292 = vsel %vm380, %v1263, 0
      %v1295 = vsel %vm396, %v1276, 0
      %1297 = vmatpush.bf16.msra.mxu0 0
      %1298 = vmatpush.bf16.msra.mxu0 0
      %1299 = vmatpush.bf16.msra.mxu0 0
      %1300 = vmatpush.bf16.msra.mxu0 0
      %1301 = vmatpush.bf16.msra.mxu0 0
      %1302 = vmatpush.bf16.msra.mxu0 %v1295
      %1303 = vmatpush.bf16.msra.mxu0 %v1275
      %1304 = vmatpush.bf16.msra.mxu0 %v1274
      %1305 = vmatmul.bf16.gmra.mxu0 %v1280
      %v1306 = vpop.f32.mrf.mxu0
      %v1307 = vadd.f32 0.0, %v1306
      %v1308 = vpop.f32.mrf.mxu0
      %v1309 = vadd.f32 0.0, %v1308
      %1310 = vmatmul.bf16.gmra.mxu0 %v1283
      %v1311 = vpop.f32.mrf.mxu0
      %v1312 = vadd.f32 0.0, %v1311
      %v1313 = vpop.f32.mrf.mxu0
      %v1314 = vadd.f32 0.0, %v1313
      %1315 = vmatmul.bf16.gmra.mxu0 %v1286
      %v1316 = vpop.f32.mrf.mxu0
      %v1317 = vadd.f32 0.0, %v1316
      %v1318 = vpop.f32.mrf.mxu0
      %v1319 = vadd.f32 0.0, %v1318
      %1320 = vmatmul.bf16.gmra.mxu0 %v1289
      %v1321 = vpop.f32.mrf.mxu0
      %v1322 = vadd.f32 0.0, %v1321
      %v1323 = vpop.f32.mrf.mxu0
      %v1324 = vadd.f32 0.0, %v1323
      %1325 = vmatmul.bf16.gmra.mxu0 %v1292
      %v1326 = vpop.f32.mrf.mxu0
      %v1327 = vadd.f32 0.0, %v1326
      %v1328 = vpop.f32.mrf.mxu0
      %v1329 = vadd.f32 0.0, %v1328
      %1330 = vdwg.mxu0
      %v1331 = vadd.f32 %v1232, %v1307
      %v1332 = vadd.f32 %v1233, %v1309
      %v1333 = vadd.f32 %v1234, %v1312
      %v1334 = vadd.f32 %v1235, %v1314
      %v1335 = vadd.f32 %v1236, %v1317
      %v1336 = vadd.f32 %v1237, %v1319
      %v1337 = vadd.f32 %v1238, %v1322
      %v1338 = vadd.f32 %v1239, %v1324
      %v1339 = vadd.f32 %v1240, %v1327
      %v1340 = vadd.f32 %v1241, %v1329
      %v1341 = vld [vmem:[%s2] sm:$0x1]
      %v1343 = vperm.slane %v1341, 0
      %v1345 = vadd.f32 %v1331, %v1343
      %v1346 = vadd.f32 %v1332, %v1343
      %v1347 = vadd.f32 %v1333, %v1343
      %v1348 = vadd.f32 %v1334, %v1343
      %v1349 = vadd.f32 %v1335, %v1343
      %v1350 = vadd.f32 %v1336, %v1343
      %v1351 = vadd.f32 %v1337, %v1343
      %v1352 = vadd.f32 %v1338, %v1343
      %v1353 = vadd.f32 %v1339, %v1343
      %v1354 = vadd.f32 %v1340, %v1343
      %v1355 = vpack.c.bf16 %v1345, %v1345
      %v1356 = vpack.c.bf16 %v1346, %v1346
      %v1357 = vpack.c.bf16 %v1347, %v1347
      %v1358 = vpack.c.bf16 %v1348, %v1348
      %v1359 = vpack.c.bf16 %v1349, %v1349
      %v1360 = vpack.c.bf16 %v1350, %v1350
      %v1361 = vpack.c.bf16 %v1351, %v1351
      %v1362 = vpack.c.bf16 %v1352, %v1352
      %v1363 = vpack.c.bf16 %v1353, %v1353
      %v1364 = vpack.c.bf16 %v1354, %v1354
      %vm1365 = vcmask 519168
      %1366 = vst.msk [vmem:[%s262] sm:$0xf] %vm1365, %v1355
      %1367 = vst.msk [vmem:[%s262 + $0x4] sm:$0xf] %vm1365, %v1356
      %1368 = vst.msk [vmem:[%s262 + $0x8] sm:$0xf] %vm1365, %v1357
      %1369 = vst.msk [vmem:[%s262 + $0xc] sm:$0xf] %vm1365, %v1358
      %1370 = vst.msk [vmem:[%s262 + $0x10] sm:$0xf] %vm1365, %v1359
      %1371 = vst.msk [vmem:[%s262 + $0x14] sm:$0xf] %vm1365, %v1360
      %1372 = vst.msk [vmem:[%s262 + $0x18] sm:$0xf] %vm1365, %v1361
      %1373 = vst.msk [vmem:[%s262 + $0x1c] sm:$0xf] %vm1365, %v1362
      %1374 = vst.msk [vmem:[%s262 + $0x20] sm:$0xf] %vm1365, %v1363
      %1375 = vst.msk [vmem:[%s262 + $0x24] sm:$0xf] %vm1365, %v1364
      %v1376 = vld [vmem:[%s3] sm:$0x1]
      %vm1377 = vcmask 654336
      %v1379 = vsel %vm1377, %v1376, 0
      %1381 = vmatpush.msra.mxu0 0.0
      %1382 = vmatpush.msra.mxu0 0.0
      %1383 = vmatpush.msra.mxu0 0.0
      %1384 = vmatpush.msra.mxu0 0.0
      %1385 = vmatpush.msra.mxu0 0.0
      %1386 = vmatpush.msra.mxu0 0.0
      %1387 = vmatpush.msra.mxu0 %v1354
      %1388 = vmatpush.msra.mxu0 %v1353
      %1389 = vmatpush.msra.mxu0 %v1352
      %1390 = vmatpush.msra.mxu0 %v1351
      %1391 = vmatpush.msra.mxu0 %v1350
      %1392 = vmatpush.msra.mxu0 %v1349
      %1393 = vmatpush.msra.mxu0 %v1348
      %1394 = vmatpush.msra.mxu0 %v1347
      %1395 = vmatpush.msra.mxu0 %v1346
      %1396 = vmatpush.msra.mxu0 %v1345
      %1397 = vmatmul.f32.gmra.mxu0 %v1379
      %v1398 = vpop.f32.mrf.mxu0
      %v1399 = vadd.f32 0.0, %v1398
      %1400 = vdwg.mxu0
      %vm1401 = vcmask 516096
      %1402 = vst.msk [vmem:[%s265] sm:$0x1] %vm1401, %v1399
      %v1403 = vmul.f32 %v1345, %v1345
      %v1404 = vmul.f32 %v1346, %v1346
      %v1405 = vmul.f32 %v1347, %v1347
      %v1406 = vmul.f32 %v1348, %v1348
      %v1407 = vmul.f32 %v1349, %v1349
      %v1408 = vmul.f32 %v1350, %v1350
      %v1409 = vmul.f32 %v1351, %v1351
      %v1410 = vmul.f32 %v1352, %v1352
      %v1411 = vmul.f32 %v1353, %v1353
      %v1412 = vmul.f32 %v1354, %v1354
      %1413 = vmatpush.msra.mxu0 0.0
      %1414 = vmatpush.msra.mxu0 0.0
      %1415 = vmatpush.msra.mxu0 0.0
      %1416 = vmatpush.msra.mxu0 0.0
      %1417 = vmatpush.msra.mxu0 0.0
      %1418 = vmatpush.msra.mxu0 0.0
      %1419 = vmatpush.msra.mxu0 %v1412
      %1420 = vmatpush.msra.mxu0 %v1411
      %1421 = vmatpush.msra.mxu0 %v1410
      %1422 = vmatpush.msra.mxu0 %v1409
      %1423 = vmatpush.msra.mxu0 %v1408
      %1424 = vmatpush.msra.mxu0 %v1407
      %1425 = vmatpush.msra.mxu0 %v1406
      %1426 = vmatpush.msra.mxu0 %v1405
      %1427 = vmatpush.msra.mxu0 %v1404
      %1428 = vmatpush.msra.mxu0 %v1403
      %1429 = vmatmul.f32.gmra.mxu0 %v1379
      %v1430 = vpop.f32.mrf.mxu0
      %v1431 = vadd.f32 0.0, %v1430
      %1432 = vdwg.mxu0
      %1433 = vst.msk [vmem:[%s268] sm:$0x1] %vm1401, %v1431
      %p1434 = scmp.lt.s32.totalorder %s18, 1
      %s1435 = scalar_select %p1434, %s18, 1
      %s1436 = smul.addr %s1435, 10
      %s1437 = smul.addr %s1436, 4
      %s1438 = scalar_lea.vmem %s4, %s1437
      %p1439 = scmp.lt.s32.totalorder %s18, 1
      %s1440 = scalar_select %p1439, %s18, 1
      %s1441 = scalar_lea.vmem %s5, %s1440
      %p1442 = scmp.lt.s32.totalorder %s18, 1
      %s1443 = scalar_select %p1442, %s18, 1
      %s1444 = scalar_lea.vmem %s6, %s1443
      // Predicated region
      $region37: #{conv_block_forward.4} parent=35 // pred_check
        %p1445 = pneg %p125
      $region38: #{conv_block_forward.4} parent=35 // pred_check_branch
        %1447 = sbr.rel (%p1445) target = $region40
      $region39: #{conv_block_forward.4} parent=35 // pred_region
        _
      $region40: #{conv_block_forward.4} parent=35 // pred_fallthru
        _
      // Predicated region
      $region41: #{conv_block_forward.4} parent=35 // pred_check
        %p1448 = pneg %p151
      $region42: #{conv_block_forward.4} parent=35 // pred_check_branch
        %1450 = sbr.rel (%p1448) target = $region44
      $region43: #{conv_block_forward.4} parent=35 // pred_region
        _
      $region44: #{conv_block_forward.4} parent=35 // pred_fallthru
        _
      // Predicated region
      $region45: #{conv_block_forward.4} parent=35 // pred_check
        %p1451 = pneg %p177
      $region46: #{conv_block_forward.4} parent=35 // pred_check_branch
        %1453 = sbr.rel (%p1451) target = $region48
      $region47: #{conv_block_forward.4} parent=35 // pred_region
        _
      $region48: #{conv_block_forward.4} parent=35 // pred_fallthru
        _
    $region36: #{conv_block_forward.4} parent=5 // pred_fallthru
      _
    %p1454 = scmp.le.s32.totalorder 2, %s13
    // Predicated region
    $region49: #{conv_block_forward.4} parent=5 // pred_check
      %p1455 = pneg %p1454
    $region50: #{conv_block_forward.4} parent=5 // pred_check_branch
      %1457 = sbr.rel (%p1455) target = $region52
    $region51: #{conv_block_forward.4} parent=5 // pred_region
      %s1458 = ssub.s32 %s13, 2
      // Predicated region
      $region53: #{conv_block_forward.4} parent=51 // pred_check
        %p1459 = pneg %p131
      $region54: #{conv_block_forward.4} parent=51 // pred_check_branch
        %1461 = sbr.rel (%p1459) target = $region56
      $region55: #{conv_block_forward.4} parent=51 // pred_region
        %p1462 = scmp.lt.s32.totalorder %s19, 1
        %s1463 = scalar_select %p1462, %s19, 1
        %s1464 = smul.addr %s1463, 10
        %s1465 = smul.addr %s1464, 4
        %s1466 = scalar_lea.vmem %s4, %s1465
      $region56: #{conv_block_forward.4} parent=51 // pred_fallthru
        _
      // Predicated region
      $region57: #{conv_block_forward.4} parent=51 // pred_check
        %p1467 = pneg %p157
      $region58: #{conv_block_forward.4} parent=51 // pred_check_branch
        %1469 = sbr.rel (%p1467) target = $region60
      $region59: #{conv_block_forward.4} parent=51 // pred_region
        %p1470 = scmp.lt.s32.totalorder %s19, 1
        %s1471 = scalar_select %p1470, %s19, 1
        %s1472 = scalar_lea.vmem %s5, %s1471
      $region60: #{conv_block_forward.4} parent=51 // pred_fallthru
        _
      // Predicated region
      $region61: #{conv_block_forward.4} parent=51 // pred_check
        %p1473 = pneg %p183
      $region62: #{conv_block_forward.4} parent=51 // pred_check_branch
        %1475 = sbr.rel (%p1473) target = $region64
      $region63: #{conv_block_forward.4} parent=51 // pred_region
        %p1476 = scmp.lt.s32.totalorder %s19, 1
        %s1477 = scalar_select %p1476, %s19, 1
        %s1478 = scalar_lea.vmem %s6, %s1477
      $region64: #{conv_block_forward.4} parent=51 // pred_fallthru
        _
    $region52: #{conv_block_forward.4} parent=5 // pred_fallthru
      _
  $region6: #{conv_block_forward.4} parent=0 // loop_footer
    %s17 = sadd.s32 1, %s13
  $region7: #{conv_block_forward.4} parent=0 // loop_footer_branch
    %12 = sbr.rel target = $region3
  $region8: #{conv_block_forward.4} parent=0 // loop_exit
    _

// kernel: conv_block_forward.7
$region0: #{conv_block_forward.7}
  #allocation0 [shape = 'u32[]', space=smem, size = 0x4, offset = 0x4, fixed_abs, tag = 'smem constant byte address 0x4 - core index']
  #allocation1 [shape = 'u32[72,128]{1,0:T(1,128)}', space=vmem, size = 0x9000, scoped, tag = 'internal scratch']
  %s0 = inlined_call_operand.vmem [shape: bf16[80,128], index: 0, kind: input, shape index: {}]
  %s1 = inlined_call_operand.vmem [shape: f32[1,128], index: 1, kind: input, shape index: {}]
  %s2 = inlined_call_operand.vmem [shape: f32[1,128], index: 2, kind: input, shape index: {}]
  %s3 = inlined_call_operand.vmem [shape: f32[80,128], index: 3, kind: output, shape index: {}]
  %s4 = sld [smem:[#allocation0]]
  $region22: #{conv_block_forward.7} parent=0
    _
  %s6 = ssub.s32 1, %s4
  %s7 = scalar_select 0, %s6, %s4
  // Predicated region
  $region2: #{conv_block_forward.7} parent=0 // pred_check
    _
  $region3: #{conv_block_forward.7} parent=0 // pred_check_branch
    %9 = sbr.rel (0) target = $region5
  $region4: #{conv_block_forward.7} parent=0 // pred_region
    _
  $region5: #{conv_block_forward.7} parent=0 // pred_fallthru
    _
  // Predicated region
  $region6: #{conv_block_forward.7} parent=0 // pred_check
    _
  $region7: #{conv_block_forward.7} parent=0 // pred_check_branch
    %11 = sbr.rel (0) target = $region9
  $region8: #{conv_block_forward.7} parent=0 // pred_region
    _
  $region9: #{conv_block_forward.7} parent=0 // pred_fallthru
    _
  // Predicated region
  $region10: #{conv_block_forward.7} parent=0 // pred_check
    _
  $region11: #{conv_block_forward.7} parent=0 // pred_check_branch
    %13 = sbr.rel (0) target = $region13
  $region12: #{conv_block_forward.7} parent=0 // pred_region
    _
  $region13: #{conv_block_forward.7} parent=0 // pred_fallthru
    _
  %v14 = vld [vmem:[%s0] sm:$0xf]
  %v15 = vld [vmem:[%s0 + $0x4] sm:$0xf]
  %v16 = vld [vmem:[%s0 + $0x8] sm:$0xf]
  %v17 = vld [vmem:[%s0 + $0xc] sm:$0xf]
  %v18 = vld [vmem:[%s0 + $0x10] sm:$0xf]
  %v19 = vld [vmem:[%s0 + $0x14] sm:$0xf]
  %v20 = vld [vmem:[%s0 + $0x18] sm:$0xf]
  %v21 = vld [vmem:[%s0 + $0x1c] sm:$0xf]
  %v22 = vld [vmem:[%s0 + $0x20] sm:$0xf]
  %v23 = vld [vmem:[%s0 + $0x24] sm:$0xf]
  %v24 = vunpack.c.l.bf16 %v14
  %v25 = vunpack.c.l.bf16 %v15
  %v26 = vunpack.c.l.bf16 %v16
  %v27 = vunpack.c.l.bf16 %v17
  %v28 = vunpack.c.l.bf16 %v18
  %v29 = vunpack.c.l.bf16 %v19
  %v30 = vunpack.c.l.bf16 %v20
  %v31 = vunpack.c.l.bf16 %v21
  %v32 = vunpack.c.l.bf16 %v22
  %v33 = vunpack.c.l.bf16 %v23
  %v34 = vld [vmem:[%s1] sm:$0x1]
  %v36 = vperm.slane %v34, 0
  %v38 = vmul.f32 %v24, %v36
  %v39 = vmul.f32 %v25, %v36
  %v40 = vmul.f32 %v26, %v36
  %v41 = vmul.f32 %v27, %v36
  %v42 = vmul.f32 %v28, %v36
  %v43 = vmul.f32 %v29, %v36
  %v44 = vmul.f32 %v30, %v36
  %v45 = vmul.f32 %v31, %v36
  %v46 = vmul.f32 %v32, %v36
  %v47 = vmul.f32 %v33, %v36
  %v48 = vld [vmem:[%s2] sm:$0x1]
  %v50 = vperm.slane %v48, 0
  %v52 = vadd.f32 %v38, %v50
  %v53 = vadd.f32 %v39, %v50
  %v54 = vadd.f32 %v40, %v50
  %v55 = vadd.f32 %v41, %v50
  %v56 = vadd.f32 %v42, %v50
  %v57 = vadd.f32 %v43, %v50
  %v58 = vadd.f32 %v44, %v50
  %v59 = vadd.f32 %v45, %v50
  %v60 = vadd.f32 %v46, %v50
  %v61 = vadd.f32 %v47, %v50
  %v62 = vmax.f32 %v52, 0.0
  %v63 = vmax.f32 %v53, 0.0
  %v64 = vmax.f32 %v54, 0.0
  %v65 = vmax.f32 %v55, 0.0
  %v66 = vmax.f32 %v56, 0.0
  %v67 = vmax.f32 %v57, 0.0
  %v68 = vmax.f32 %v58, 0.0
  %v69 = vmax.f32 %v59, 0.0
  %v70 = vmax.f32 %v60, 0.0
  %v71 = vmax.f32 %v61, 0.0
  %72 = vst [vmem:[%s3] sm:$0xff] %v62
  %73 = vst [vmem:[%s3 + $0x8] sm:$0xff] %v63
  %74 = vst [vmem:[%s3 + $0x10] sm:$0xff] %v64
  %75 = vst [vmem:[%s3 + $0x18] sm:$0xff] %v65
  %76 = vst [vmem:[%s3 + $0x20] sm:$0xff] %v66
  %77 = vst [vmem:[%s3 + $0x28] sm:$0xff] %v67
  %78 = vst [vmem:[%s3 + $0x30] sm:$0xff] %v68
  %79 = vst [vmem:[%s3 + $0x38] sm:$0xff] %v69
  %80 = vst [vmem:[%s3 + $0x40] sm:$0xff] %v70
  %81 = vst [vmem:[%s3 + $0x48] sm:$0xff] %v71
  // Predicated region
  $region14: #{conv_block_forward.7} parent=0 // pred_check
    _
  $region15: #{conv_block_forward.7} parent=0 // pred_check_branch
    %83 = sbr.rel (0) target = $region17
  $region16: #{conv_block_forward.7} parent=0 // pred_region
    _
  $region17: #{conv_block_forward.7} parent=0 // pred_fallthru
    _
  // Predicated region
  $region18: #{conv_block_forward.7} parent=0 // pred_check
    _
  $region19: #{conv_block_forward.7} parent=0 // pred_check_branch
    %85 = sbr.rel (0) target = $region21
  $region20: #{conv_block_forward.7} parent=0 // pred_region
    _
  $region21: #{conv_block_forward.7} parent=0 // pred_fallthru
    _

// kernel: conv_block_forward.6
$region0: #{conv_block_forward.6}
  #allocation0 [shape = 'u32[]', space=smem, size = 0x4, offset = 0x4, fixed_abs, tag = 'smem constant byte address 0x4 - core index']
  #allocation1 [shape = 'u32[72,128]{1,0:T(1,128)}', space=vmem, size = 0x9000, scoped, tag = 'internal scratch']
  %s0 = inlined_call_operand.vmem [shape: bf16[2,102,80], index: 0, kind: input, shape index: {}]
  %s1 = inlined_call_operand.vmem [shape: bf16[9,80,64], index: 1, kind: input, shape index: {}]
  %s2 = inlined_call_operand.vmem [shape: f32[1,64], index: 2, kind: input, shape index: {}]
  %s3 = inlined_call_operand.vmem [shape: f32[1,80], index: 3, kind: input, shape index: {}]
  %s4 = inlined_call_operand.vmem [shape: bf16[2,80,64], index: 4, kind: output, shape index: {0}]
  %s5 = inlined_call_operand.vmem [shape: f32[2,1,64], index: 5, kind: output, shape index: {1}]
  %s6 = inlined_call_operand.vmem [shape: f32[2,1,64], index: 6, kind: output, shape index: {2}]
  %7 = xla_tuple %s4, %s5, %s6
  %s8 = sld [smem:[#allocation0]]
  $region65: #{conv_block_forward.6} parent=0
    _
  %s10 = ssub.s32 1, %s8
  %s11 = scalar_select 0, %s10, %s8
  loop: start=0, step=1, limit=4
  $region2: #{conv_block_forward.6} parent=0 // loop_pre_header
    _
  $region3: #{conv_block_forward.6} parent=0 // loop_header
    %s13 = sphi 0, %s17
    %p14 = scmp.ge.s32.totalorder %s13, 4
    %s23 = sphi 0, %s25
    %s26 = sphi 0, %s23
    %s27 = sphi 0, %s26
    %s43 = sphi 0, %s27
    %s47 = sphi 0, %s47
    %s49 = sphi 0, %s47
    %s50 = sphi 0, %s49
    %s64 = sphi 0, %s50
    %s68 = sphi 0, %s68
    %s70 = sphi 0, %s68
    %s71 = sphi 0, %s70
    %s85 = sphi 0, %s71
    %s89 = sphi 0, %s89
    %s91 = sphi 0, %s89
    %s92 = sphi 0, %s91
    %s106 = sphi 0, %s92
    %s112 = sphi 0, %s114
    %s115 = sphi 0, %s112
    %s116 = sphi 0, %s115
    %s132 = sphi 0, %s116
    %s138 = sphi 0, %s140
    %s141 = sphi 0, %s138
    %s142 = sphi 0, %s141
    %s158 = sphi 0, %s142
    %s164 = sphi 0, %s166
    %s167 = sphi 0, %s164
    %s168 = sphi 0, %s167
    %s184 = sphi 0, %s168
  $region4: #{conv_block_forward.6} parent=0 // loop_header_branch
    %16 = sbr.rel (%p14) target = $region8
  $region5: #{conv_block_forward.6} parent=0 // loop_body
    %s18 = ssub.s32 %s13, 1
    %s19 = ssub.s32 %s13, 2
    %s20 = sadd.s32 %s13, 1
    %s21 = ssub.s32 %s13, %s20
    %p22 = scmp.eq.s32.totalorder %s21, 0
    %s24 = sadd.s32 %s23, 1
    %s25 = scalar_select %p22, %s23, %s24
    %p28 = pneg %p22
    %p29 = scmp.eq.s32.totalorder %s13, 1
    %p30 = por %p28, %p29
    %p31 = scmp.ne.s32.totalorder %s23, %s26
    %p32 = scmp.eq.s32.totalorder %s13, 0
    %p33 = por %p31, %p32
    %p34 = scmp.ne.s32.totalorder %s23, %s26
    %p35 = scmp.eq.s32.totalorder %s18, 1
    %p36 = por %p34, %p35
    %p37 = scmp.ne.s32.totalorder %s26, %s27
    %p38 = scmp.eq.s32.totalorder %s18, 0
    %p39 = por %p37, %p38
    %p40 = scmp.ne.s32.totalorder %s26, %s27
    %p41 = scmp.eq.s32.totalorder %s19, 1
    %p42 = por %p40, %p41
    %p44 = scmp.ne.s32.totalorder %s27, %s43
    %p45 = scmp.eq.s32.totalorder %s19, 0
    %p46 = por %p44, %p45
    %s48 = sadd.s32 %s47, 1
    %p51 = scmp.eq.s32.totalorder %s13, 1
    %p52 = scmp.ne.s32.totalorder %s47, %s49
    %p53 = scmp.eq.s32.totalorder %s13, 0
    %p54 = por %p52, %p53
    %p55 = scmp.ne.s32.totalorder %s47, %s49
    %p56 = scmp.eq.s32.totalorder %s18, 1
    %p57 = por %p55, %p56
    %p58 = scmp.ne.s32.totalorder %s49, %s50
    %p59 = scmp.eq.s32.totalorder %s18, 0
    %p60 = por %p58, %p59
    %p61 = scmp.ne.s32.totalorder %s49, %s50
    %p62 = scmp.eq.s32.totalorder %s19, 1
    %p63 = por %p61, %p62
    %p65 = scmp.ne.s32.totalorder %s50, %s64
    %p66 = scmp.eq.s32.totalorder %s19, 0
    %p67 = por %p65, %p66
    %s69 = sadd.s32 %s68, 1
    %p72 = scmp.eq.s32.totalorder %s13, 1
    %p73 = scmp.ne.s32.totalorder %s68, %s70
    %p74 = scmp.eq.s32.totalorder %s13, 0
    %p75 = por %p73, %p74
    %p76 = scmp.ne.s32.totalorder %s68, %s70
    %p77 = scmp.eq.s32.totalorder %s18, 1
    %p78 = por %p76, %p77
    %p79 = scmp.ne.s32.totalorder %s70, %s71
    %p80 = scmp.eq.s32.totalorder %s18, 0
    %p81 = por %p79, %p80
    %p82 = scmp.ne.s32.totalorder %s70, %s71
    %p83 = scmp.eq.s32.totalorder %s19, 1
    %p84 = por %p82, %p83
    %p86 = scmp.ne.s32.totalorder %s71, %s85
    %p87 = scmp.eq.s32.totalorder %s19, 0
    %p88 = por %p86, %p87
    %s90 = sadd.s32 %s89, 1
    %p93 = scmp.eq.s32.totalorder %s13, 1
    %p94 = scmp.ne.s32.totalorder %s89, %s91
    %p95 = scmp.eq.s32.totalorder %s13, 0
    %p96 = por %p94, %p95
    %p97 = scmp.ne.s32.totalorder %s89, %s91
    %p98 = scmp.eq.s32.totalorder %s18, 1
    %p99 = por %p97, %p98
    %p100 = scmp.ne.s32.totalorder %s91, %s92
    %p101 = scmp.eq.s32.totalorder %s18, 0
    %p102 = por %p100, %p101
    %p103 = scmp.ne.s32.totalorder %s91, %s92
    %p104 = scmp.eq.s32.totalorder %s19, 1
    %p105 = por %p103, %p104
    %p107 = scmp.ne.s32.totalorder %s92, %s106
    %p108 = scmp.eq.s32.totalorder %s19, 0
    %p109 = por %p107, %p108
    %s110 = ssub.s32 %s13, %s20
    %p111 = scmp.eq.s32.totalorder %s110, 0
    %s113 = sadd.s32 %s112, 1
    %s114 = scalar_select %p111, %s112, %s113
    %p117 = pneg %p111
    %p118 = scmp.eq.s32.totalorder %s13, 1
    %p119 = por %p117, %p118
    %p120 = scmp.ne.s32.totalorder %s112, %s115
    %p121 = scmp.eq.s32.totalorder %s13, 0
    %p122 = por %p120, %p121
    %p123 = scmp.ne.s32.totalorder %s112, %s115
    %p124 = scmp.eq.s32.totalorder %s18, 1
    %p125 = por %p123, %p124
    %p126 = scmp.ne.s32.totalorder %s115, %s116
    %p127 = scmp.eq.s32.totalorder %s18, 0
    %p128 = por %p126, %p127
    %p129 = scmp.ne.s32.totalorder %s115, %s116
    %p130 = scmp.eq.s32.totalorder %s19, 1
    %p131 = por %p129, %p130
    %p133 = scmp.ne.s32.totalorder %s116, %s132
    %p134 = scmp.eq.s32.totalorder %s19, 0
    %p135 = por %p133, %p134
    %s136 = ssub.s32 %s13, %s20
    %p137 = scmp.eq.s32.totalorder %s136, 0
    %s139 = sadd.s32 %s138, 1
    %s140 = scalar_select %p137, %s138, %s139
    %p143 = pneg %p137
    %p144 = scmp.eq.s32.totalorder %s13, 1
    %p145 = por %p143, %p144
    %p146 = scmp.ne.s32.totalorder %s138, %s141
    %p147 = scmp.eq.s32.totalorder %s13, 0
    %p148 = por %p146, %p147
    %p149 = scmp.ne.s32.totalorder %s138, %s141
    %p150 = scmp.eq.s32.totalorder %s18, 1
    %p151 = por %p149, %p150
    %p152 = scmp.ne.s32.totalorder %s141, %s142
    %p153 = scmp.eq.s32.totalorder %s18, 0
    %p154 = por %p152, %p153
    %p155 = scmp.ne.s32.totalorder %s141, %s142
    %p156 = scmp.eq.s32.totalorder %s19, 1
    %p157 = por %p155, %p156
    %p159 = scmp.ne.s32.totalorder %s142, %s158
    %p160 = scmp.eq.s32.totalorder %s19, 0
    %p161 = por %p159, %p160
    %s162 = ssub.s32 %s13, %s20
    %p163 = scmp.eq.s32.totalorder %s162, 0
    %s165 = sadd.s32 %s164, 1
    %s166 = scalar_select %p163, %s164, %s165
    %p169 = pneg %p163
    %p170 = scmp.eq.s32.totalorder %s13, 1
    %p171 = por %p169, %p170
    %p172 = scmp.ne.s32.totalorder %s164, %s167
    %p173 = scmp.eq.s32.totalorder %s13, 0
    %p174 = por %p172, %p173
    %p175 = scmp.ne.s32.totalorder %s164, %s167
    %p176 = scmp.eq.s32.totalorder %s18, 1
    %p177 = por %p175, %p176
    %p178 = scmp.ne.s32.totalorder %s167, %s168
    %p179 = scmp.eq.s32.totalorder %s18, 0
    %p180 = por %p178, %p179
    %p181 = scmp.ne.s32.totalorder %s167, %s168
    %p182 = scmp.eq.s32.totalorder %s19, 1
    %p183 = por %p181, %p182
    %p185 = scmp.ne.s32.totalorder %s168, %s184
    %p186 = scmp.eq.s32.totalorder %s19, 0
    %p187 = por %p185, %p186
    %p188 = scmp.le.s32.totalorder 1, %s13
    %p189 = scmp.lt.s32.totalorder %s13, 3
    %p190 = pnand %p188, %p189
    %p191 = pneg %p190
    // Predicated region
    $region9: #{conv_block_forward.6} parent=5 // pred_check
      _
    $region10: #{conv_block_forward.6} parent=5 // pred_check_branch
      %193 = sbr.rel (%p190) target = $region12
    $region11: #{conv_block_forward.6} parent=5 // pred_region
      %s194 = ssub.s32 %s13, 1
      // Predicated region
      $region13: #{conv_block_forward.6} parent=11 // pred_check
        %p195 = pneg %p60
      $region14: #{conv_block_forward.6} parent=11 // pred_check_branch
        %197 = sbr.rel (%p195) target = $region16
      $region15: #{conv_block_forward.6} parent=11 // pred_region
        _
      $region16: #{conv_block_forward.6} parent=11 // pred_fallthru
        _
      // Predicated region
      $region17: #{conv_block_forward.6} parent=11 // pred_check
        %p198 = pneg %p81
      $region18: #{conv_block_forward.6} parent=11 // pred_check_branch
        %200 = sbr.rel (%p198) target = $region20
      $region19: #{conv_block_forward.6} parent=11 // pred_region
        _
      $region20: #{conv_block_forward.6} parent=11 // pred_fallthru
        _
      // Predicated region
      $region21: #{conv_block_forward.6} parent=11 // pred_check
        %p201 = pneg %p102
      $region22: #{conv_block_forward.6} parent=11 // pred_check_branch
        %203 = sbr.rel (%p201) target = $region24
      $region23: #{conv_block_forward.6} parent=11 // pred_region
        _
      $region24: #{conv_block_forward.6} parent=11 // pred_fallthru
        _
    $region12: #{conv_block_forward.6} parent=5 // pred_fallthru
      _
    %p204 = scmp.lt.s32.totalorder %s13, 2
    // Predicated region
    $region25: #{conv_block_forward.6} parent=5 // pred_check
      %p205 = pneg %p204
    $region26: #{conv_block_forward.6} parent=5 // pred_check_branch
      %207 = sbr.rel (%p205) target = $region28
    $region27: #{conv_block_forward.6} parent=5 // pred_region
      // Predicated region
      $region29: #{conv_block_forward.6} parent=27 // pred_check
        %p208 = pneg %p33
      $region30: #{conv_block_forward.6} parent=27 // pred_check_branch
        %210 = sbr.rel (%p208) target = $region32
      $region31: #{conv_block_forward.6} parent=27 // pred_region
        %p211 = scmp.lt.s32.totalorder %s13, 1
        %s212 = scalar_select %p211, %s13, 1
        %s213 = smul.addr %s212, 13
        %s214 = smul.addr %s213, 4
        %s215 = scalar_lea.vmem %s0, %s214
      $region32: #{conv_block_forward.6} parent=27 // pred_fallthru
        _
    $region28: #{conv_block_forward.6} parent=5 // pred_fallthru
      _
    %p216 = scmp.le.s32.totalorder 1, %s13
    %p217 = scmp.lt.s32.totalorder %s13, 3
    %p218 = pnand %p216, %p217
    %p219 = pneg %p218
    // Predicated region
    $region33: #{conv_block_forward.6} parent=5 // pred_check
      _
    $region34: #{conv_block_forward.6} parent=5 // pred_check_branch
      %221 = sbr.rel (%p218) target = $region36
    $region35: #{conv_block_forward.6} parent=5 // pred_region
      %s222 = ssub.s32 %s13, 1
      %p223 = scmp.lt.s32.totalorder %s18, 1
      %s224 = scalar_select %p223, %s18, 1
      %s225 = smul.addr %s224, 13
      %s226 = smul.addr %s225, 4
      %s227 = scalar_lea.vmem %s0, %s226
      %p228 = pneg %p39
      %p229 = pneg %p36
      %p230 = pneg %p60
      %p231 = pneg %p57
      %p232 = pneg %p81
      %p233 = pneg %p78
      %p234 = pneg %p102
      %p235 = pneg %p99
      %p236 = pneg %p128
      %p237 = pneg %p125
      %p238 = scmp.lt.s32.totalorder %s18, 1
      %s239 = scalar_select %p238, %s18, 1
      %s240 = smul.addr %s239, 10
      %s241 = smul.addr %s240, 4
      %s242 = scalar_lea.vmem %s4, %s241
      %p243 = pneg %p154
      %p244 = pneg %p151
      %p245 = scmp.lt.s32.totalorder %s18, 1
      %s246 = scalar_select %p245, %s18, 1
      %s247 = scalar_lea.vmem %s5, %s246
      %p248 = pneg %p180
      %p249 = pneg %p177
      %p250 = scmp.lt.s32.totalorder %s18, 1
      %s251 = scalar_select %p250, %s18, 1
      %s252 = scalar_lea.vmem %s6, %s251
      %p253 = scmp.lt.s32.totalorder %s18, 1
      %s254 = scalar_select %p253, %s18, 1
      %s255 = smul.addr %s254, 13
      %s256 = smul.addr %s255, 4
      %s257 = scalar_lea.vmem %s0, %s256
      %p258 = scmp.lt.s32.totalorder %s18, 1
      %s259 = scalar_select %p258, %s18, 1
      %s260 = smul.addr %s259, 10
      %s261 = smul.addr %s260, 4
      %s262 = scalar_lea.vmem %s4, %s261
      %p263 = scmp.lt.s32.totalorder %s18, 1
      %s264 = scalar_select %p263, %s18, 1
      %s265 = scalar_lea.vmem %s5, %s264
      %p266 = scmp.lt.s32.totalorder %s18, 1
      %s267 = scalar_select %p266, %s18, 1
      %s268 = scalar_lea.vmem %s6, %s267
      %v270 = vld [vmem:[%s257] sm:$0xf]
      %v271 = vld [vmem:[%s257 + $0x4] sm:$0xf]
      %v272 = vld [vmem:[%s257 + $0x8] sm:$0xf]
      %v273 = vld [vmem:[%s257 + $0xc] sm:$0xf]
      %v274 = vld [vmem:[%s257 + $0x10] sm:$0xf]
      %v275 = vld [vmem:[%s257 + $0x14] sm:$0xf]
      %v276 = vld [vmem:[%s257 + $0x18] sm:$0xf]
      %v277 = vld [vmem:[%s257 + $0x1c] sm:$0xf]
      %v278 = vld [vmem:[%s257 + $0x20] sm:$0xf]
      %v279 = vld [vmem:[%s257 + $0x24] sm:$0xf]
      %v280 = vld [vmem:[%s1] sm:$0xf]
      %v281 = vld [vmem:[%s1 + $0x4] sm:$0xf]
      %v282 = vld [vmem:[%s1 + $0x8] sm:$0xf]
      %v283 = vld [vmem:[%s1 + $0xc] sm:$0xf]
      %v284 = vld [vmem:[%s1 + $0x10] sm:$0xf]
      %v285 = vld [vmem:[%s1 + $0x14] sm:$0xf]
      %v286 = vld [vmem:[%s1 + $0x18] sm:$0xf]
      %v287 = vld [vmem:[%s1 + $0x1c] sm:$0xf]
      %v288 = vld [vmem:[%s1 + $0x20] sm:$0xf]
      %v289 = vld [vmem:[%s1 + $0x24] sm:$0xf]
      %v290 = vld [vmem:[%s257 + $0x28] sm:$0x1]
      %s291 = scalar_lea.vmem %s1, 40
      %v292 = vld [vmem:[%s291] sm:$0xf]
      %v293 = vld [vmem:[%s291 + $0x4] sm:$0xf]
      %v294 = vld [vmem:[%s291 + $0x8] sm:$0xf]
      %v295 = vld [vmem:[%s291 + $0xc] sm:$0xf]
      %v296 = vld [vmem:[%s291 + $0x10] sm:$0xf]
      %v297 = vld [vmem:[%s291 + $0x14] sm:$0xf]
      %v298 = vld [vmem:[%s291 + $0x18] sm:$0xf]
      %v299 = vld [vmem:[%s291 + $0x1c] sm:$0xf]
      %v300 = vld [vmem:[%s291 + $0x20] sm:$0xf]
      %v301 = vld [vmem:[%s291 + $0x24] sm:$0xf]
      %v313 = vunpack.c.l.b16 %v270
      %v314 = vunpack.c.l.b16 %v271
      %v315 = vunpack.c.l.b16 %v272
      %v316 = vunpack.c.l.b16 %v273
      %v317 = vunpack.c.l.b16 %v274
      %v318 = vunpack.c.l.b16 %v275
      %v319 = vunpack.c.l.b16 %v276
      %v320 = vunpack.c.l.b16 %v277
      %v321 = vunpack.c.l.b16 %v278
      %v322 = vunpack.c.l.b16 %v279
      %v323 = vunpack.c.l.b16 %v290
      %v324 = vpack.c.b16 %v314, %v313
      %v325 = vpack.c.b16 %v316, %v315
      %v326 = vpack.c.b16 %v318, %v317
      %v327 = vpack.c.b16 %v320, %v319
      %v328 = vpack.c.b16 %v322, %v321
      %v329 = vpack.c.b16 %v323, %v323
      %vm330 = vsmask.f32 7424
      %v332 = vshrl.u32 %v324, 16
      %v334 = vshll.u32 %v324, 16
      %v336 = vrot.slane %v334, 1
      %v337 = vor.u32 %v332, %v336
      %v339 = vshll.u32 %v325, 16
      %v341 = vrot.slane %v339, 1
      %v342 = vsel %vm330, %v337, %v341
      %v343 = vshrl.u32 %v325, 16
      %v345 = vor.u32 %v343, %v341
      %v347 = vshll.u32 %v326, 16
      %v349 = vrot.slane %v347, 1
      %v350 = vsel %vm330, %v345, %v349
      %v351 = vshrl.u32 %v326, 16
      %v353 = vor.u32 %v351, %v349
      %v355 = vshll.u32 %v327, 16
      %v357 = vrot.slane %v355, 1
      %v358 = vsel %vm330, %v353, %v357
      %v359 = vshrl.u32 %v327, 16
      %v361 = vor.u32 %v359, %v357
      %v363 = vshll.u32 %v328, 16
      %v365 = vrot.slane %v363, 1
      %v366 = vsel %vm330, %v361, %v365
      %v367 = vshrl.u32 %v328, 16
      %v369 = vor.u32 %v367, %v365
      %v371 = vshll.u32 %v329, 16
      %v373 = vrot.slane %v371, 1
      %v374 = vsel %vm330, %v369, %v373
      %v385 = vunpack.c.l.b16 %v292
      %v386 = vunpack.c.l.b16 %v293
      %v387 = vunpack.c.l.b16 %v294
      %v388 = vunpack.c.l.b16 %v295
      %v389 = vunpack.c.l.b16 %v296
      %v390 = vunpack.c.l.b16 %v297
      %v391 = vunpack.c.l.b16 %v298
      %v392 = vunpack.c.l.b16 %v299
      %v393 = vunpack.c.l.b16 %v300
      %v394 = vunpack.c.l.b16 %v301
      %v395 = vpack.c.b16 %v386, %v385
      %v396 = vpack.c.b16 %v388, %v387
      %v397 = vpack.c.b16 %v390, %v389
      %v398 = vpack.c.b16 %v392, %v391
      %v399 = vpack.c.b16 %v394, %v393
      %vm405 = vcmask 654336
      %v407 = vsel %vm405, %v342, 0
      %v410 = vsel %vm405, %v350, 0
      %v413 = vsel %vm405, %v358, 0
      %v416 = vsel %vm405, %v366, 0
      %v419 = vsel %vm405, %v374, 0
      %421 = vmatpush.bf16.msra.mxu0 0
      %422 = vmatpush.bf16.msra.mxu0 0
      %423 = vmatpush.bf16.msra.mxu0 0
      %424 = vmatpush.bf16.msra.mxu0 %v399
      %425 = vmatpush.bf16.msra.mxu0 %v398
      %426 = vmatpush.bf16.msra.mxu0 %v397
      %427 = vmatpush.bf16.msra.mxu0 %v396
      %428 = vmatpush.bf16.msra.mxu0 %v395
      %429 = vmatmul.bf16.gmra.mxu0 %v407
      %v430 = vpop.f32.mrf.mxu0
      %v431 = vadd.f32 0.0, %v430
      %v432 = vpop.f32.mrf.mxu0
      %v433 = vadd.f32 0.0, %v432
      %434 = vmatmul.bf16.gmra.mxu0 %v410
      %v435 = vpop.f32.mrf.mxu0
      %v436 = vadd.f32 0.0, %v435
      %v437 = vpop.f32.mrf.mxu0
      %v438 = vadd.f32 0.0, %v437
      %439 = vmatmul.bf16.gmra.mxu0 %v413
      %v440 = vpop.f32.mrf.mxu0
      %v441 = vadd.f32 0.0, %v440
      %v442 = vpop.f32.mrf.mxu0
      %v443 = vadd.f32 0.0, %v442
      %444 = vmatmul.bf16.gmra.mxu0 %v416
      %v445 = vpop.f32.mrf.mxu0
      %v446 = vadd.f32 0.0, %v445
      %v447 = vpop.f32.mrf.mxu0
      %v448 = vadd.f32 0.0, %v447
      %449 = vmatmul.bf16.gmra.mxu0 %v419
      %v450 = vpop.f32.mrf.mxu0
      %v451 = vadd.f32 0.0, %v450
      %v452 = vpop.f32.mrf.mxu0
      %v453 = vadd.f32 0.0, %v452
      %454 = vdwg.mxu0
      %v465 = vunpack.c.l.b16 %v280
      %v466 = vunpack.c.l.b16 %v281
      %v467 = vunpack.c.l.b16 %v282
      %v468 = vunpack.c.l.b16 %v283
      %v469 = vunpack.c.l.b16 %v284
      %v470 = vunpack.c.l.b16 %v285
      %v471 = vunpack.c.l.b16 %v286
      %v472 = vunpack.c.l.b16 %v287
      %v473 = vunpack.c.l.b16 %v288
      %v474 = vunpack.c.l.b16 %v289
      %v475 = vpack.c.b16 %v466, %v465
      %v476 = vpack.c.b16 %v468, %v467
      %v477 = vpack.c.b16 %v470, %v469
      %v478 = vpack.c.b16 %v472, %v471
      %v479 = vpack.c.b16 %v474, %v473
      %v485 = vsel %vm405, %v324, 0
      %v487 = vsel %vm405, %v325, 0
      %v489 = vsel %vm405, %v326, 0
      %v491 = vsel %vm405, %v327, 0
      %v493 = vsel %vm405, %v328, 0
      %495 = vmatpush.bf16.msra.mxu0 0
      %496 = vmatpush.bf16.msra.mxu0 0
      %497 = vmatpush.bf16.msra.mxu0 0
      %498 = vmatpush.bf16.msra.mxu0 %v479
      %499 = vmatpush.bf16.msra.mxu0 %v478
      %500 = vmatpush.bf16.msra.mxu0 %v477
      %501 = vmatpush.bf16.msra.mxu0 %v476
      %502 = vmatpush.bf16.msra.mxu0 %v475
      %503 = vmatmul.bf16.gmra.mxu0 %v485
      %v504 = vpop.f32.mrf.mxu0
      %v505 = vadd.f32 %v431, %v504
      %v506 = vpop.f32.mrf.mxu0
      %v507 = vadd.f32 %v433, %v506
      %508 = vmatmul.bf16.gmra.mxu0 %v487
      %v509 = vpop.f32.mrf.mxu0
      %v510 = vadd.f32 %v436, %v509
      %v511 = vpop.f32.mrf.mxu0
      %v512 = vadd.f32 %v438, %v511
      %513 = vmatmul.bf16.gmra.mxu0 %v489
      %v514 = vpop.f32.mrf.mxu0
      %v515 = vadd.f32 %v441, %v514
      %v516 = vpop.f32.mrf.mxu0
      %v517 = vadd.f32 %v443, %v516
      %518 = vmatmul.bf16.gmra.mxu0 %v491
      %v519 = vpop.f32.mrf.mxu0
      %v520 = vadd.f32 %v446, %v519
      %v521 = vpop.f32.mrf.mxu0
      %v522 = vadd.f32 %v448, %v521
      %523 = vmatmul.bf16.gmra.mxu0 %v493
      %v524 = vpop.f32.mrf.mxu0
      %v525 = vadd.f32 %v451, %v524
      %v526 = vpop.f32.mrf.mxu0
      %v527 = vadd.f32 %v453, %v526
      %528 = vdwg.mxu0
      %v529 = vld [vmem:[%s257] sm:$0xe]
      %s530 = scalar_lea.vmem %s1, 80
      %v531 = vld [vmem:[%s530] sm:$0xf]
      %v532 = vld [vmem:[%s530 + $0x4] sm:$0xf]
      %v533 = vld [vmem:[%s530 + $0x8] sm:$0xf]
      %v534 = vld [vmem:[%s530 + $0xc] sm:$0xf]
      %v535 = vld [vmem:[%s530 + $0x10] sm:$0xf]
      %v536 = vld [vmem:[%s530 + $0x14] sm:$0xf]
      %v537 = vld [vmem:[%s530 + $0x18] sm:$0xf]
      %v538 = vld [vmem:[%s530 + $0x1c] sm:$0xf]
      %v539 = vld [vmem:[%s530 + $0x20] sm:$0xf]
      %v540 = vld [vmem:[%s530 + $0x24] sm:$0xf]
      %v542 = vunpack.c.l.b16 %v529
      %v543 = vpack.c.b16 %v314, %v542
      %vm544 = vcmask 1046528
      %v545 = vrot.slane %v543, 1
      %v546 = vrot.slane %v325, 1
      %v547 = vsel %vm544, %v545, %v546
      %v548 = vrot.slane %v326, 1
      %v549 = vsel %vm544, %v546, %v548
      %v550 = vrot.slane %v327, 1
      %v551 = vsel %vm544, %v548, %v550
      %v552 = vrot.slane %v328, 1
      %v553 = vsel %vm544, %v550, %v552
      %v554 = vrot.slane %v329, 1
      %v555 = vsel %vm544, %v552, %v554
      %v566 = vunpack.c.l.b16 %v531
      %v567 = vunpack.c.l.b16 %v532
      %v568 = vunpack.c.l.b16 %v533
      %v569 = vunpack.c.l.b16 %v534
      %v570 = vunpack.c.l.b16 %v535
      %v571 = vunpack.c.l.b16 %v536
      %v572 = vunpack.c.l.b16 %v537
      %v573 = vunpack.c.l.b16 %v538
      %v574 = vunpack.c.l.b16 %v539
      %v575 = vunpack.c.l.b16 %v540
      %v576 = vpack.c.b16 %v567, %v566
      %v577 = vpack.c.b16 %v569, %v568
      %v578 = vpack.c.b16 %v571, %v570
      %v579 = vpack.c.b16 %v573, %v572
      %v580 = vpack.c.b16 %v575, %v574
      %v587 = vsel %vm405, %v547, 0
      %v590 = vsel %vm405, %v549, 0
      %v593 = vsel %vm405, %v551, 0
      %v596 = vsel %vm405, %v553, 0
      %v599 = vsel %vm405, %v555, 0
      %601 = vmatpush.bf16.msra.mxu0 0
      %602 = vmatpush.bf16.msra.mxu0 0
      %603 = vmatpush.bf16.msra.mxu0 0
      %604 = vmatpush.bf16.msra.mxu0 %v580
      %605 = vmatpush.bf16.msra.mxu0 %v579
      %606 = vmatpush.bf16.msra.mxu0 %v578
      %607 = vmatpush.bf16.msra.mxu0 %v577
      %608 = vmatpush.bf16.msra.mxu0 %v576
      %609 = vmatmul.bf16.gmra.mxu0 %v587
      %v610 = vpop.f32.mrf.mxu0
      %v611 = vadd.f32 0.0, %v610
      %v612 = vpop.f32.mrf.mxu0
      %v613 = vadd.f32 0.0, %v612
      %614 = vmatmul.bf16.gmra.mxu0 %v590
      %v615 = vpop.f32.mrf.mxu0
      %v616 = vadd.f32 0.0, %v615
      %v617 = vpop.f32.mrf.mxu0
      %v618 = vadd.f32 0.0, %v617
      %619 = vmatmul.bf16.gmra.mxu0 %v593
      %v620 = vpop.f32.mrf.mxu0
      %v621 = vadd.f32 0.0, %v620
      %v622 = vpop.f32.mrf.mxu0
      %v623 = vadd.f32 0.0, %v622
      %624 = vmatmul.bf16.gmra.mxu0 %v596
      %v625 = vpop.f32.mrf.mxu0
      %v626 = vadd.f32 0.0, %v625
      %v627 = vpop.f32.mrf.mxu0
      %v628 = vadd.f32 0.0, %v627
      %629 = vmatmul.bf16.gmra.mxu0 %v599
      %v630 = vpop.f32.mrf.mxu0
      %v631 = vadd.f32 0.0, %v630
      %v632 = vpop.f32.mrf.mxu0
      %v633 = vadd.f32 0.0, %v632
      %634 = vdwg.mxu0
      %v635 = vadd.f32 %v505, %v611
      %v636 = vadd.f32 %v507, %v613
      %v637 = vadd.f32 %v510, %v616
      %v638 = vadd.f32 %v512, %v618
      %v639 = vadd.f32 %v515, %v621
      %v640 = vadd.f32 %v517, %v623
      %v641 = vadd.f32 %v520, %v626
      %v642 = vadd.f32 %v522, %v628
      %v643 = vadd.f32 %v525, %v631
      %v644 = vadd.f32 %v527, %v633
      %v645 = vld [vmem:[%s257 + $0x4] sm:$0xe]
      %v646 = vld [vmem:[%s257 + $0x8] sm:$0xf]
      %v647 = vld [vmem:[%s257 + $0xc] sm:$0xf]
      %v648 = vld [vmem:[%s257 + $0x10] sm:$0xf]
      %v649 = vld [vmem:[%s257 + $0x14] sm:$0xf]
      %v650 = vld [vmem:[%s257 + $0x18] sm:$0xf]
      %v651 = vld [vmem:[%s257 + $0x1c] sm:$0xf]
      %v652 = vld [vmem:[%s257 + $0x20] sm:$0xf]
      %v653 = vld [vmem:[%s257 + $0x24] sm:$0xf]
      %v654 = vld [vmem:[%s257 + $0x28] sm:$0xf]
      %v655 = vld [vmem:[%s257 + $0x2c] sm:$0x1]
      %s656 = scalar_lea.vmem %s1, 120
      %v657 = vld [vmem:[%s656] sm:$0xf]
      %v658 = vld [vmem:[%s656 + $0x4] sm:$0xf]
      %v659 = vld [vmem:[%s656 + $0x8] sm:$0xf]
      %v660 = vld [vmem:[%s656 + $0xc] sm:$0xf]
      %v661 = vld [vmem:[%s656 + $0x10] sm:$0xf]
      %v662 = vld [vmem:[%s656 + $0x14] sm:$0xf]
      %v663 = vld [vmem:[%s656 + $0x18] sm:$0xf]
      %v664 = vld [vmem:[%s656 + $0x1c] sm:$0xf]
      %v665 = vld [vmem:[%s656 + $0x20] sm:$0xf]
      %v666 = vld [vmem:[%s656 + $0x24] sm:$0xf]
      %v678 = vunpack.c.l.b16 %v645
      %v679 = vunpack.c.l.b16 %v646
      %v680 = vunpack.c.l.b16 %v647
      %v681 = vunpack.c.l.b16 %v648
      %v682 = vunpack.c.l.b16 %v649
      %v683 = vunpack.c.l.b16 %v650
      %v684 = vunpack.c.l.b16 %v651
      %v685 = vunpack.c.l.b16 %v652
      %v686 = vunpack.c.l.b16 %v653
      %v687 = vunpack.c.l.b16 %v654
      %v688 = vunpack.c.l.b16 %v655
      %v689 = vpack.c.b16 %v679, %v678
      %v690 = vpack.c.b16 %v681, %v680
      %v691 = vpack.c.b16 %v683, %v682
      %v692 = vpack.c.b16 %v685, %v684
      %v693 = vpack.c.b16 %v687, %v686
      %v694 = vpack.c.b16 %v688, %v688
      %v695 = vrot.slane %v689, 1
      %v696 = vrot.slane %v690, 1
      %v697 = vsel %vm544, %v695, %v696
      %v698 = vrot.slane %v691, 1
      %v699 = vsel %vm544, %v696, %v698
      %v700 = vrot.slane %v692, 1
      %v701 = vsel %vm544, %v698, %v700
      %v702 = vrot.slane %v693, 1
      %v703 = vsel %vm544, %v700, %v702
      %v704 = vrot.slane %v694, 1
      %v705 = vsel %vm544, %v702, %v704
      %v716 = vunpack.c.l.b16 %v657
      %v717 = vunpack.c.l.b16 %v658
      %v718 = vunpack.c.l.b16 %v659
      %v719 = vunpack.c.l.b16 %v660
      %v720 = vunpack.c.l.b16 %v661
      %v721 = vunpack.c.l.b16 %v662
      %v722 = vunpack.c.l.b16 %v663
      %v723 = vunpack.c.l.b16 %v664
      %v724 = vunpack.c.l.b16 %v665
      %v725 = vunpack.c.l.b16 %v666
      %v726 = vpack.c.b16 %v717, %v716
      %v727 = vpack.c.b16 %v719, %v718
      %v728 = vpack.c.b16 %v721, %v720
      %v729 = vpack.c.b16 %v723, %v722
      %v730 = vpack.c.b16 %v725, %v724
      %v737 = vsel %vm405, %v697, 0
      %v740 = vsel %vm405, %v699, 0
      %v743 = vsel %vm405, %v701, 0
      %v746 = vsel %vm405, %v703, 0
      %v749 = vsel %vm405, %v705, 0
      %751 = vmatpush.bf16.msra.mxu0 0
      %752 = vmatpush.bf16.msra.mxu0 0
      %753 = vmatpush.bf16.msra.mxu0 0
      %754 = vmatpush.bf16.msra.mxu0 %v730
      %755 = vmatpush.bf16.msra.mxu0 %v729
      %756 = vmatpush.bf16.msra.mxu0 %v728
      %757 = vmatpush.bf16.msra.mxu0 %v727
      %758 = vmatpush.bf16.msra.mxu0 %v726
      %759 = vmatmul.bf16.gmra.mxu0 %v737
      %v760 = vpop.f32.mrf.mxu0
      %v761 = vadd.f32 0.0, %v760
      %v762 = vpop.f32.mrf.mxu0
      %v763 = vadd.f32 0.0, %v762
      %764 = vmatmul.bf16.gmra.mxu0 %v740
      %v765 = vpop.f32.mrf.mxu0
      %v766 = vadd.f32 0.0, %v765
      %v767 = vpop.f32.mrf.mxu0
      %v768 = vadd.f32 0.0, %v767
      %769 = vmatmul.bf16.gmra.mxu0 %v743
      %v770 = vpop.f32.mrf.mxu0
      %v771 = vadd.f32 0.0, %v770
      %v772 = vpop.f32.mrf.mxu0
      %v773 = vadd.f32 0.0, %v772
      %774 = vmatmul.bf16.gmra.mxu0 %v746
      %v775 = vpop.f32.mrf.mxu0
      %v776 = vadd.f32 0.0, %v775
      %v777 = vpop.f32.mrf.mxu0
      %v778 = vadd.f32 0.0, %v777
      %779 = vmatmul.bf16.gmra.mxu0 %v749
      %v780 = vpop.f32.mrf.mxu0
      %v781 = vadd.f32 0.0, %v780
      %v782 = vpop.f32.mrf.mxu0
      %v783 = vadd.f32 0.0, %v782
      %784 = vdwg.mxu0
      %v785 = vadd.f32 %v635, %v761
      %v786 = vadd.f32 %v636, %v763
      %v787 = vadd.f32 %v637, %v766
      %v788 = vadd.f32 %v638, %v768
      %v789 = vadd.f32 %v639, %v771
      %v790 = vadd.f32 %v640, %v773
      %v791 = vadd.f32 %v641, %v776
      %v792 = vadd.f32 %v642, %v778
      %v793 = vadd.f32 %v643, %v781
      %v794 = vadd.f32 %v644, %v783
      %v795 = vld [vmem:[%s257 + $0x2c] sm:$0x3]
      %s796 = scalar_lea.vmem %s1, 160
      %v797 = vld [vmem:[%s796] sm:$0xf]
      %v798 = vld [vmem:[%s796 + $0x4] sm:$0xf]
      %v799 = vld [vmem:[%s796 + $0x8] sm:$0xf]
      %v800 = vld [vmem:[%s796 + $0xc] sm:$0xf]
      %v801 = vld [vmem:[%s796 + $0x10] sm:$0xf]
      %v802 = vld [vmem:[%s796 + $0x14] sm:$0xf]
      %v803 = vld [vmem:[%s796 + $0x18] sm:$0xf]
      %v804 = vld [vmem:[%s796 + $0x1c] sm:$0xf]
      %v805 = vld [vmem:[%s796 + $0x20] sm:$0xf]
      %v806 = vld [vmem:[%s796 + $0x24] sm:$0xf]
      %v808 = vunpack.c.l.b16 %v795
      %v809 = vpack.c.b16 %v808, %v808
      %vm810 = vsmask.f32 6400
      %v812 = vshrl.u32 %v689, 16
      %v814 = vrot.slane %v812, 1
      %v815 = vshll.u32 %v689, 16
      %v817 = vrot.slane %v815, 2
      %v818 = vor.u32 %v814, %v817
      %v820 = vshrl.u32 %v690, 16
      %v822 = vrot.slane %v820, 1
      %v823 = vshll.u32 %v690, 16
      %v825 = vrot.slane %v823, 2
      %v826 = vor.u32 %v822, %v825
      %v827 = vsel %vm810, %v818, %v826
      %v829 = vshrl.u32 %v691, 16
      %v831 = vrot.slane %v829, 1
      %v832 = vshll.u32 %v691, 16
      %v834 = vrot.slane %v832, 2
      %v835 = vor.u32 %v831, %v834
      %v836 = vsel %vm810, %v826, %v835
      %v838 = vshrl.u32 %v692, 16
      %v840 = vrot.slane %v838, 1
      %v841 = vshll.u32 %v692, 16
      %v843 = vrot.slane %v841, 2
      %v844 = vor.u32 %v840, %v843
      %v845 = vsel %vm810, %v835, %v844
      %v847 = vshrl.u32 %v693, 16
      %v849 = vrot.slane %v847, 1
      %v850 = vshll.u32 %v693, 16
      %v852 = vrot.slane %v850, 2
      %v853 = vor.u32 %v849, %v852
      %v854 = vsel %vm810, %v844, %v853
      %v856 = vshrl.u32 %v809, 16
      %v858 = vrot.slane %v856, 1
      %v859 = vshll.u32 %v809, 16
      %v861 = vrot.slane %v859, 2
      %v862 = vor.u32 %v858, %v861
      %v863 = vsel %vm810, %v853, %v862
      %v874 = vunpack.c.l.b16 %v797
      %v875 = vunpack.c.l.b16 %v798
      %v876 = vunpack.c.l.b16 %v799
      %v877 = vunpack.c.l.b16 %v800
      %v878 = vunpack.c.l.b16 %v801
      %v879 = vunpack.c.l.b16 %v802
      %v880 = vunpack.c.l.b16 %v803
      %v881 = vunpack.c.l.b16 %v804
      %v882 = vunpack.c.l.b16 %v805
      %v883 = vunpack.c.l.b16 %v806
      %v884 = vpack.c.b16 %v875, %v874
      %v885 = vpack.c.b16 %v877, %v876
      %v886 = vpack.c.b16 %v879, %v878
      %v887 = vpack.c.b16 %v881, %v880
      %v888 = vpack.c.b16 %v883, %v882
      %v895 = vsel %vm405, %v827, 0
      %v898 = vsel %vm405, %v836, 0
      %v901 = vsel %vm405, %v845, 0
      %v904 = vsel %vm405, %v854, 0
      %v907 = vsel %vm405, %v863, 0
      %909 = vmatpush.bf16.msra.mxu0 0
      %910 = vmatpush.bf16.msra.mxu0 0
      %911 = vmatpush.bf16.msra.mxu0 0
      %912 = vmatpush.bf16.msra.mxu0 %v888
      %913 = vmatpush.bf16.msra.mxu0 %v887
      %914 = vmatpush.bf16.msra.mxu0 %v886
      %915 = vmatpush.bf16.msra.mxu0 %v885
      %916 = vmatpush.bf16.msra.mxu0 %v884
      %917 = vmatmul.bf16.gmra.mxu0 %v895
      %v918 = vpop.f32.mrf.mxu0
      %v919 = vadd.f32 0.0, %v918
      %v920 = vpop.f32.mrf.mxu0
      %v921 = vadd.f32 0.0, %v920
      %922 = vmatmul.bf16.gmra.mxu0 %v898
      %v923 = vpop.f32.mrf.mxu0
      %v924 = vadd.f32 0.0, %v923
      %v925 = vpop.f32.mrf.mxu0
      %v926 = vadd.f32 0.0, %v925
      %927 = vmatmul.bf16.gmra.mxu0 %v901
      %v928 = vpop.f32.mrf.mxu0
      %v929 = vadd.f32 0.0, %v928
      %v930 = vpop.f32.mrf.mxu0
      %v931 = vadd.f32 0.0, %v930
      %932 = vmatmul.bf16.gmra.mxu0 %v904
      %v933 = vpop.f32.mrf.mxu0
      %v934 = vadd.f32 0.0, %v933
      %v935 = vpop.f32.mrf.mxu0
      %v936 = vadd.f32 0.0, %v935
      %937 = vmatmul.bf16.gmra.mxu0 %v907
      %v938 = vpop.f32.mrf.mxu0
      %v939 = vadd.f32 0.0, %v938
      %v940 = vpop.f32.mrf.mxu0
      %v941 = vadd.f32 0.0, %v940
      %942 = vdwg.mxu0
      %v943 = vadd.f32 %v785, %v919
      %v944 = vadd.f32 %v786, %v921
      %v945 = vadd.f32 %v787, %v924
      %v946 = vadd.f32 %v788, %v926
      %v947 = vadd.f32 %v789, %v929
      %v948 = vadd.f32 %v790, %v931
      %v949 = vadd.f32 %v791, %v934
      %v950 = vadd.f32 %v792, %v936
      %v951 = vadd.f32 %v793, %v939
      %v952 = vadd.f32 %v794, %v941
      %v953 = vld [vmem:[%s257 + $0x4] sm:$0xc]
      %s954 = scalar_lea.vmem %s1, 200
      %v955 = vld [vmem:[%s954] sm:$0xf]
      %v956 = vld [vmem:[%s954 + $0x4] sm:$0xf]
      %v957 = vld [vmem:[%s954 + $0x8] sm:$0xf]
      %v958 = vld [vmem:[%s954 + $0xc] sm:$0xf]
      %v959 = vld [vmem:[%s954 + $0x10] sm:$0xf]
      %v960 = vld [vmem:[%s954 + $0x14] sm:$0xf]
      %v961 = vld [vmem:[%s954 + $0x18] sm:$0xf]
      %v962 = vld [vmem:[%s954 + $0x1c] sm:$0xf]
      %v963 = vld [vmem:[%s954 + $0x20] sm:$0xf]
      %v964 = vld [vmem:[%s954 + $0x24] sm:$0xf]
      %v966 = vunpack.c.l.b16 %v953
      %v967 = vpack.c.b16 %v679, %v966
      %vm968 = vcmask 1045504
      %v969 = vrot.slane %v967, 2
      %v970 = vrot.slane %v690, 2
      %v971 = vsel %vm968, %v969, %v970
      %v972 = vrot.slane %v691, 2
      %v973 = vsel %vm968, %v970, %v972
      %v974 = vrot.slane %v692, 2
      %v975 = vsel %vm968, %v972, %v974
      %v976 = vrot.slane %v693, 2
      %v977 = vsel %vm968, %v974, %v976
      %v978 = vrot.slane %v809, 2
      %v979 = vsel %vm968, %v976, %v978
      %v990 = vunpack.c.l.b16 %v955
      %v991 = vunpack.c.l.b16 %v956
      %v992 = vunpack.c.l.b16 %v957
      %v993 = vunpack.c.l.b16 %v958
      %v994 = vunpack.c.l.b16 %v959
      %v995 = vunpack.c.l.b16 %v960
      %v996 = vunpack.c.l.b16 %v961
      %v997 = vunpack.c.l.b16 %v962
      %v998 = vunpack.c.l.b16 %v963
      %v999 = vunpack.c.l.b16 %v964
      %v1000 = vpack.c.b16 %v991, %v990
      %v1001 = vpack.c.b16 %v993, %v992
      %v1002 = vpack.c.b16 %v995, %v994
      %v1003 = vpack.c.b16 %v997, %v996
      %v1004 = vpack.c.b16 %v999, %v998
      %v1011 = vsel %vm405, %v971, 0
      %v1014 = vsel %vm405, %v973, 0
      %v1017 = vsel %vm405, %v975, 0
      %v1020 = vsel %vm405, %v977, 0
      %v1023 = vsel %vm405, %v979, 0
      %1025 = vmatpush.bf16.msra.mxu0 0
      %1026 = vmatpush.bf16.msra.mxu0 0
      %1027 = vmatpush.bf16.msra.mxu0 0
      %1028 = vmatpush.bf16.msra.mxu0 %v1004
      %1029 = vmatpush.bf16.msra.mxu0 %v1003
      %1030 = vmatpush.bf16.msra.mxu0 %v1002
      %1031 = vmatpush.bf16.msra.mxu0 %v1001
      %1032 = vmatpush.bf16.msra.mxu0 %v1000
      %1033 = vmatmul.bf16.gmra.mxu0 %v1011
      %v1034 = vpop.f32.mrf.mxu0
      %v1035 = vadd.f32 0.0, %v1034
      %v1036 = vpop.f32.mrf.mxu0
      %v1037 = vadd.f32 0.0, %v1036
      %1038 = vmatmul.bf16.gmra.mxu0 %v1014
      %v1039 = vpop.f32.mrf.mxu0
      %v1040 = vadd.f32 0.0, %v1039
      %v1041 = vpop.f32.mrf.mxu0
      %v1042 = vadd.f32 0.0, %v1041
      %1043 = vmatmul.bf16.gmra.mxu0 %v1017
      %v1044 = vpop.f32.mrf.mxu0
      %v1045 = vadd.f32 0.0, %v1044
      %v1046 = vpop.f32.mrf.mxu0
      %v1047 = vadd.f32 0.0, %v1046
      %1048 = vmatmul.bf16.gmra.mxu0 %v1020
      %v1049 = vpop.f32.mrf.mxu0
      %v1050 = vadd.f32 0.0, %v1049
      %v1051 = vpop.f32.mrf.mxu0
      %v1052 = vadd.f32 0.0, %v1051
      %1053 = vmatmul.bf16.gmra.mxu0 %v1023
      %v1054 = vpop.f32.mrf.mxu0
      %v1055 = vadd.f32 0.0, %v1054
      %v1056 = vpop.f32.mrf.mxu0
      %v1057 = vadd.f32 0.0, %v1056
      %1058 = vdwg.mxu0
      %v1059 = vadd.f32 %v943, %v1035
      %v1060 = vadd.f32 %v944, %v1037
      %v1061 = vadd.f32 %v945, %v1040
      %v1062 = vadd.f32 %v946, %v1042
      %v1063 = vadd.f32 %v947, %v1045
      %v1064 = vadd.f32 %v948, %v1047
      %v1065 = vadd.f32 %v949, %v1050
      %v1066 = vadd.f32 %v950, %v1052
      %v1067 = vadd.f32 %v951, %v1055
      %v1068 = vadd.f32 %v952, %v1057
      %v1069 = vld [vmem:[%s257 + $0x8] sm:$0xc]
      %v1070 = vld [vmem:[%s257 + $0xc] sm:$0xf]
      %v1071 = vld [vmem:[%s257 + $0x10] sm:$0xf]
      %v1072 = vld [vmem:[%s257 + $0x14] sm:$0xf]
      %v1073 = vld [vmem:[%s257 + $0x18] sm:$0xf]
      %v1074 = vld [vmem:[%s257 + $0x1c] sm:$0xf]
      %v1075 = vld [vmem:[%s257 + $0x20] sm:$0xf]
      %v1076 = vld [vmem:[%s257 + $0x24] sm:$0xf]
      %v1077 = vld [vmem:[%s257 + $0x28] sm:$0xf]
      %v1078 = vld [vmem:[%s257 + $0x2c] sm:$0xf]
      %v1079 = vld [vmem:[%s257 + $0x30] sm:$0x3]
      %s1080 = scalar_lea.vmem %s1, 240
      %v1081 = vld [vmem:[%s1080] sm:$0xf]
      %v1082 = vld [vmem:[%s1080 + $0x4] sm:$0xf]
      %v1083 = vld [vmem:[%s1080 + $0x8] sm:$0xf]
      %v1084 = vld [vmem:[%s1080 + $0xc] sm:$0xf]
      %v1085 = vld [vmem:[%s1080 + $0x10] sm:$0xf]
      %v1086 = vld [vmem:[%s1080 + $0x14] sm:$0xf]
      %v1087 = vld [vmem:[%s1080 + $0x18] sm:$0xf]
      %v1088 = vld [vmem:[%s1080 + $0x1c] sm:$0xf]
      %v1089 = vld [vmem:[%s1080 + $0x20] sm:$0xf]
      %v1090 = vld [vmem:[%s1080 + $0x24] sm:$0xf]
      %v1102 = vunpack.c.l.b16 %v1069
      %v1103 = vunpack.c.l.b16 %v1070
      %v1104 = vunpack.c.l.b16 %v1071
      %v1105 = vunpack.c.l.b16 %v1072
      %v1106 = vunpack.c.l.b16 %v1073
      %v1107 = vunpack.c.l.b16 %v1074
      %v1108 = vunpack.c.l.b16 %v1075
      %v1109 = vunpack.c.l.b16 %v1076
      %v1110 = vunpack.c.l.b16 %v1077
      %v1111 = vunpack.c.l.b16 %v1078
      %v1112 = vunpack.c.l.b16 %v1079
      %v1113 = vpack.c.b16 %v1103, %v1102
      %v1114 = vpack.c.b16 %v1105, %v1104
      %v1115 = vpack.c.b16 %v1107, %v1106
      %v1116 = vpack.c.b16 %v1109, %v1108
      %v1117 = vpack.c.b16 %v1111, %v1110
      %v1118 = vpack.c.b16 %v1112, %v1112
      %v1119 = vrot.slane %v1113, 2
      %v1120 = vrot.slane %v1114, 2
      %v1121 = vsel %vm968, %v1119, %v1120
      %v1122 = vrot.slane %v1115, 2
      %v1123 = vsel %vm968, %v1120, %v1122
      %v1124 = vrot.slane %v1116, 2
      %v1125 = vsel %vm968, %v1122, %v1124
      %v1126 = vrot.slane %v1117, 2
      %v1127 = vsel %vm968, %v1124, %v1126
      %v1128 = vrot.slane %v1118, 2
      %v1129 = vsel %vm968, %v1126, %v1128
      %v1140 = vunpack.c.l.b16 %v1081
      %v1141 = vunpack.c.l.b16 %v1082
      %v1142 = vunpack.c.l.b16 %v1083
      %v1143 = vunpack.c.l.b16 %v1084
      %v1144 = vunpack.c.l.b16 %v1085
      %v1145 = vunpack.c.l.b16 %v1086
      %v1146 = vunpack.c.l.b16 %v1087
      %v1147 = vunpack.c.l.b16 %v1088
      %v1148 = vunpack.c.l.b16 %v1089
      %v1149 = vunpack.c.l.b16 %v1090
      %v1150 = vpack.c.b16 %v1141, %v1140
      %v1151 = vpack.c.b16 %v1143, %v1142
      %v1152 = vpack.c.b16 %v1145, %v1144
      %v1153 = vpack.c.b16 %v1147, %v1146
      %v1154 = vpack.c.b16 %v1149, %v1148
      %v1161 = vsel %vm405, %v1121, 0
      %v1164 = vsel %vm405, %v1123, 0
      %v1167 = vsel %vm405, %v1125, 0
      %v1170 = vsel %vm405, %v1127, 0
      %v1173 = vsel %vm405, %v1129, 0
      %1175 = vmatpush.bf16.msra.mxu0 0
      %1176 = vmatpush.bf16.msra.mxu0 0
      %1177 = vmatpush.bf16.msra.mxu0 0
      %1178 = vmatpush.bf16.msra.mxu0 %v1154
      %1179 = vmatpush.bf16.msra.mxu0 %v1153
      %1180 = vmatpush.bf16.msra.mxu0 %v1152
      %1181 = vmatpush.bf16.msra.mxu0 %v1151
      %1182 = vmatpush.bf16.msra.mxu0 %v1150
      %1183 = vmatmul.bf16.gmra.mxu0 %v1161
      %v1184 = vpop.f32.mrf.mxu0
      %v1185 = vadd.f32 0.0, %v1184
      %v1186 = vpop.f32.mrf.mxu0
      %v1187 = vadd.f32 0.0, %v1186
      %1188 = vmatmul.bf16.gmra.mxu0 %v1164
      %v1189 = vpop.f32.mrf.mxu0
      %v1190 = vadd.f32 0.0, %v1189
      %v1191 = vpop.f32.mrf.mxu0
      %v1192 = vadd.f32 0.0, %v1191
      %1193 = vmatmul.bf16.gmra.mxu0 %v1167
      %v1194 = vpop.f32.mrf.mxu0
      %v1195 = vadd.f32 0.0, %v1194
      %v1196 = vpop.f32.mrf.mxu0
      %v1197 = vadd.f32 0.0, %v1196
      %1198 = vmatmul.bf16.gmra.mxu0 %v1170
      %v1199 = vpop.f32.mrf.mxu0
      %v1200 = vadd.f32 0.0, %v1199
      %v1201 = vpop.f32.mrf.mxu0
      %v1202 = vadd.f32 0.0, %v1201
      %1203 = vmatmul.bf16.gmra.mxu0 %v1173
      %v1204 = vpop.f32.mrf.mxu0
      %v1205 = vadd.f32 0.0, %v1204
      %v1206 = vpop.f32.mrf.mxu0
      %v1207 = vadd.f32 0.0, %v1206
      %1208 = vdwg.mxu0
      %v1209 = vadd.f32 %v1059, %v1185
      %v1210 = vadd.f32 %v1060, %v1187
      %v1211 = vadd.f32 %v1061, %v1190
      %v1212 = vadd.f32 %v1062, %v1192
      %v1213 = vadd.f32 %v1063, %v1195
      %v1214 = vadd.f32 %v1064, %v1197
      %v1215 = vadd.f32 %v1065, %v1200
      %v1216 = vadd.f32 %v1066, %v1202
      %v1217 = vadd.f32 %v1067, %v1205
      %v1218 = vadd.f32 %v1068, %v1207
      %v1219 = vld [vmem:[%s257 + $0x30] sm:$0x7]
      %s1220 = scalar_lea.vmem %s1, 280
      %v1221 = vld [vmem:[%s1220] sm:$0xf]
      %v1222 = vld [vmem:[%s1220 + $0x4] sm:$0xf]
      %v1223 = vld [vmem:[%s1220 + $0x8] sm:$0xf]
      %v1224 = vld [vmem:[%s1220 + $0xc] sm:$0xf]
      %v1225 = vld [vmem:[%s1220 + $0x10] sm:$0xf]
      %v1226 = vld [vmem:[%s1220 + $0x14] sm:$0xf]
      %v1227 = vld [vmem:[%s1220 + $0x18] sm:$0xf]
      %v1228 = vld [vmem:[%s1220 + $0x1c] sm:$0xf]
      %v1229 = vld [vmem:[%s1220 + $0x20] sm:$0xf]
      %v1230 = vld [vmem:[%s1220 + $0x24] sm:$0xf]
      %v1232 = vunpack.c.l.b16 %v1219
      %v1233 = vpack.c.b16 %v1232, %v1232
      %vm1234 = vsmask.f32 5376
      %v1236 = vshrl.u32 %v1113, 16
      %v1238 = vrot.slane %v1236, 2
      %v1239 = vshll.u32 %v1113, 16
      %v1241 = vrot.slane %v1239, 3
      %v1242 = vor.u32 %v1238, %v1241
      %v1244 = vshrl.u32 %v1114, 16
      %v1246 = vrot.slane %v1244, 2
      %v1247 = vshll.u32 %v1114, 16
      %v1249 = vrot.slane %v1247, 3
      %v1250 = vor.u32 %v1246, %v1249
      %v1251 = vsel %vm1234, %v1242, %v1250
      %v1253 = vshrl.u32 %v1115, 16
      %v1255 = vrot.slane %v1253, 2
      %v1256 = vshll.u32 %v1115, 16
      %v1258 = vrot.slane %v1256, 3
      %v1259 = vor.u32 %v1255, %v1258
      %v1260 = vsel %vm1234, %v1250, %v1259
      %v1262 = vshrl.u32 %v1116, 16
      %v1264 = vrot.slane %v1262, 2
      %v1265 = vshll.u32 %v1116, 16
      %v1267 = vrot.slane %v1265, 3
      %v1268 = vor.u32 %v1264, %v1267
      %v1269 = vsel %vm1234, %v1259, %v1268
      %v1271 = vshrl.u32 %v1117, 16
      %v1273 = vrot.slane %v1271, 2
      %v1274 = vshll.u32 %v1117, 16
      %v1276 = vrot.slane %v1274, 3
      %v1277 = vor.u32 %v1273, %v1276
      %v1278 = vsel %vm1234, %v1268, %v1277
      %v1280 = vshrl.u32 %v1233, 16
      %v1282 = vrot.slane %v1280, 2
      %v1283 = vshll.u32 %v1233, 16
      %v1285 = vrot.slane %v1283, 3
      %v1286 = vor.u32 %v1282, %v1285
      %v1287 = vsel %vm1234, %v1277, %v1286
      %v1298 = vunpack.c.l.b16 %v1221
      %v1299 = vunpack.c.l.b16 %v1222
      %v1300 = vunpack.c.l.b16 %v1223
      %v1301 = vunpack.c.l.b16 %v1224
      %v1302 = vunpack.c.l.b16 %v1225
      %v1303 = vunpack.c.l.b16 %v1226
      %v1304 = vunpack.c.l.b16 %v1227
      %v1305 = vunpack.c.l.b16 %v1228
      %v1306 = vunpack.c.l.b16 %v1229
      %v1307 = vunpack.c.l.b16 %v1230
      %v1308 = vpack.c.b16 %v1299, %v1298
      %v1309 = vpack.c.b16 %v1301, %v1300
      %v1310 = vpack.c.b16 %v1303, %v1302
      %v1311 = vpack.c.b16 %v1305, %v1304
      %v1312 = vpack.c.b16 %v1307, %v1306
      %v1319 = vsel %vm405, %v1251, 0
      %v1322 = vsel %vm405, %v1260, 0
      %v1325 = vsel %vm405, %v1269, 0
      %v1328 = vsel %vm405, %v1278, 0
      %v1331 = vsel %vm405, %v1287, 0
      %1333 = vmatpush.bf16.msra.mxu0 0
      %1334 = vmatpush.bf16.msra.mxu0 0
      %1335 = vmatpush.bf16.msra.mxu0 0
      %1336 = vmatpush.bf16.msra.mxu0 %v1312
      %1337 = vmatpush.bf16.msra.mxu0 %v1311
      %1338 = vmatpush.bf16.msra.mxu0 %v1310
      %1339 = vmatpush.bf16.msra.mxu0 %v1309
      %1340 = vmatpush.bf16.msra.mxu0 %v1308
      %1341 = vmatmul.bf16.gmra.mxu0 %v1319
      %v1342 = vpop.f32.mrf.mxu0
      %v1343 = vadd.f32 0.0, %v1342
      %v1344 = vpop.f32.mrf.mxu0
      %v1345 = vadd.f32 0.0, %v1344
      %1346 = vmatmul.bf16.gmra.mxu0 %v1322
      %v1347 = vpop.f32.mrf.mxu0
      %v1348 = vadd.f32 0.0, %v1347
      %v1349 = vpop.f32.mrf.mxu0
      %v1350 = vadd.f32 0.0, %v1349
      %1351 = vmatmul.bf16.gmra.mxu0 %v1325
      %v1352 = vpop.f32.mrf.mxu0
      %v1353 = vadd.f32 0.0, %v1352
      %v1354 = vpop.f32.mrf.mxu0
      %v1355 = vadd.f32 0.0, %v1354
      %1356 = vmatmul.bf16.gmra.mxu0 %v1328
      %v1357 = vpop.f32.mrf.mxu0
      %v1358 = vadd.f32 0.0, %v1357
      %v1359 = vpop.f32.mrf.mxu0
      %v1360 = vadd.f32 0.0, %v1359
      %1361 = vmatmul.bf16.gmra.mxu0 %v1331
      %v1362 = vpop.f32.mrf.mxu0
      %v1363 = vadd.f32 0.0, %v1362
      %v1364 = vpop.f32.mrf.mxu0
      %v1365 = vadd.f32 0.0, %v1364
      %1366 = vdwg.mxu0
      %v1367 = vadd.f32 %v1209, %v1343
      %v1368 = vadd.f32 %v1210, %v1345
      %v1369 = vadd.f32 %v1211, %v1348
      %v1370 = vadd.f32 %v1212, %v1350
      %v1371 = vadd.f32 %v1213, %v1353
      %v1372 = vadd.f32 %v1214, %v1355
      %v1373 = vadd.f32 %v1215, %v1358
      %v1374 = vadd.f32 %v1216, %v1360
      %v1375 = vadd.f32 %v1217, %v1363
      %v1376 = vadd.f32 %v1218, %v1365
      %v1377 = vld [vmem:[%s257 + $0x8] sm:$0x8]
      %s1378 = scalar_lea.vmem %s1, 320
      %v1379 = vld [vmem:[%s1378] sm:$0xf]
      %v1380 = vld [vmem:[%s1378 + $0x4] sm:$0xf]
      %v1381 = vld [vmem:[%s1378 + $0x8] sm:$0xf]
      %v1382 = vld [vmem:[%s1378 + $0xc] sm:$0xf]
      %v1383 = vld [vmem:[%s1378 + $0x10] sm:$0xf]
      %v1384 = vld [vmem:[%s1378 + $0x14] sm:$0xf]
      %v1385 = vld [vmem:[%s1378 + $0x18] sm:$0xf]
      %v1386 = vld [vmem:[%s1378 + $0x1c] sm:$0xf]
      %v1387 = vld [vmem:[%s1378 + $0x20] sm:$0xf]
      %v1388 = vld [vmem:[%s1378 + $0x24] sm:$0xf]
      %v1390 = vunpack.c.l.b16 %v1377
      %v1391 = vpack.c.b16 %v1103, %v1390
      %vm1392 = vcmask 1044480
      %v1393 = vrot.slane %v1391, 3
      %v1394 = vrot.slane %v1114, 3
      %v1395 = vsel %vm1392, %v1393, %v1394
      %v1396 = vrot.slane %v1115, 3
      %v1397 = vsel %vm1392, %v1394, %v1396
      %v1398 = vrot.slane %v1116, 3
      %v1399 = vsel %vm1392, %v1396, %v1398
      %v1400 = vrot.slane %v1117, 3
      %v1401 = vsel %vm1392, %v1398, %v1400
      %v1402 = vrot.slane %v1233, 3
      %v1403 = vsel %vm1392, %v1400, %v1402
      %v1414 = vunpack.c.l.b16 %v1379
      %v1415 = vunpack.c.l.b16 %v1380
      %v1416 = vunpack.c.l.b16 %v1381
      %v1417 = vunpack.c.l.b16 %v1382
      %v1418 = vunpack.c.l.b16 %v1383
      %v1419 = vunpack.c.l.b16 %v1384
      %v1420 = vunpack.c.l.b16 %v1385
      %v1421 = vunpack.c.l.b16 %v1386
      %v1422 = vunpack.c.l.b16 %v1387
      %v1423 = vunpack.c.l.b16 %v1388
      %v1424 = vpack.c.b16 %v1415, %v1414
      %v1425 = vpack.c.b16 %v1417, %v1416
      %v1426 = vpack.c.b16 %v1419, %v1418
      %v1427 = vpack.c.b16 %v1421, %v1420
      %v1428 = vpack.c.b16 %v1423, %v1422
      %v1435 = vsel %vm405, %v1395, 0
      %v1438 = vsel %vm405, %v1397, 0
      %v1441 = vsel %vm405, %v1399, 0
      %v1444 = vsel %vm405, %v1401, 0
      %v1447 = vsel %vm405, %v1403, 0
      %1449 = vmatpush.bf16.msra.mxu0 0
      %1450 = vmatpush.bf16.msra.mxu0 0
      %1451 = vmatpush.bf16.msra.mxu0 0
      %1452 = vmatpush.bf16.msra.mxu0 %v1428
      %1453 = vmatpush.bf16.msra.mxu0 %v1427
      %1454 = vmatpush.bf16.msra.mxu0 %v1426
      %1455 = vmatpush.bf16.msra.mxu0 %v1425
      %1456 = vmatpush.bf16.msra.mxu0 %v1424
      %1457 = vmatmul.bf16.gmra.mxu0 %v1435
      %v1458 = vpop.f32.mrf.mxu0
      %v1459 = vadd.f32 0.0, %v1458
      %v1460 = vpop.f32.mrf.mxu0
      %v1461 = vadd.f32 0.0, %v1460
      %1462 = vmatmul.bf16.gmra.mxu0 %v1438
      %v1463 = vpop.f32.mrf.mxu0
      %v1464 = vadd.f32 0.0, %v1463
      %v1465 = vpop.f32.mrf.mxu0
      %v1466 = vadd.f32 0.0, %v1465
      %1467 = vmatmul.bf16.gmra.mxu0 %v1441
      %v1468 = vpop.f32.mrf.mxu0
      %v1469 = vadd.f32 0.0, %v1468
      %v1470 = vpop.f32.mrf.mxu0
      %v1471 = vadd.f32 0.0, %v1470
      %1472 = vmatmul.bf16.gmra.mxu0 %v1444
      %v1473 = vpop.f32.mrf.mxu0
      %v1474 = vadd.f32 0.0, %v1473
      %v1475 = vpop.f32.mrf.mxu0
      %v1476 = vadd.f32 0.0, %v1475
      %1477 = vmatmul.bf16.gmra.mxu0 %v1447
      %v1478 = vpop.f32.mrf.mxu0
      %v1479 = vadd.f32 0.0, %v1478
      %v1480 = vpop.f32.mrf.mxu0
      %v1481 = vadd.f32 0.0, %v1480
      %1482 = vdwg.mxu0
      %v1483 = vadd.f32 %v1367, %v1459
      %v1484 = vadd.f32 %v1368, %v1461
      %v1485 = vadd.f32 %v1369, %v1464
      %v1486 = vadd.f32 %v1370, %v1466
      %v1487 = vadd.f32 %v1371, %v1469
      %v1488 = vadd.f32 %v1372, %v1471
      %v1489 = vadd.f32 %v1373, %v1474
      %v1490 = vadd.f32 %v1374, %v1476
      %v1491 = vadd.f32 %v1375, %v1479
      %v1492 = vadd.f32 %v1376, %v1481
      %v1493 = vld [vmem:[%s2] sm:$0x1]
      %v1495 = vperm.slane %v1493, 0
      %v1497 = vadd.f32 %v1483, %v1495
      %v1498 = vadd.f32 %v1484, %v1495
      %v1499 = vadd.f32 %v1485, %v1495
      %v1500 = vadd.f32 %v1486, %v1495
      %v1501 = vadd.f32 %v1487, %v1495
      %v1502 = vadd.f32 %v1488, %v1495
      %v1503 = vadd.f32 %v1489, %v1495
      %v1504 = vadd.f32 %v1490, %v1495
      %v1505 = vadd.f32 %v1491, %v1495
      %v1506 = vadd.f32 %v1492, %v1495
      %v1507 = vpack.c.bf16 %v1497, %v1497
      %v1508 = vpack.c.bf16 %v1498, %v1498
      %v1509 = vpack.c.bf16 %v1499, %v1499
      %v1510 = vpack.c.bf16 %v1500, %v1500
      %v1511 = vpack.c.bf16 %v1501, %v1501
      %v1512 = vpack.c.bf16 %v1502, %v1502
      %v1513 = vpack.c.bf16 %v1503, %v1503
      %v1514 = vpack.c.bf16 %v1504, %v1504
      %v1515 = vpack.c.bf16 %v1505, %v1505
      %v1516 = vpack.c.bf16 %v1506, %v1506
      %vm1517 = vcmask 519168
      %1518 = vst.msk [vmem:[%s262] sm:$0xf] %vm1517, %v1507
      %1519 = vst.msk [vmem:[%s262 + $0x4] sm:$0xf] %vm1517, %v1508
      %1520 = vst.msk [vmem:[%s262 + $0x8] sm:$0xf] %vm1517, %v1509
      %1521 = vst.msk [vmem:[%s262 + $0xc] sm:$0xf] %vm1517, %v1510
      %1522 = vst.msk [vmem:[%s262 + $0x10] sm:$0xf] %vm1517, %v1511
      %1523 = vst.msk [vmem:[%s262 + $0x14] sm:$0xf] %vm1517, %v1512
      %1524 = vst.msk [vmem:[%s262 + $0x18] sm:$0xf] %vm1517, %v1513
      %1525 = vst.msk [vmem:[%s262 + $0x1c] sm:$0xf] %vm1517, %v1514
      %1526 = vst.msk [vmem:[%s262 + $0x20] sm:$0xf] %vm1517, %v1515
      %1527 = vst.msk [vmem:[%s262 + $0x24] sm:$0xf] %vm1517, %v1516
      %v1528 = vld [vmem:[%s3] sm:$0x1]
      %v1530 = vsel %vm405, %v1528, 0
      %1532 = vmatpush.msra.mxu0 0.0
      %1533 = vmatpush.msra.mxu0 0.0
      %1534 = vmatpush.msra.mxu0 0.0
      %1535 = vmatpush.msra.mxu0 0.0
      %1536 = vmatpush.msra.mxu0 0.0
      %1537 = vmatpush.msra.mxu0 0.0
      %1538 = vmatpush.msra.mxu0 %v1506
      %1539 = vmatpush.msra.mxu0 %v1505
      %1540 = vmatpush.msra.mxu0 %v1504
      %1541 = vmatpush.msra.mxu0 %v1503
      %1542 = vmatpush.msra.mxu0 %v1502
      %1543 = vmatpush.msra.mxu0 %v1501
      %1544 = vmatpush.msra.mxu0 %v1500
      %1545 = vmatpush.msra.mxu0 %v1499
      %1546 = vmatpush.msra.mxu0 %v1498
      %1547 = vmatpush.msra.mxu0 %v1497
      %1548 = vmatmul.f32.gmra.mxu0 %v1530
      %v1549 = vpop.f32.mrf.mxu0
      %v1550 = vadd.f32 0.0, %v1549
      %1551 = vdwg.mxu0
      %vm1552 = vcmask 516096
      %1553 = vst.msk [vmem:[%s265] sm:$0x1] %vm1552, %v1550
      %v1554 = vmul.f32 %v1497, %v1497
      %v1555 = vmul.f32 %v1498, %v1498
      %v1556 = vmul.f32 %v1499, %v1499
      %v1557 = vmul.f32 %v1500, %v1500
      %v1558 = vmul.f32 %v1501, %v1501
      %v1559 = vmul.f32 %v1502, %v1502
      %v1560 = vmul.f32 %v1503, %v1503
      %v1561 = vmul.f32 %v1504, %v1504
      %v1562 = vmul.f32 %v1505, %v1505
      %v1563 = vmul.f32 %v1506, %v1506
      %1564 = vmatpush.msra.mxu0 0.0
      %1565 = vmatpush.msra.mxu0 0.0
      %1566 = vmatpush.msra.mxu0 0.0
      %1567 = vmatpush.msra.mxu0 0.0
      %1568 = vmatpush.msra.mxu0 0.0
      %1569 = vmatpush.msra.mxu0 0.0
      %1570 = vmatpush.msra.mxu0 %v1563
      %1571 = vmatpush.msra.mxu0 %v1562
      %1572 = vmatpush.msra.mxu0 %v1561
      %1573 = vmatpush.msra.mxu0 %v1560
      %1574 = vmatpush.msra.mxu0 %v1559
      %1575 = vmatpush.msra.mxu0 %v1558
      %1576 = vmatpush.msra.mxu0 %v1557
      %1577 = vmatpush.msra.mxu0 %v1556
      %1578 = vmatpush.msra.mxu0 %v1555
      %1579 = vmatpush.msra.mxu0 %v1554
      %1580 = vmatmul.f32.gmra.mxu0 %v1530
      %v1581 = vpop.f32.mrf.mxu0
      %v1582 = vadd.f32 0.0, %v1581
      %1583 = vdwg.mxu0
      %1584 = vst.msk [vmem:[%s268] sm:$0x1] %vm1552, %v1582
      %p1585 = scmp.lt.s32.totalorder %s18, 1
      %s1586 = scalar_select %p1585, %s18, 1
      %s1587 = smul.addr %s1586, 10
      %s1588 = smul.addr %s1587, 4
      %s1589 = scalar_lea.vmem %s4, %s1588
      %p1590 = scmp.lt.s32.totalorder %s18, 1
      %s1591 = scalar_select %p1590, %s18, 1
      %s1592 = scalar_lea.vmem %s5, %s1591
      %p1593 = scmp.lt.s32.totalorder %s18, 1
      %s1594 = scalar_select %p1593, %s18, 1
      %s1595 = scalar_lea.vmem %s6, %s1594
      // Predicated region
      $region37: #{conv_block_forward.6} parent=35 // pred_check
        %p1596 = pneg %p125
      $region38: #{conv_block_forward.6} parent=35 // pred_check_branch
        %1598 = sbr.rel (%p1596) target = $region40
      $region39: #{conv_block_forward.6} parent=35 // pred_region
        _
      $region40: #{conv_block_forward.6} parent=35 // pred_fallthru
        _
      // Predicated region
      $region41: #{conv_block_forward.6} parent=35 // pred_check
        %p1599 = pneg %p151
      $region42: #{conv_block_forward.6} parent=35 // pred_check_branch
        %1601 = sbr.rel (%p1599) target = $region44
      $region43: #{conv_block_forward.6} parent=35 // pred_region
        _
      $region44: #{conv_block_forward.6} parent=35 // pred_fallthru
        _
      // Predicated region
      $region45: #{conv_block_forward.6} parent=35 // pred_check
        %p1602 = pneg %p177
      $region46: #{conv_block_forward.6} parent=35 // pred_check_branch
        %1604 = sbr.rel (%p1602) target = $region48
      $region47: #{conv_block_forward.6} parent=35 // pred_region
        _
      $region48: #{conv_block_forward.6} parent=35 // pred_fallthru
        _
    $region36: #{conv_block_forward.6} parent=5 // pred_fallthru
      _
    %p1605 = scmp.le.s32.totalorder 2, %s13
    // Predicated region
    $region49: #{conv_block_forward.6} parent=5 // pred_check
      %p1606 = pneg %p1605
    $region50: #{conv_block_forward.6} parent=5 // pred_check_branch
      %1608 = sbr.rel (%p1606) target = $region52
    $region51: #{conv_block_forward.6} parent=5 // pred_region
      %s1609 = ssub.s32 %s13, 2
      // Predicated region
      $region53: #{conv_block_forward.6} parent=51 // pred_check
        %p1610 = pneg %p131
      $region54: #{conv_block_forward.6} parent=51 // pred_check_branch
        %1612 = sbr.rel (%p1610) target = $region56
      $region55: #{conv_block_forward.6} parent=51 // pred_region
        %p1613 = scmp.lt.s32.totalorder %s19, 1
        %s1614 = scalar_select %p1613, %s19, 1
        %s1615 = smul.addr %s1614, 10
        %s1616 = smul.addr %s1615, 4
        %s1617 = scalar_lea.vmem %s4, %s1616
      $region56: #{conv_block_forward.6} parent=51 // pred_fallthru
        _
      // Predicated region
      $region57: #{conv_block_forward.6} parent=51 // pred_check
        %p1618 = pneg %p157
      $region58: #{conv_block_forward.6} parent=51 // pred_check_branch
        %1620 = sbr.rel (%p1618) target = $region60
      $region59: #{conv_block_forward.6} parent=51 // pred_region
        %p1621 = scmp.lt.s32.totalorder %s19, 1
        %s1622 = scalar_select %p1621, %s19, 1
        %s1623 = scalar_lea.vmem %s5, %s1622
      $region60: #{conv_block_forward.6} parent=51 // pred_fallthru
        _
      // Predicated region
      $region61: #{conv_block_forward.6} parent=51 // pred_check
        %p1624 = pneg %p183
      $region62: #{conv_block_forward.6} parent=51 // pred_check_branch
        %1626 = sbr.rel (%p1624) target = $region64
      $region63: #{conv_block_forward.6} parent=51 // pred_region
        %p1627 = scmp.lt.s32.totalorder %s19, 1
        %s1628 = scalar_select %p1627, %s19, 1
        %s1629 = scalar_lea.vmem %s6, %s1628
      $region64: #{conv_block_forward.6} parent=51 // pred_fallthru
        _
    $region52: #{conv_block_forward.6} parent=5 // pred_fallthru
      _
  $region6: #{conv_block_forward.6} parent=0 // loop_footer
    %s17 = sadd.s32 1, %s13
  $region7: #{conv_block_forward.6} parent=0 // loop_footer_branch
    %12 = sbr.rel target = $region3
  $region8: #{conv_block_forward.6} parent=0 // loop_exit
    _

</llo_original>
